<compile_context>
chip_gen: v5e
topology: v5e:2x2
jax: 0.10.0
libtpu: 0.0.40
codegen_flags: <defaults>
</compile_context>

<pallas_src>
import functools

import jax
import jax.numpy as jnp
from jax.experimental import pallas as pl
from jax.experimental.pallas import tpu as pltpu


# ----------------------------------------------------------------------------
# Fused kernel
# ----------------------------------------------------------------------------
def _spatial_attention2_kernel(xp_ref, wdw_ref, bdw_ref, wpw_ref, bpw_ref,
                               o_ref, *, K, dilation, pad, th, n_h, W, C, LW):
    """One row tile of: dwconv(dil)+ReLU -> 1x1 conv -> sigmoid(sigmoid) -> x*gate.

    xp_ref : (1, Hp, Wp*C) reflect-padded image for this batch element
             (resident across row-tile steps — index_map ignores the row axis).
    o_ref  : (1, th, W*C) output tile in packed (row, W*C) lane-dense layout.
    """
    WC = W * C
    G = WC // LW

    if n_h == 1:
        row0 = 0                                  # static offsets: whole image in one tile
    else:
        row0 = pl.program_id(1) * th
        if th % 8 == 0:
            row0 = pl.multiple_of(row0, 8)

    # ---- dilated depthwise KxK conv: 25-tap in-register accumulation -------
    # One lane-aligned ref load per kh; the kw offset is a static lane slice
    # of that value (multiples of 128 are free vreg selects, the unaligned
    # offsets ride the XLU shift slot).  No sublane-crossing value copies.
    acc = jnp.zeros((th, WC), jnp.float32)
    for kh in range(K):
        rows = xp_ref[0, pl.ds(row0 + kh * dilation, th), :]       # (th, Wp*C)
        for kw in range(K):
            off = kw * dilation * C
            w_tap = wdw_ref[pl.ds(kh * K + kw, 1), :]              # (1, WC)
            acc = acc + rows[:, off:off + WC] * w_tap
    acc = jnp.maximum(acc + bdw_ref[...], 0.0)                     # bias + fused ReLU

    # gating input x == centre window of the reflect-padded image (read once)
    x_c = xp_ref[0, pl.ds(row0 + pad, th), pl.ds(pad * C, WC)]     # (th, WC)

    # ---- 1x1 conv: ONE MXU dot with M = G*th, bf16 operands / f32 acc ------
    a_cat = jnp.concatenate([acc[:, g * LW:(g + 1) * LW] for g in range(G)],
                            axis=0).astype(jnp.bfloat16)           # (G*th, LW)
    z = jnp.dot(a_cat, wpw_ref[...],
                preferred_element_type=jnp.float32) + bpw_ref[...]
    # depthwise_conv.forward ends in sigmoid; SpatialAttention2 applies
    # sigmoid again (the double sigmoid is in the reference module).
    gate = jax.nn.sigmoid(jax.nn.sigmoid(z))                       # (G*th, LW)
    gate = jnp.concatenate([gate[g * th:(g + 1) * th, :] for g in range(G)],
                           axis=1)                                  # (th, WC)

    # single lane-dense (th, WC) store
    o_ref[0, :, :] = x_c * gate


# ----------------------------------------------------------------------------
# Wrapper (layout plumbing + pallas_call)
# ----------------------------------------------------------------------------
def spatial_attention2(x_nchw, params, *, kernel_size=5, dilation=2):
    """SpatialAttention2 forward. x_nchw: (N, C, H, W) float32 (PyTorch layout)."""
    w_dw = params["dw_w"]          # (C, 1, K, K)   depthwise conv weight (torch layout)
    b_dw = params["dw_b"]          # (C,)
    w_pw = params["pw_w"]          # (C, C, 1, 1)   pointwise conv weight
    b_pw = params["pw_b"]          # (C,)

    N, C, H, W = x_nchw.shape
    K = kernel_size
    pad = 2 * (K // 2)             # ReflectionPad2d(2 * (kernel_size // 2))
    WC = W * C

    if WC % 128 != 0 or 128 % C != 0:
        # TODO(synk): add an unpacked-layout fallback for channel/width combos
        # whose packed row is not a multiple of the 128-lane vreg width.
        raise NotImplementedError("requires 128 % C == 0 and (W*C) % 128 == 0")

    # Lane-group width for the block-diagonal 1x1 weight: 256 fills the v6e/v7x
    # MXU N; on v5e (128-wide MXU) 256 is still correct, just zero-padded wider.
    # TODO(synk): select 128 vs 256 per chip via pltpu.get_tpu_info().
    LW = 256 if (WC % 256 == 0 and 256 % C == 0) else 128

    # Row tile: whole image for small H; bounded row tiles for large H so the
    # fully-unrolled 25-tap accumulation doesn't blow the register file.
    if H <= 32:
        th = H
    else:
        th = next((t for t in (32, 16, 8) if H % t == 0), H)
    n_h = H // th

    # NHWC, reflect pad (XLA), then lane-pack (W, C) into one dense axis.
    x = jnp.transpose(x_nchw, (0, 2, 3, 1)).astype(jnp.float32)          # (N,H,W,C)
    xp = jnp.pad(x, ((0, 0), (pad, pad), (pad, pad), (0, 0)), mode="reflect")
    Hp, Wp = H + 2 * pad, W + 2 * pad
    WpC = Wp * C
    xp = xp.reshape(N, Hp, WpC)                                          # free reshape

    # depthwise weights / bias tiled along the packed lane axis
    KK = K * K
    wk = jnp.transpose(w_dw.reshape(C, K, K), (1, 2, 0)).reshape(KK, C)  # (KK, C)
    wdw = jnp.tile(wk[:, None, :], (1, W, 1)).reshape(KK, WC)
    bdw = jnp.tile(b_dw[None, :], (1, W)).reshape(1, WC)

    # pointwise 1x1 conv as a block-diagonal (LW, LW) bf16 matrix: keeps the
    # packed layout (no in-kernel reshape to (pixels, C)).
    Gb = LW // C
    wpw = jnp.kron(jnp.eye(Gb, dtype=jnp.float32),
                   w_pw.reshape(C, C).T).astype(jnp.bfloat16)            # (LW, LW)
    bpw = jnp.tile(b_pw, Gb).reshape(1, LW).astype(jnp.float32)

    kernel = functools.partial(_spatial_attention2_kernel, K=K,
                               dilation=dilation, pad=pad, th=th, n_h=n_h,
                               W=W, C=C, LW=LW)
    out = pl.pallas_call(
        kernel,
        out_shape=jax.ShapeDtypeStruct((N, H, WC), jnp.float32),
        grid_spec=pltpu.PrefetchScalarGridSpec(
            num_scalar_prefetch=0,
            grid=(N, n_h),
            in_specs=[
                # padded image per batch element; index_map ignores the row-tile
                # axis, so the block stays resident in VMEM across row tiles
                pl.BlockSpec((1, Hp, WpC), lambda b, i: (b, 0, 0)),
                pl.BlockSpec((KK, WC), lambda b, i: (0, 0)),
                pl.BlockSpec((1, WC), lambda b, i: (0, 0)),
                pl.BlockSpec((LW, LW), lambda b, i: (0, 0)),
                pl.BlockSpec((1, LW), lambda b, i: (0, 0)),
            ],
            out_specs=pl.BlockSpec((1, th, WC), lambda b, i: (b, i, 0)),
        ),
        compiler_params=pltpu.CompilerParams(
            dimension_semantics=("parallel", "parallel"),
            vmem_limit_bytes=64 * 1024 * 1024),
    )(xp, wdw, bdw, wpw, bpw)

    out = out.reshape(N, H, W, C)
    return jnp.transpose(out, (0, 3, 1, 2))           # back to NCHW


# ----------------------------------------------------------------------------
# Pure-JAX reference (mirrors the PyTorch module), used for verification
# ----------------------------------------------------------------------------
def spatial_attention2_reference(x_nchw, params, *, kernel_size=5, dilation=2):
    C = x_nchw.shape[1]
    K = kernel_size
    pad = 2 * (K // 2)
    xp = jnp.pad(x_nchw, ((0, 0), (0, 0), (pad, pad), (pad, pad)), mode="reflect")
    dw = jax.lax.conv_general_dilated(
        xp, params["dw_w"], window_strides=(1, 1), padding="VALID",
        rhs_dilation=(dilation, dilation),
        dimension_numbers=("NCHW", "OIHW", "NCHW"), feature_group_count=C)
    dw = jnp.maximum(dw + params["dw_b"][None, :, None, None], 0.0)
    pw = jax.lax.conv_general_dilated(
        dw, params["pw_w"], window_strides=(1, 1), padding="VALID",
        dimension_numbers=("NCHW", "OIHW", "NCHW"))
    z = jax.nn.sigmoid(pw + params["pw_b"][None, :, None, None])
    return x_nchw * jax.nn.sigmoid(z)


if __name__ == "__main__":
    key = jax.random.PRNGKey(0)
    kw1, kb1, kw2, kb2, kx = jax.random.split(key, 5)
    C, K = 32, 5
    params = {
        "dw_w": 0.1 * jax.random.normal(kw1, (C, 1, K, K), jnp.float32),
        "dw_b": 0.1 * jax.random.normal(kb1, (C,), jnp.float32),
        "pw_w": 0.1 * jax.random.normal(kw2, (C, C, 1, 1), jnp.float32),
        "pw_b": 0.1 * jax.random.normal(kb2, (C,), jnp.float32),
    }
    x = jax.random.normal(kx, (2, C, 16, 16), dtype=jnp.float32)   # NCHW

    out = jax.jit(spatial_attention2)(x, params)
    out = jax.block_until_ready(out)

    assert out.shape == x.shape, out.shape
    assert bool(jnp.all(jnp.isfinite(out)))
    ref = spatial_attention2_reference(x, params)
    err = float(jnp.max(jnp.abs(out - ref)))
    assert err < 5e-3, f"max |err| = {err}"
    print("KERNEL_OK")
</pallas_src>

<mosaic_0001>
module attributes {stable_mosaic.version = 11 : i64} {
  func.func @_spatial_attention2_kernel(%arg0: i32, %arg1: i32, %arg2: memref<1x24x768xf32, #tpu.memory_space<vmem>>, %arg3: memref<25x512xf32, #tpu.memory_space<vmem>>, %arg4: memref<1x512xf32, #tpu.memory_space<vmem>>, %arg5: memref<256x256xbf16, #tpu.memory_space<vmem>>, %arg6: memref<1x256xf32, #tpu.memory_space<vmem>>, %arg7: memref<1x16x512xf32, #tpu.memory_space<vmem>>) attributes {dimension_semantics = [#tpu.dimension_semantics<parallel>, #tpu.dimension_semantics<parallel>], iteration_bounds = array<i64: 2, 1>, scalar_prefetch = 0 : i64, scratch_operands = 0 : i64, tpu.core_type = #tpu.core_type<tc>, window_params = [{transform_indices = @transform_0, window_bounds = array<i64: 1, 24, 768>}, {pipeline_mode = #tpu.pipeline_mode<synchronous>, transform_indices = @transform_1, window_bounds = array<i64: 25, 512>}, {pipeline_mode = #tpu.pipeline_mode<synchronous>, transform_indices = @transform_2, window_bounds = array<i64: 1, 512>}, {pipeline_mode = #tpu.pipeline_mode<synchronous>, transform_indices = @transform_3, window_bounds = array<i64: 256, 256>}, {pipeline_mode = #tpu.pipeline_mode<synchronous>, transform_indices = @transform_4, window_bounds = array<i64: 1, 256>}, {transform_indices = @transform_5, window_bounds = array<i64: 1, 16, 512>}]} {
    %cst = arith.constant 0.000000e+00 : f32
    %0 = vector.broadcast %cst : f32 to vector<16x512xf32>
    %c0 = arith.constant 0 : index
    %c0_0 = arith.constant 0 : index
    %c0_1 = arith.constant 0 : index
    %1 = vector.load %arg2[%c0, %c0_0, %c0_1] : memref<1x24x768xf32, #tpu.memory_space<vmem>>, vector<1x16x768xf32>
    %2 = vector.shape_cast %1 : vector<1x16x768xf32> to vector<16x768xf32>
    %c0_2 = arith.constant 0 : index
    %c0_3 = arith.constant 0 : index
    %3 = vector.load %arg3[%c0_2, %c0_3] : memref<25x512xf32, #tpu.memory_space<vmem>>, vector<1x512xf32>
    %4 = vector.extract_strided_slice %2 {offsets = [0, 0], sizes = [16, 512], strides = [1, 1]} : vector<16x768xf32> to vector<16x512xf32>
    %5 = vector.broadcast %3 : vector<1x512xf32> to vector<16x512xf32>
    %6 = arith.mulf %4, %5 : vector<16x512xf32>
    %7 = arith.addf %0, %6 : vector<16x512xf32>
    %c1 = arith.constant 1 : index
    %c0_4 = arith.constant 0 : index
    %8 = vector.load %arg3[%c1, %c0_4] : memref<25x512xf32, #tpu.memory_space<vmem>>, vector<1x512xf32>
    %9 = vector.extract_strided_slice %2 {offsets = [0, 64], sizes = [16, 512], strides = [1, 1]} : vector<16x768xf32> to vector<16x512xf32>
    %10 = vector.broadcast %8 : vector<1x512xf32> to vector<16x512xf32>
    %11 = arith.mulf %9, %10 : vector<16x512xf32>
    %12 = arith.addf %7, %11 : vector<16x512xf32>
    %c2 = arith.constant 2 : index
    %c0_5 = arith.constant 0 : index
    %13 = vector.load %arg3[%c2, %c0_5] : memref<25x512xf32, #tpu.memory_space<vmem>>, vector<1x512xf32>
    %14 = vector.extract_strided_slice %2 {offsets = [0, 128], sizes = [16, 512], strides = [1, 1]} : vector<16x768xf32> to vector<16x512xf32>
    %15 = vector.broadcast %13 : vector<1x512xf32> to vector<16x512xf32>
    %16 = arith.mulf %14, %15 : vector<16x512xf32>
    %17 = arith.addf %12, %16 : vector<16x512xf32>
    %c3 = arith.constant 3 : index
    %c0_6 = arith.constant 0 : index
    %18 = vector.load %arg3[%c3, %c0_6] : memref<25x512xf32, #tpu.memory_space<vmem>>, vector<1x512xf32>
    %19 = vector.extract_strided_slice %2 {offsets = [0, 192], sizes = [16, 512], strides = [1, 1]} : vector<16x768xf32> to vector<16x512xf32>
    %20 = vector.broadcast %18 : vector<1x512xf32> to vector<16x512xf32>
    %21 = arith.mulf %19, %20 : vector<16x512xf32>
    %22 = arith.addf %17, %21 : vector<16x512xf32>
    %c4 = arith.constant 4 : index
    %c0_7 = arith.constant 0 : index
    %23 = vector.load %arg3[%c4, %c0_7] : memref<25x512xf32, #tpu.memory_space<vmem>>, vector<1x512xf32>
    %24 = vector.extract_strided_slice %2 {offsets = [0, 256], sizes = [16, 512], strides = [1, 1]} : vector<16x768xf32> to vector<16x512xf32>
    %25 = vector.broadcast %23 : vector<1x512xf32> to vector<16x512xf32>
    %26 = arith.mulf %24, %25 : vector<16x512xf32>
    %27 = arith.addf %22, %26 : vector<16x512xf32>
    %c0_8 = arith.constant 0 : index
    %c2_9 = arith.constant 2 : index
    %c0_10 = arith.constant 0 : index
    %28 = vector.load %arg2[%c0_8, %c2_9, %c0_10] : memref<1x24x768xf32, #tpu.memory_space<vmem>>, vector<1x16x768xf32>
    %29 = vector.shape_cast %28 : vector<1x16x768xf32> to vector<16x768xf32>
    %c5 = arith.constant 5 : index
    %c0_11 = arith.constant 0 : index
    %30 = vector.load %arg3[%c5, %c0_11] : memref<25x512xf32, #tpu.memory_space<vmem>>, vector<1x512xf32>
    %31 = vector.extract_strided_slice %29 {offsets = [0, 0], sizes = [16, 512], strides = [1, 1]} : vector<16x768xf32> to vector<16x512xf32>
    %32 = vector.broadcast %30 : vector<1x512xf32> to vector<16x512xf32>
    %33 = arith.mulf %31, %32 : vector<16x512xf32>
    %34 = arith.addf %27, %33 : vector<16x512xf32>
    %c6 = arith.constant 6 : index
    %c0_12 = arith.constant 0 : index
    %35 = vector.load %arg3[%c6, %c0_12] : memref<25x512xf32, #tpu.memory_space<vmem>>, vector<1x512xf32>
    %36 = vector.extract_strided_slice %29 {offsets = [0, 64], sizes = [16, 512], strides = [1, 1]} : vector<16x768xf32> to vector<16x512xf32>
    %37 = vector.broadcast %35 : vector<1x512xf32> to vector<16x512xf32>
    %38 = arith.mulf %36, %37 : vector<16x512xf32>
    %39 = arith.addf %34, %38 : vector<16x512xf32>
    %c7 = arith.constant 7 : index
    %c0_13 = arith.constant 0 : index
    %40 = vector.load %arg3[%c7, %c0_13] : memref<25x512xf32, #tpu.memory_space<vmem>>, vector<1x512xf32>
    %41 = vector.extract_strided_slice %29 {offsets = [0, 128], sizes = [16, 512], strides = [1, 1]} : vector<16x768xf32> to vector<16x512xf32>
    %42 = vector.broadcast %40 : vector<1x512xf32> to vector<16x512xf32>
    %43 = arith.mulf %41, %42 : vector<16x512xf32>
    %44 = arith.addf %39, %43 : vector<16x512xf32>
    %c8 = arith.constant 8 : index
    %c0_14 = arith.constant 0 : index
    %45 = vector.load %arg3[%c8, %c0_14] : memref<25x512xf32, #tpu.memory_space<vmem>>, vector<1x512xf32>
    %46 = vector.extract_strided_slice %29 {offsets = [0, 192], sizes = [16, 512], strides = [1, 1]} : vector<16x768xf32> to vector<16x512xf32>
    %47 = vector.broadcast %45 : vector<1x512xf32> to vector<16x512xf32>
    %48 = arith.mulf %46, %47 : vector<16x512xf32>
    %49 = arith.addf %44, %48 : vector<16x512xf32>
    %c9 = arith.constant 9 : index
    %c0_15 = arith.constant 0 : index
    %50 = vector.load %arg3[%c9, %c0_15] : memref<25x512xf32, #tpu.memory_space<vmem>>, vector<1x512xf32>
    %51 = vector.extract_strided_slice %29 {offsets = [0, 256], sizes = [16, 512], strides = [1, 1]} : vector<16x768xf32> to vector<16x512xf32>
    %52 = vector.broadcast %50 : vector<1x512xf32> to vector<16x512xf32>
    %53 = arith.mulf %51, %52 : vector<16x512xf32>
    %54 = arith.addf %49, %53 : vector<16x512xf32>
    %c0_16 = arith.constant 0 : index
    %c4_17 = arith.constant 4 : index
    %c0_18 = arith.constant 0 : index
    %55 = vector.load %arg2[%c0_16, %c4_17, %c0_18] : memref<1x24x768xf32, #tpu.memory_space<vmem>>, vector<1x16x768xf32>
    %56 = vector.shape_cast %55 : vector<1x16x768xf32> to vector<16x768xf32>
    %c10 = arith.constant 10 : index
    %c0_19 = arith.constant 0 : index
    %57 = vector.load %arg3[%c10, %c0_19] : memref<25x512xf32, #tpu.memory_space<vmem>>, vector<1x512xf32>
    %58 = vector.extract_strided_slice %56 {offsets = [0, 0], sizes = [16, 512], strides = [1, 1]} : vector<16x768xf32> to vector<16x512xf32>
    %59 = vector.broadcast %57 : vector<1x512xf32> to vector<16x512xf32>
    %60 = arith.mulf %58, %59 : vector<16x512xf32>
    %61 = arith.addf %54, %60 : vector<16x512xf32>
    %c11 = arith.constant 11 : index
    %c0_20 = arith.constant 0 : index
    %62 = vector.load %arg3[%c11, %c0_20] : memref<25x512xf32, #tpu.memory_space<vmem>>, vector<1x512xf32>
    %63 = vector.extract_strided_slice %56 {offsets = [0, 64], sizes = [16, 512], strides = [1, 1]} : vector<16x768xf32> to vector<16x512xf32>
    %64 = vector.broadcast %62 : vector<1x512xf32> to vector<16x512xf32>
    %65 = arith.mulf %63, %64 : vector<16x512xf32>
    %66 = arith.addf %61, %65 : vector<16x512xf32>
    %c12 = arith.constant 12 : index
    %c0_21 = arith.constant 0 : index
    %67 = vector.load %arg3[%c12, %c0_21] : memref<25x512xf32, #tpu.memory_space<vmem>>, vector<1x512xf32>
    %68 = vector.extract_strided_slice %56 {offsets = [0, 128], sizes = [16, 512], strides = [1, 1]} : vector<16x768xf32> to vector<16x512xf32>
    %69 = vector.broadcast %67 : vector<1x512xf32> to vector<16x512xf32>
    %70 = arith.mulf %68, %69 : vector<16x512xf32>
    %71 = arith.addf %66, %70 : vector<16x512xf32>
    %c13 = arith.constant 13 : index
    %c0_22 = arith.constant 0 : index
    %72 = vector.load %arg3[%c13, %c0_22] : memref<25x512xf32, #tpu.memory_space<vmem>>, vector<1x512xf32>
    %73 = vector.extract_strided_slice %56 {offsets = [0, 192], sizes = [16, 512], strides = [1, 1]} : vector<16x768xf32> to vector<16x512xf32>
    %74 = vector.broadcast %72 : vector<1x512xf32> to vector<16x512xf32>
    %75 = arith.mulf %73, %74 : vector<16x512xf32>
    %76 = arith.addf %71, %75 : vector<16x512xf32>
    %c14 = arith.constant 14 : index
    %c0_23 = arith.constant 0 : index
    %77 = vector.load %arg3[%c14, %c0_23] : memref<25x512xf32, #tpu.memory_space<vmem>>, vector<1x512xf32>
    %78 = vector.extract_strided_slice %56 {offsets = [0, 256], sizes = [16, 512], strides = [1, 1]} : vector<16x768xf32> to vector<16x512xf32>
    %79 = vector.broadcast %77 : vector<1x512xf32> to vector<16x512xf32>
    %80 = arith.mulf %78, %79 : vector<16x512xf32>
    %81 = arith.addf %76, %80 : vector<16x512xf32>
    %c0_24 = arith.constant 0 : index
    %c6_25 = arith.constant 6 : index
    %c0_26 = arith.constant 0 : index
    %82 = vector.load %arg2[%c0_24, %c6_25, %c0_26] : memref<1x24x768xf32, #tpu.memory_space<vmem>>, vector<1x16x768xf32>
    %83 = vector.shape_cast %82 : vector<1x16x768xf32> to vector<16x768xf32>
    %c15 = arith.constant 15 : index
    %c0_27 = arith.constant 0 : index
    %84 = vector.load %arg3[%c15, %c0_27] : memref<25x512xf32, #tpu.memory_space<vmem>>, vector<1x512xf32>
    %85 = vector.extract_strided_slice %83 {offsets = [0, 0], sizes = [16, 512], strides = [1, 1]} : vector<16x768xf32> to vector<16x512xf32>
    %86 = vector.broadcast %84 : vector<1x512xf32> to vector<16x512xf32>
    %87 = arith.mulf %85, %86 : vector<16x512xf32>
    %88 = arith.addf %81, %87 : vector<16x512xf32>
    %c16 = arith.constant 16 : index
    %c0_28 = arith.constant 0 : index
    %89 = vector.load %arg3[%c16, %c0_28] : memref<25x512xf32, #tpu.memory_space<vmem>>, vector<1x512xf32>
    %90 = vector.extract_strided_slice %83 {offsets = [0, 64], sizes = [16, 512], strides = [1, 1]} : vector<16x768xf32> to vector<16x512xf32>
    %91 = vector.broadcast %89 : vector<1x512xf32> to vector<16x512xf32>
    %92 = arith.mulf %90, %91 : vector<16x512xf32>
    %93 = arith.addf %88, %92 : vector<16x512xf32>
    %c17 = arith.constant 17 : index
    %c0_29 = arith.constant 0 : index
    %94 = vector.load %arg3[%c17, %c0_29] : memref<25x512xf32, #tpu.memory_space<vmem>>, vector<1x512xf32>
    %95 = vector.extract_strided_slice %83 {offsets = [0, 128], sizes = [16, 512], strides = [1, 1]} : vector<16x768xf32> to vector<16x512xf32>
    %96 = vector.broadcast %94 : vector<1x512xf32> to vector<16x512xf32>
    %97 = arith.mulf %95, %96 : vector<16x512xf32>
    %98 = arith.addf %93, %97 : vector<16x512xf32>
    %c18 = arith.constant 18 : index
    %c0_30 = arith.constant 0 : index
    %99 = vector.load %arg3[%c18, %c0_30] : memref<25x512xf32, #tpu.memory_space<vmem>>, vector<1x512xf32>
    %100 = vector.extract_strided_slice %83 {offsets = [0, 192], sizes = [16, 512], strides = [1, 1]} : vector<16x768xf32> to vector<16x512xf32>
    %101 = vector.broadcast %99 : vector<1x512xf32> to vector<16x512xf32>
    %102 = arith.mulf %100, %101 : vector<16x512xf32>
    %103 = arith.addf %98, %102 : vector<16x512xf32>
    %c19 = arith.constant 19 : index
    %c0_31 = arith.constant 0 : index
    %104 = vector.load %arg3[%c19, %c0_31] : memref<25x512xf32, #tpu.memory_space<vmem>>, vector<1x512xf32>
    %105 = vector.extract_strided_slice %83 {offsets = [0, 256], sizes = [16, 512], strides = [1, 1]} : vector<16x768xf32> to vector<16x512xf32>
    %106 = vector.broadcast %104 : vector<1x512xf32> to vector<16x512xf32>
    %107 = arith.mulf %105, %106 : vector<16x512xf32>
    %108 = arith.addf %103, %107 : vector<16x512xf32>
    %c0_32 = arith.constant 0 : index
    %c8_33 = arith.constant 8 : index
    %c0_34 = arith.constant 0 : index
    %109 = vector.load %arg2[%c0_32, %c8_33, %c0_34] : memref<1x24x768xf32, #tpu.memory_space<vmem>>, vector<1x16x768xf32>
    %110 = vector.shape_cast %109 : vector<1x16x768xf32> to vector<16x768xf32>
    %c20 = arith.constant 20 : index
    %c0_35 = arith.constant 0 : index
    %111 = vector.load %arg3[%c20, %c0_35] : memref<25x512xf32, #tpu.memory_space<vmem>>, vector<1x512xf32>
    %112 = vector.extract_strided_slice %110 {offsets = [0, 0], sizes = [16, 512], strides = [1, 1]} : vector<16x768xf32> to vector<16x512xf32>
    %113 = vector.broadcast %111 : vector<1x512xf32> to vector<16x512xf32>
    %114 = arith.mulf %112, %113 : vector<16x512xf32>
    %115 = arith.addf %108, %114 : vector<16x512xf32>
    %c21 = arith.constant 21 : index
    %c0_36 = arith.constant 0 : index
    %116 = vector.load %arg3[%c21, %c0_36] : memref<25x512xf32, #tpu.memory_space<vmem>>, vector<1x512xf32>
    %117 = vector.extract_strided_slice %110 {offsets = [0, 64], sizes = [16, 512], strides = [1, 1]} : vector<16x768xf32> to vector<16x512xf32>
    %118 = vector.broadcast %116 : vector<1x512xf32> to vector<16x512xf32>
    %119 = arith.mulf %117, %118 : vector<16x512xf32>
    %120 = arith.addf %115, %119 : vector<16x512xf32>
    %c22 = arith.constant 22 : index
    %c0_37 = arith.constant 0 : index
    %121 = vector.load %arg3[%c22, %c0_37] : memref<25x512xf32, #tpu.memory_space<vmem>>, vector<1x512xf32>
    %122 = vector.extract_strided_slice %110 {offsets = [0, 128], sizes = [16, 512], strides = [1, 1]} : vector<16x768xf32> to vector<16x512xf32>
    %123 = vector.broadcast %121 : vector<1x512xf32> to vector<16x512xf32>
    %124 = arith.mulf %122, %123 : vector<16x512xf32>
    %125 = arith.addf %120, %124 : vector<16x512xf32>
    %c23 = arith.constant 23 : index
    %c0_38 = arith.constant 0 : index
    %126 = vector.load %arg3[%c23, %c0_38] : memref<25x512xf32, #tpu.memory_space<vmem>>, vector<1x512xf32>
    %127 = vector.extract_strided_slice %110 {offsets = [0, 192], sizes = [16, 512], strides = [1, 1]} : vector<16x768xf32> to vector<16x512xf32>
    %128 = vector.broadcast %126 : vector<1x512xf32> to vector<16x512xf32>
    %129 = arith.mulf %127, %128 : vector<16x512xf32>
    %130 = arith.addf %125, %129 : vector<16x512xf32>
    %c24 = arith.constant 24 : index
    %c0_39 = arith.constant 0 : index
    %131 = vector.load %arg3[%c24, %c0_39] : memref<25x512xf32, #tpu.memory_space<vmem>>, vector<1x512xf32>
    %132 = vector.extract_strided_slice %110 {offsets = [0, 256], sizes = [16, 512], strides = [1, 1]} : vector<16x768xf32> to vector<16x512xf32>
    %133 = vector.broadcast %131 : vector<1x512xf32> to vector<16x512xf32>
    %134 = arith.mulf %132, %133 : vector<16x512xf32>
    %135 = arith.addf %130, %134 : vector<16x512xf32>
    %c0_40 = arith.constant 0 : index
    %c0_41 = arith.constant 0 : index
    %136 = vector.load %arg4[%c0_40, %c0_41] : memref<1x512xf32, #tpu.memory_space<vmem>>, vector<1x512xf32>
    %137 = vector.broadcast %136 : vector<1x512xf32> to vector<16x512xf32>
    %138 = arith.addf %135, %137 : vector<16x512xf32>
    %cst_42 = arith.constant 0.000000e+00 : f32
    %139 = vector.broadcast %cst_42 : f32 to vector<16x512xf32>
    %140 = arith.maximumf %138, %139 : vector<16x512xf32>
    %c0_43 = arith.constant 0 : index
    %c4_44 = arith.constant 4 : index
    %c128 = arith.constant 128 : index
    %141 = vector.load %arg2[%c0_43, %c4_44, %c128] : memref<1x24x768xf32, #tpu.memory_space<vmem>>, vector<1x16x512xf32>
    %142 = vector.shape_cast %141 : vector<1x16x512xf32> to vector<16x512xf32>
    %143 = vector.extract_strided_slice %140 {offsets = [0, 0], sizes = [16, 256], strides = [1, 1]} : vector<16x512xf32> to vector<16x256xf32>
    %144 = vector.extract_strided_slice %140 {offsets = [0, 256], sizes = [16, 256], strides = [1, 1]} : vector<16x512xf32> to vector<16x256xf32>
    %145 = tpu.concatenate %143, %144 in 0 : vector<16x256xf32>, vector<16x256xf32> -> vector<32x256xf32>
    %146 = arith.truncf %145 : vector<32x256xf32> to vector<32x256xbf16>
    %c0_45 = arith.constant 0 : index
    %c0_46 = arith.constant 0 : index
    %147 = vector.load %arg5[%c0_45, %c0_46] : memref<256x256xbf16, #tpu.memory_space<vmem>>, vector<256x256xbf16>
    %cst_47 = arith.constant dense<0.000000e+00> : vector<32x256xf32>
    %148 = tpu.matmul %146, %147, %cst_47 {dimension_numbers = #tpu.dot_dimension_numbers<[1], [0], [0], [1], [0, 0, 1, 1], [], []>} : vector<32x256xbf16>, vector<256x256xbf16>, vector<32x256xf32> -> vector<32x256xf32>
    %c0_48 = arith.constant 0 : index
    %c0_49 = arith.constant 0 : index
    %149 = vector.load %arg6[%c0_48, %c0_49] : memref<1x256xf32, #tpu.memory_space<vmem>>, vector<1x256xf32>
    %150 = vector.broadcast %149 : vector<1x256xf32> to vector<32x256xf32>
    %151 = arith.addf %148, %150 : vector<32x256xf32>
    %152 = arith.negf %151 : vector<32x256xf32>
    %153 = math.exp %152 : vector<32x256xf32>
    %cst_50 = arith.constant 1.000000e+00 : f32
    %154 = vector.broadcast %cst_50 : f32 to vector<32x256xf32>
    %155 = arith.addf %154, %153 : vector<32x256xf32>
    %156 = arith.divf %154, %155 : vector<32x256xf32>
    %157 = arith.negf %156 : vector<32x256xf32>
    %158 = math.exp %157 : vector<32x256xf32>
    %cst_51 = arith.constant 1.000000e+00 : f32
    %159 = vector.broadcast %cst_51 : f32 to vector<32x256xf32>
    %160 = arith.addf %159, %158 : vector<32x256xf32>
    %161 = arith.divf %159, %160 : vector<32x256xf32>
    %162 = vector.extract_strided_slice %161 {offsets = [0, 0], sizes = [16, 256], strides = [1, 1]} : vector<32x256xf32> to vector<16x256xf32>
    %163 = vector.extract_strided_slice %161 {offsets = [16, 0], sizes = [16, 256], strides = [1, 1]} : vector<32x256xf32> to vector<16x256xf32>
    %164 = tpu.concatenate %162, %163 in 1 : vector<16x256xf32>, vector<16x256xf32> -> vector<16x512xf32>
    %165 = arith.mulf %142, %164 : vector<16x512xf32>
    %c0_52 = arith.constant 0 : index
    %c0_53 = arith.constant 0 : index
    %c0_54 = arith.constant 0 : index
    %166 = vector.load %arg7[%c0_52, %c0_53, %c0_54] : memref<1x16x512xf32, #tpu.memory_space<vmem>>, vector<1x16x512xf32>
    %167 = vector.shape_cast %166 : vector<1x16x512xf32> to vector<16x512xf32>
    %168 = vector.shape_cast %165 : vector<16x512xf32> to vector<1x16x512xf32>
    tpu.vector_store %arg7[%c0_52, %c0_53, %c0_54], %168 {strides = array<i32>} : memref<1x16x512xf32, #tpu.memory_space<vmem>>, vector<1x16x512xf32>,
    return
  }
  func.func @transform_0(%arg0: i32, %arg1: i32) -> (i32, i32, i32) {
    %c0_i32 = arith.constant 0 : i32
    %c0_i32_0 = arith.constant 0 : i32
    %c0_i32_1 = arith.constant 0 : i32
    return %arg0, %c0_i32, %c0_i32_0 : i32, i32, i32
  }
  func.func @transform_1(%arg0: i32, %arg1: i32) -> (i32, i32) {
    %c0_i32 = arith.constant 0 : i32
    %c0_i32_0 = arith.constant 0 : i32
    %c0_i32_1 = arith.constant 0 : i32
    return %c0_i32, %c0_i32_0 : i32, i32
  }
  func.func @transform_2(%arg0: i32, %arg1: i32) -> (i32, i32) {
    %c0_i32 = arith.constant 0 : i32
    %c0_i32_0 = arith.constant 0 : i32
    %c0_i32_1 = arith.constant 0 : i32
    return %c0_i32, %c0_i32_0 : i32, i32
  }
  func.func @transform_3(%arg0: i32, %arg1: i32) -> (i32, i32) {
    %c0_i32 = arith.constant 0 : i32
    %c0_i32_0 = arith.constant 0 : i32
    %c0_i32_1 = arith.constant 0 : i32
    return %c0_i32, %c0_i32_0 : i32, i32
  }
  func.func @transform_4(%arg0: i32, %arg1: i32) -> (i32, i32) {
    %c0_i32 = arith.constant 0 : i32
    %c0_i32_0 = arith.constant 0 : i32
    %c0_i32_1 = arith.constant 0 : i32
    return %c0_i32, %c0_i32_0 : i32, i32
  }
  func.func @transform_5(%arg0: i32, %arg1: i32) -> (i32, i32, i32) {
    %c0_i32 = arith.constant 0 : i32
    %c0_i32_0 = arith.constant 0 : i32
    return %arg0, %arg1, %c0_i32 : i32, i32, i32
  }
}

</mosaic_0001>

<llo_original>
// kernel: tile.16
$region0: #{tile.16}
  %s0 = inlined_call_operand.vmem [shape: f32[25,16,1,1,32], index: 0, kind: input, shape index: {}]
  %s1 = inlined_call_operand.vmem [shape: f32[25,512], index: 1, kind: output, shape index: {}]
  %v2 = vld [vmem:[%s0] ss:$4 sm:$0xff]
  %vm3 = vcmask 261120
  %4 = vst.msk [vmem:[%s1] ss:$8 sm:$0xf] %vm3, %v2
  %s5 = scalar_lea.vmem %s1, 4294967265
  %6 = vst.msk [vmem:[%s5] ss:$8 sm:$0xf0] %vm3, %v2
  %s7 = scalar_lea.vmem %s0, 32
  %v8 = vld [vmem:[%s7] ss:$4 sm:$0xff]
  %vm9 = vcmask 261120
  %s10 = scalar_lea.vmem %s1, 2
  %11 = vst.msk [vmem:[%s10] ss:$8 sm:$0xf] %vm9, %v8
  %s12 = scalar_lea.vmem %s1, 4294967267
  %13 = vst.msk [vmem:[%s12] ss:$8 sm:$0xf0] %vm9, %v8
  %s14 = scalar_lea.vmem %s0, 64
  %v15 = vld [vmem:[%s14] ss:$4 sm:$0xff]
  %vm16 = vcmask 261120
  %s17 = scalar_lea.vmem %s1, 4
  %18 = vst.msk [vmem:[%s17] ss:$8 sm:$0xf] %vm16, %v15
  %s19 = scalar_lea.vmem %s1, 4294967269
  %20 = vst.msk [vmem:[%s19] ss:$8 sm:$0xf0] %vm16, %v15
  %s21 = scalar_lea.vmem %s0, 96
  %v22 = vld [vmem:[%s21] ss:$4 sm:$0xff]
  %vm23 = vcmask 261120
  %s24 = scalar_lea.vmem %s1, 6
  %25 = vst.msk [vmem:[%s24] ss:$8 sm:$0xf] %vm23, %v22
  %s26 = scalar_lea.vmem %s1, 4294967271
  %27 = vst.msk [vmem:[%s26] ss:$8 sm:$0xf0] %vm23, %v22
  %s28 = scalar_lea.vmem %s0, 128
  %v29 = vld [vmem:[%s28] ss:$4 sm:$0xff]
  %vm30 = vcmask 261120
  %s31 = scalar_lea.vmem %s1, 32
  %32 = vst.msk [vmem:[%s31] ss:$8 sm:$0xf] %vm30, %v29
  %s33 = scalar_lea.vmem %s1, 1
  %34 = vst.msk [vmem:[%s33] ss:$8 sm:$0xf0] %vm30, %v29
  %s35 = scalar_lea.vmem %s0, 160
  %v36 = vld [vmem:[%s35] ss:$4 sm:$0xff]
  %vm37 = vcmask 261120
  %s38 = scalar_lea.vmem %s1, 34
  %39 = vst.msk [vmem:[%s38] ss:$8 sm:$0xf] %vm37, %v36
  %s40 = scalar_lea.vmem %s1, 3
  %41 = vst.msk [vmem:[%s40] ss:$8 sm:$0xf0] %vm37, %v36
  %s42 = scalar_lea.vmem %s0, 192
  %v43 = vld [vmem:[%s42] ss:$4 sm:$0xff]
  %vm44 = vcmask 261120
  %s45 = scalar_lea.vmem %s1, 36
  %46 = vst.msk [vmem:[%s45] ss:$8 sm:$0xf] %vm44, %v43
  %s47 = scalar_lea.vmem %s1, 5
  %48 = vst.msk [vmem:[%s47] ss:$8 sm:$0xf0] %vm44, %v43
  %s49 = scalar_lea.vmem %s0, 224
  %v50 = vld [vmem:[%s49] ss:$4 sm:$0xff]
  %vm51 = vcmask 261120
  %s52 = scalar_lea.vmem %s1, 38
  %53 = vst.msk [vmem:[%s52] ss:$8 sm:$0xf] %vm51, %v50
  %s54 = scalar_lea.vmem %s1, 7
  %55 = vst.msk [vmem:[%s54] ss:$8 sm:$0xf0] %vm51, %v50
  %s56 = scalar_lea.vmem %s0, 256
  %v57 = vld [vmem:[%s56] ss:$4 sm:$0xff]
  %vm58 = vcmask 261120
  %s59 = scalar_lea.vmem %s1, 64
  %60 = vst.msk [vmem:[%s59] ss:$8 sm:$0xf] %vm58, %v57
  %s61 = scalar_lea.vmem %s1, 33
  %62 = vst.msk [vmem:[%s61] ss:$8 sm:$0xf0] %vm58, %v57
  %s63 = scalar_lea.vmem %s0, 288
  %v64 = vld [vmem:[%s63] ss:$4 sm:$0xff]
  %vm65 = vcmask 261120
  %s66 = scalar_lea.vmem %s1, 66
  %67 = vst.msk [vmem:[%s66] ss:$8 sm:$0xf] %vm65, %v64
  %s68 = scalar_lea.vmem %s1, 35
  %69 = vst.msk [vmem:[%s68] ss:$8 sm:$0xf0] %vm65, %v64
  %s70 = scalar_lea.vmem %s0, 320
  %v71 = vld [vmem:[%s70] ss:$4 sm:$0xff]
  %vm72 = vcmask 261120
  %s73 = scalar_lea.vmem %s1, 68
  %74 = vst.msk [vmem:[%s73] ss:$8 sm:$0xf] %vm72, %v71
  %s75 = scalar_lea.vmem %s1, 37
  %76 = vst.msk [vmem:[%s75] ss:$8 sm:$0xf0] %vm72, %v71
  %s77 = scalar_lea.vmem %s0, 352
  %v78 = vld [vmem:[%s77] ss:$4 sm:$0xff]
  %vm79 = vcmask 261120
  %s80 = scalar_lea.vmem %s1, 70
  %81 = vst.msk [vmem:[%s80] ss:$8 sm:$0xf] %vm79, %v78
  %s82 = scalar_lea.vmem %s1, 39
  %83 = vst.msk [vmem:[%s82] ss:$8 sm:$0xf0] %vm79, %v78
  %s84 = scalar_lea.vmem %s0, 384
  %v85 = vld [vmem:[%s84] ss:$4 sm:$0xf]
  %vm86 = vcmask 261120
  %s87 = scalar_lea.vmem %s1, 96
  %88 = vst.msk [vmem:[%s87] ss:$8 sm:$0xf] %vm86, %v85
  %s89 = scalar_lea.vmem %s0, 3
  %s90 = smov 3
  %v91 = vld [vmem:[%s89] ss:$16 sm:%s90]
  %s92 = scalar_lea.vmem %s0, 3
  %s93 = smov 12
  %v94 = vld [vmem:[%s92] ss:$16 sm:%s93]
  %vm95 = vcmask 1043458
  %v96 = vsel %vm95, %v94, %v91
  %s97 = scalar_lea.vmem %s0, 3
  %s98 = smov 48
  %v99 = vld [vmem:[%s97] ss:$16 sm:%s98]
  %vm100 = vcmask 1045508
  %v101 = vsel %vm100, %v99, %v96
  %s102 = scalar_lea.vmem %s0, 3
  %s103 = smov 192
  %v104 = vld [vmem:[%s102] ss:$16 sm:%s103]
  %vm105 = vcmask 1047558
  %v106 = vsel %vm105, %v104, %v101
  %107 = vrot.lane.b32.xlu0 %v106, 96
  %v108 = vpop.permute.xlu0 %107
  %vm109 = vcmask 1048320
  %110 = vst.msk [vmem:[%s1] sm:$0xff] %vm109, %v108
  %s111 = scalar_lea.vmem %s0, 131
  %s112 = smov 3
  %v113 = vld [vmem:[%s111] ss:$16 sm:%s112]
  %s114 = scalar_lea.vmem %s0, 131
  %s115 = smov 12
  %v116 = vld [vmem:[%s114] ss:$16 sm:%s115]
  %vm117 = vcmask 1043458
  %v118 = vsel %vm117, %v116, %v113
  %s119 = scalar_lea.vmem %s0, 131
  %s120 = smov 48
  %v121 = vld [vmem:[%s119] ss:$16 sm:%s120]
  %vm122 = vcmask 1045508
  %v123 = vsel %vm122, %v121, %v118
  %s124 = scalar_lea.vmem %s0, 131
  %s125 = smov 192
  %v126 = vld [vmem:[%s124] ss:$16 sm:%s125]
  %vm127 = vcmask 1047558
  %v128 = vsel %vm127, %v126, %v123
  %129 = vrot.lane.b32.xlu0 %v128, 96
  %v130 = vpop.permute.xlu0 %129
  %vm131 = vcmask 1048320
  %s132 = scalar_lea.vmem %s1, 32
  %133 = vst.msk [vmem:[%s132] sm:$0xff] %vm131, %v130
  %s134 = scalar_lea.vmem %s0, 259
  %s135 = smov 3
  %v136 = vld [vmem:[%s134] ss:$16 sm:%s135]
  %s137 = scalar_lea.vmem %s0, 259
  %s138 = smov 12
  %v139 = vld [vmem:[%s137] ss:$16 sm:%s138]
  %vm140 = vcmask 1043458
  %v141 = vsel %vm140, %v139, %v136
  %s142 = scalar_lea.vmem %s0, 259
  %s143 = smov 48
  %v144 = vld [vmem:[%s142] ss:$16 sm:%s143]
  %vm145 = vcmask 1045508
  %v146 = vsel %vm145, %v144, %v141
  %s147 = scalar_lea.vmem %s0, 259
  %s148 = smov 192
  %v149 = vld [vmem:[%s147] ss:$16 sm:%s148]
  %vm150 = vcmask 1047558
  %v151 = vsel %vm150, %v149, %v146
  %152 = vrot.lane.b32.xlu0 %v151, 96
  %v153 = vpop.permute.xlu0 %152
  %vm154 = vcmask 1048320
  %s155 = scalar_lea.vmem %s1, 64
  %156 = vst.msk [vmem:[%s155] sm:$0xff] %vm154, %v153
  %s157 = scalar_lea.vmem %s0, 387
  %s158 = smov 3
  %v159 = vld [vmem:[%s157] ss:$-380 sm:%s158]
  %s160 = scalar_lea.vmem %s0, 4294967287
  %s161 = smov 12
  %v162 = vld [vmem:[%s160] ss:$16 sm:%s161]
  %vm163 = vcmask 1043458
  %v164 = vsel %vm163, %v162, %v159
  %s165 = scalar_lea.vmem %s0, 4294967287
  %s166 = smov 48
  %v167 = vld [vmem:[%s165] ss:$16 sm:%s166]
  %vm168 = vcmask 1045508
  %v169 = vsel %vm168, %v167, %v164
  %s170 = scalar_lea.vmem %s0, 4294967287
  %s171 = smov 192
  %v172 = vld [vmem:[%s170] ss:$16 sm:%s171]
  %vm173 = vcmask 1047558
  %v174 = vsel %vm173, %v172, %v169
  %175 = vrot.lane.b32.xlu0 %v174, 96
  %v176 = vpop.permute.xlu0 %175
  %vm177 = vcmask 1048320
  %s178 = scalar_lea.vmem %s1, 96
  %179 = vst.msk [vmem:[%s178] ss:$-88 sm:$0x3] %vm177, %v176
  %s180 = scalar_lea.vmem %s1, 7
  %181 = vst.msk [vmem:[%s180] sm:$0xfc] %vm177, %v176
  %s182 = scalar_lea.vmem %s0, 135
  %s183 = smov 3
  %v184 = vld [vmem:[%s182] ss:$16 sm:%s183]
  %s185 = scalar_lea.vmem %s0, 135
  %s186 = smov 12
  %v187 = vld [vmem:[%s185] ss:$16 sm:%s186]
  %vm188 = vcmask 1043458
  %v189 = vsel %vm188, %v187, %v184
  %s190 = scalar_lea.vmem %s0, 135
  %s191 = smov 48
  %v192 = vld [vmem:[%s190] ss:$16 sm:%s191]
  %vm193 = vcmask 1045508
  %v194 = vsel %vm193, %v192, %v189
  %s195 = scalar_lea.vmem %s0, 903
  %s196 = smov 192
  %v197 = vld [vmem:[%s195] ss:$-112 sm:%s196]
  %vm198 = vcmask 1047558
  %v199 = vsel %vm198, %v197, %v194
  %200 = vrot.lane.b32.xlu0 %v199, 96
  %v201 = vpop.permute.xlu0 %200
  %vm202 = vcmask 1048320
  %s203 = scalar_lea.vmem %s1, 40
  %204 = vst.msk [vmem:[%s203] sm:$0x7f] %vm202, %v201
  %s205 = scalar_lea.vmem %s1, 8
  %206 = vst.msk [vmem:[%s205] sm:$0x80] %vm202, %v201
  %s207 = scalar_lea.vmem %s0, 263
  %s208 = smov 3
  %v209 = vld [vmem:[%s207] ss:$16 sm:%s208]
  %s210 = scalar_lea.vmem %s0, 263
  %s211 = smov 12
  %v212 = vld [vmem:[%s210] ss:$16 sm:%s211]
  %vm213 = vcmask 1043458
  %v214 = vsel %vm213, %v212, %v209
  %s215 = scalar_lea.vmem %s0, 263
  %s216 = smov 48
  %v217 = vld [vmem:[%s215] ss:$16 sm:%s216]
  %vm218 = vcmask 1045508
  %v219 = vsel %vm218, %v217, %v214
  %s220 = scalar_lea.vmem %s0, 1031
  %s221 = smov 192
  %v222 = vld [vmem:[%s220] ss:$-112 sm:%s221]
  %vm223 = vcmask 1047558
  %v224 = vsel %vm223, %v222, %v219
  %225 = vrot.lane.b32.xlu0 %v224, 96
  %v226 = vpop.permute.xlu0 %225
  %vm227 = vcmask 1048320
  %s228 = scalar_lea.vmem %s1, 72
  %229 = vst.msk [vmem:[%s228] sm:$0x7f] %vm227, %v226
  %s230 = scalar_lea.vmem %s1, 40
  %231 = vst.msk [vmem:[%s230] sm:$0x80] %vm227, %v226
  %s232 = scalar_lea.vmem %s0, 391
  %s233 = smov 3
  %v234 = vld [vmem:[%s232] ss:$-16 sm:%s233]
  %s235 = scalar_lea.vmem %s0, 4294967275
  %s236 = smov 12
  %v237 = vld [vmem:[%s235] ss:$16 sm:%s236]
  %vm238 = vcmask 1043458
  %v239 = vsel %vm238, %v237, %v234
  %s240 = scalar_lea.vmem %s0, 4294967275
  %s241 = smov 48
  %v242 = vld [vmem:[%s240] ss:$16 sm:%s241]
  %vm243 = vcmask 1045508
  %v244 = vsel %vm243, %v242, %v239
  %s245 = scalar_lea.vmem %s0, 4294967275
  %s246 = smov 192
  %v247 = vld [vmem:[%s245] ss:$16 sm:%s246]
  %vm248 = vcmask 1047558
  %v249 = vsel %vm248, %v247, %v244
  %250 = vrot.lane.b32.xlu0 %v249, 96
  %v251 = vpop.permute.xlu0 %250
  %vm252 = vcmask 1048320
  %s253 = scalar_lea.vmem %s1, 104
  %254 = vst.msk [vmem:[%s253] ss:$-25 sm:$0x3] %vm252, %v251
  %s255 = scalar_lea.vmem %s1, 14
  %256 = vst.msk [vmem:[%s255] sm:$0xfc] %vm252, %v251
  %s257 = scalar_lea.vmem %s0, 139
  %s258 = smov 3
  %v259 = vld [vmem:[%s257] ss:$16 sm:%s258]
  %s260 = scalar_lea.vmem %s0, 139
  %s261 = smov 12
  %v262 = vld [vmem:[%s260] ss:$16 sm:%s261]
  %vm263 = vcmask 1043458
  %v264 = vsel %vm263, %v262, %v259
  %s265 = scalar_lea.vmem %s0, 139
  %s266 = smov 48
  %v267 = vld [vmem:[%s265] ss:$16 sm:%s266]
  %vm268 = vcmask 1045508
  %v269 = vsel %vm268, %v267, %v264
  %s270 = scalar_lea.vmem %s0, 11
  %s271 = smov 192
  %v272 = vld [vmem:[%s270] ss:$16 sm:%s271]
  %vm273 = vcmask 1047558
  %v274 = vsel %vm273, %v272, %v269
  %275 = vrot.lane.b32.xlu0 %v274, 96
  %v276 = vpop.permute.xlu0 %275
  %vm277 = vcmask 1048320
  %s278 = scalar_lea.vmem %s1, 48
  %279 = vst.msk [vmem:[%s278] sm:$0x3f] %vm277, %v276
  %s280 = scalar_lea.vmem %s1, 16
  %281 = vst.msk [vmem:[%s280] sm:$0xc0] %vm277, %v276
  %s282 = scalar_lea.vmem %s0, 267
  %s283 = smov 3
  %v284 = vld [vmem:[%s282] ss:$16 sm:%s283]
  %s285 = scalar_lea.vmem %s0, 267
  %s286 = smov 12
  %v287 = vld [vmem:[%s285] ss:$16 sm:%s286]
  %vm288 = vcmask 1043458
  %v289 = vsel %vm288, %v287, %v284
  %s290 = scalar_lea.vmem %s0, 267
  %s291 = smov 48
  %v292 = vld [vmem:[%s290] ss:$16 sm:%s291]
  %vm293 = vcmask 1045508
  %v294 = vsel %vm293, %v292, %v289
  %s295 = scalar_lea.vmem %s0, 139
  %s296 = smov 192
  %v297 = vld [vmem:[%s295] ss:$16 sm:%s296]
  %vm298 = vcmask 1047558
  %v299 = vsel %vm298, %v297, %v294
  %300 = vrot.lane.b32.xlu0 %v299, 96
  %v301 = vpop.permute.xlu0 %300
  %vm302 = vcmask 1048320
  %s303 = scalar_lea.vmem %s1, 80
  %304 = vst.msk [vmem:[%s303] sm:$0x3f] %vm302, %v301
  %s305 = scalar_lea.vmem %s1, 48
  %306 = vst.msk [vmem:[%s305] sm:$0xc0] %vm302, %v301
  %s307 = scalar_lea.vmem %s0, 395
  %v308 = vld [vmem:[%s307] sm:$0x1]
  %s309 = scalar_lea.vmem %s0, 347
  %s310 = smov 6
  %v311 = vld [vmem:[%s309] ss:$16 sm:%s310]
  %vm312 = vcmask 1042433
  %v313 = vsel %vm312, %v311, %v308
  %s314 = scalar_lea.vmem %s0, 4294967263
  %s315 = smov 24
  %v316 = vld [vmem:[%s314] ss:$16 sm:%s315]
  %vm317 = vcmask 1044483
  %v318 = vsel %vm317, %v316, %v313
  %s319 = scalar_lea.vmem %s0, 4294967263
  %s320 = smov 96
  %v321 = vld [vmem:[%s319] ss:$16 sm:%s320]
  %vm322 = vcmask 1046533
  %v323 = vsel %vm322, %v321, %v318
  %s324 = scalar_lea.vmem %s0, 72
  %v325 = vld [vmem:[%s324] sm:$0x80]
  %vm326 = vcmask 1047559
  %v327 = vsel %vm326, %v325, %v323
  %328 = vrot.lane.b32.xlu0 %v327, 96
  %v329 = vpop.permute.xlu0 %328
  %vm330 = vcmask 1048320
  %s331 = scalar_lea.vmem %s1, 112
  %332 = vst.msk [vmem:[%s331] ss:$-26 sm:$0x3] %vm330, %v329
  %s333 = scalar_lea.vmem %s1, 213
  %334 = vst.msk [vmem:[%s333] ss:$-63 sm:$0xc] %vm330, %v329
  %s335 = scalar_lea.vmem %s1, 21
  %336 = vst.msk [vmem:[%s335] sm:$0xf0] %vm330, %v329
  %s337 = scalar_lea.vmem %s0, 143
  %s338 = smov 3
  %v339 = vld [vmem:[%s337] ss:$16 sm:%s338]
  %s340 = scalar_lea.vmem %s0, 143
  %s341 = smov 12
  %v342 = vld [vmem:[%s340] ss:$16 sm:%s341]
  %vm343 = vcmask 1043458
  %v344 = vsel %vm343, %v342, %v339
  %s345 = scalar_lea.vmem %s0, 655
  %s346 = smov 48
  %v347 = vld [vmem:[%s345] ss:$-112 sm:%s346]
  %vm348 = vcmask 1045508
  %v349 = vsel %vm348, %v347, %v344
  %s350 = scalar_lea.vmem %s0, 15
  %s351 = smov 192
  %v352 = vld [vmem:[%s350] ss:$16 sm:%s351]
  %vm353 = vcmask 1047558
  %v354 = vsel %vm353, %v352, %v349
  %355 = vrot.lane.b32.xlu0 %v354, 96
  %v356 = vpop.permute.xlu0 %355
  %vm357 = vcmask 1048320
  %s358 = scalar_lea.vmem %s1, 56
  %359 = vst.msk [vmem:[%s358] sm:$0x1f] %vm357, %v356
  %s360 = scalar_lea.vmem %s1, 24
  %361 = vst.msk [vmem:[%s360] sm:$0xe0] %vm357, %v356
  %s362 = scalar_lea.vmem %s0, 271
  %s363 = smov 3
  %v364 = vld [vmem:[%s362] ss:$16 sm:%s363]
  %s365 = scalar_lea.vmem %s0, 271
  %s366 = smov 12
  %v367 = vld [vmem:[%s365] ss:$16 sm:%s366]
  %vm368 = vcmask 1043458
  %v369 = vsel %vm368, %v367, %v364
  %s370 = scalar_lea.vmem %s0, 783
  %s371 = smov 48
  %v372 = vld [vmem:[%s370] ss:$-112 sm:%s371]
  %vm373 = vcmask 1045508
  %v374 = vsel %vm373, %v372, %v369
  %s375 = scalar_lea.vmem %s0, 143
  %s376 = smov 192
  %v377 = vld [vmem:[%s375] ss:$16 sm:%s376]
  %vm378 = vcmask 1047558
  %v379 = vsel %vm378, %v377, %v374
  %380 = vrot.lane.b32.xlu0 %v379, 96
  %v381 = vpop.permute.xlu0 %380
  %vm382 = vcmask 1048320
  %s383 = scalar_lea.vmem %s1, 88
  %384 = vst.msk [vmem:[%s383] sm:$0x1f] %vm382, %v381
  %s385 = scalar_lea.vmem %s1, 56
  %386 = vst.msk [vmem:[%s385] sm:$0xe0] %vm382, %v381
  %s387 = scalar_lea.vmem %s0, 399
  %s388 = smov 3
  %v389 = vld [vmem:[%s387] ss:$-48 sm:%s388]
  %s390 = scalar_lea.vmem %s0, 335
  %s391 = smov 12
  %v392 = vld [vmem:[%s390] ss:$16 sm:%s391]
  %vm393 = vcmask 1043458
  %v394 = vsel %vm393, %v392, %v389
  %395 = vrot.lane.b32.xlu0 %v394, 96
  %v396 = vpop.permute.xlu0 %395
  %vm397 = vcmask 1048320
  %s398 = scalar_lea.vmem %s1, 120
  %399 = vst.msk [vmem:[%s398] ss:$-27 sm:$0x3] %vm397, %v396
  %s400 = scalar_lea.vmem %s1, 92
  %401 = vst.msk [vmem:[%s400] sm:$0xc] %vm397, %v396
  %s402 = scalar_lea.vmem %s0, 2
  %s403 = smov 3
  %v404 = vld [vmem:[%s402] ss:$16 sm:%s403]
  %s405 = scalar_lea.vmem %s0, 2
  %s406 = smov 12
  %v407 = vld [vmem:[%s405] ss:$16 sm:%s406]
  %vm408 = vcmask 1043458
  %v409 = vsel %vm408, %v407, %v404
  %s410 = scalar_lea.vmem %s0, 2
  %s411 = smov 48
  %v412 = vld [vmem:[%s410] ss:$16 sm:%s411]
  %vm413 = vcmask 1045508
  %v414 = vsel %vm413, %v412, %v409
  %s415 = scalar_lea.vmem %s0, 2
  %s416 = smov 192
  %v417 = vld [vmem:[%s415] ss:$16 sm:%s416]
  %vm418 = vcmask 1047558
  %v419 = vsel %vm418, %v417, %v414
  %420 = vrot.lane.b32.xlu0 %v419, 64
  %v421 = vpop.permute.xlu0 %420
  %vm422 = vcmask 785920
  %423 = vst.msk [vmem:[%s1] sm:$0xff] %vm422, %v421
  %s424 = scalar_lea.vmem %s0, 130
  %s425 = smov 3
  %v426 = vld [vmem:[%s424] ss:$16 sm:%s425]
  %s427 = scalar_lea.vmem %s0, 130
  %s428 = smov 12
  %v429 = vld [vmem:[%s427] ss:$16 sm:%s428]
  %vm430 = vcmask 1043458
  %v431 = vsel %vm430, %v429, %v426
  %s432 = scalar_lea.vmem %s0, 130
  %s433 = smov 48
  %v434 = vld [vmem:[%s432] ss:$16 sm:%s433]
  %vm435 = vcmask 1045508
  %v436 = vsel %vm435, %v434, %v431
  %s437 = scalar_lea.vmem %s0, 130
  %s438 = smov 192
  %v439 = vld [vmem:[%s437] ss:$16 sm:%s438]
  %vm440 = vcmask 1047558
  %v441 = vsel %vm440, %v439, %v436
  %442 = vrot.lane.b32.xlu0 %v441, 64
  %v443 = vpop.permute.xlu0 %442
  %vm444 = vcmask 785920
  %s445 = scalar_lea.vmem %s1, 32
  %446 = vst.msk [vmem:[%s445] sm:$0xff] %vm444, %v443
  %s447 = scalar_lea.vmem %s0, 258
  %s448 = smov 3
  %v449 = vld [vmem:[%s447] ss:$16 sm:%s448]
  %s450 = scalar_lea.vmem %s0, 258
  %s451 = smov 12
  %v452 = vld [vmem:[%s450] ss:$16 sm:%s451]
  %vm453 = vcmask 1043458
  %v454 = vsel %vm453, %v452, %v449
  %s455 = scalar_lea.vmem %s0, 258
  %s456 = smov 48
  %v457 = vld [vmem:[%s455] ss:$16 sm:%s456]
  %vm458 = vcmask 1045508
  %v459 = vsel %vm458, %v457, %v454
  %s460 = scalar_lea.vmem %s0, 258
  %s461 = smov 192
  %v462 = vld [vmem:[%s460] ss:$16 sm:%s461]
  %vm463 = vcmask 1047558
  %v464 = vsel %vm463, %v462, %v459
  %465 = vrot.lane.b32.xlu0 %v464, 64
  %v466 = vpop.permute.xlu0 %465
  %vm467 = vcmask 785920
  %s468 = scalar_lea.vmem %s1, 64
  %469 = vst.msk [vmem:[%s468] sm:$0xff] %vm467, %v466
  %s470 = scalar_lea.vmem %s0, 386
  %s471 = smov 3
  %v472 = vld [vmem:[%s470] ss:$-380 sm:%s471]
  %s473 = scalar_lea.vmem %s0, 4294967286
  %s474 = smov 12
  %v475 = vld [vmem:[%s473] ss:$16 sm:%s474]
  %vm476 = vcmask 1043458
  %v477 = vsel %vm476, %v475, %v472
  %s478 = scalar_lea.vmem %s0, 4294967286
  %s479 = smov 48
  %v480 = vld [vmem:[%s478] ss:$16 sm:%s479]
  %vm481 = vcmask 1045508
  %v482 = vsel %vm481, %v480, %v477
  %s483 = scalar_lea.vmem %s0, 4294967286
  %s484 = smov 192
  %v485 = vld [vmem:[%s483] ss:$16 sm:%s484]
  %vm486 = vcmask 1047558
  %v487 = vsel %vm486, %v485, %v482
  %488 = vrot.lane.b32.xlu0 %v487, 64
  %v489 = vpop.permute.xlu0 %488
  %vm490 = vcmask 785920
  %s491 = scalar_lea.vmem %s1, 96
  %492 = vst.msk [vmem:[%s491] ss:$-88 sm:$0x3] %vm490, %v489
  %s493 = scalar_lea.vmem %s1, 7
  %494 = vst.msk [vmem:[%s493] sm:$0xfc] %vm490, %v489
  %s495 = scalar_lea.vmem %s0, 134
  %s496 = smov 3
  %v497 = vld [vmem:[%s495] ss:$16 sm:%s496]
  %s498 = scalar_lea.vmem %s0, 134
  %s499 = smov 12
  %v500 = vld [vmem:[%s498] ss:$16 sm:%s499]
  %vm501 = vcmask 1043458
  %v502 = vsel %vm501, %v500, %v497
  %s503 = scalar_lea.vmem %s0, 134
  %s504 = smov 48
  %v505 = vld [vmem:[%s503] ss:$16 sm:%s504]
  %vm506 = vcmask 1045508
  %v507 = vsel %vm506, %v505, %v502
  %s508 = scalar_lea.vmem %s0, 902
  %s509 = smov 192
  %v510 = vld [vmem:[%s508] ss:$-112 sm:%s509]
  %vm511 = vcmask 1047558
  %v512 = vsel %vm511, %v510, %v507
  %513 = vrot.lane.b32.xlu0 %v512, 64
  %v514 = vpop.permute.xlu0 %513
  %vm515 = vcmask 785920
  %s516 = scalar_lea.vmem %s1, 40
  %517 = vst.msk [vmem:[%s516] sm:$0x7f] %vm515, %v514
  %s518 = scalar_lea.vmem %s1, 8
  %519 = vst.msk [vmem:[%s518] sm:$0x80] %vm515, %v514
  %s520 = scalar_lea.vmem %s0, 262
  %s521 = smov 3
  %v522 = vld [vmem:[%s520] ss:$16 sm:%s521]
  %s523 = scalar_lea.vmem %s0, 262
  %s524 = smov 12
  %v525 = vld [vmem:[%s523] ss:$16 sm:%s524]
  %vm526 = vcmask 1043458
  %v527 = vsel %vm526, %v525, %v522
  %s528 = scalar_lea.vmem %s0, 262
  %s529 = smov 48
  %v530 = vld [vmem:[%s528] ss:$16 sm:%s529]
  %vm531 = vcmask 1045508
  %v532 = vsel %vm531, %v530, %v527
  %s533 = scalar_lea.vmem %s0, 1030
  %s534 = smov 192
  %v535 = vld [vmem:[%s533] ss:$-112 sm:%s534]
  %vm536 = vcmask 1047558
  %v537 = vsel %vm536, %v535, %v532
  %538 = vrot.lane.b32.xlu0 %v537, 64
  %v539 = vpop.permute.xlu0 %538
  %vm540 = vcmask 785920
  %s541 = scalar_lea.vmem %s1, 72
  %542 = vst.msk [vmem:[%s541] sm:$0x7f] %vm540, %v539
  %s543 = scalar_lea.vmem %s1, 40
  %544 = vst.msk [vmem:[%s543] sm:$0x80] %vm540, %v539
  %s545 = scalar_lea.vmem %s0, 390
  %s546 = smov 3
  %v547 = vld [vmem:[%s545] ss:$-16 sm:%s546]
  %s548 = scalar_lea.vmem %s0, 4294967274
  %s549 = smov 12
  %v550 = vld [vmem:[%s548] ss:$16 sm:%s549]
  %vm551 = vcmask 1043458
  %v552 = vsel %vm551, %v550, %v547
  %s553 = scalar_lea.vmem %s0, 4294967274
  %s554 = smov 48
  %v555 = vld [vmem:[%s553] ss:$16 sm:%s554]
  %vm556 = vcmask 1045508
  %v557 = vsel %vm556, %v555, %v552
  %s558 = scalar_lea.vmem %s0, 4294967274
  %s559 = smov 192
  %v560 = vld [vmem:[%s558] ss:$16 sm:%s559]
  %vm561 = vcmask 1047558
  %v562 = vsel %vm561, %v560, %v557
  %563 = vrot.lane.b32.xlu0 %v562, 64
  %v564 = vpop.permute.xlu0 %563
  %vm565 = vcmask 785920
  %s566 = scalar_lea.vmem %s1, 104
  %567 = vst.msk [vmem:[%s566] ss:$-25 sm:$0x3] %vm565, %v564
  %s568 = scalar_lea.vmem %s1, 14
  %569 = vst.msk [vmem:[%s568] sm:$0xfc] %vm565, %v564
  %s570 = scalar_lea.vmem %s0, 138
  %s571 = smov 3
  %v572 = vld [vmem:[%s570] ss:$16 sm:%s571]
  %s573 = scalar_lea.vmem %s0, 138
  %s574 = smov 12
  %v575 = vld [vmem:[%s573] ss:$16 sm:%s574]
  %vm576 = vcmask 1043458
  %v577 = vsel %vm576, %v575, %v572
  %s578 = scalar_lea.vmem %s0, 138
  %s579 = smov 48
  %v580 = vld [vmem:[%s578] ss:$16 sm:%s579]
  %vm581 = vcmask 1045508
  %v582 = vsel %vm581, %v580, %v577
  %s583 = scalar_lea.vmem %s0, 10
  %s584 = smov 192
  %v585 = vld [vmem:[%s583] ss:$16 sm:%s584]
  %vm586 = vcmask 1047558
  %v587 = vsel %vm586, %v585, %v582
  %588 = vrot.lane.b32.xlu0 %v587, 64
  %v589 = vpop.permute.xlu0 %588
  %vm590 = vcmask 785920
  %s591 = scalar_lea.vmem %s1, 48
  %592 = vst.msk [vmem:[%s591] sm:$0x3f] %vm590, %v589
  %s593 = scalar_lea.vmem %s1, 16
  %594 = vst.msk [vmem:[%s593] sm:$0xc0] %vm590, %v589
  %s595 = scalar_lea.vmem %s0, 266
  %s596 = smov 3
  %v597 = vld [vmem:[%s595] ss:$16 sm:%s596]
  %s598 = scalar_lea.vmem %s0, 266
  %s599 = smov 12
  %v600 = vld [vmem:[%s598] ss:$16 sm:%s599]
  %vm601 = vcmask 1043458
  %v602 = vsel %vm601, %v600, %v597
  %s603 = scalar_lea.vmem %s0, 266
  %s604 = smov 48
  %v605 = vld [vmem:[%s603] ss:$16 sm:%s604]
  %vm606 = vcmask 1045508
  %v607 = vsel %vm606, %v605, %v602
  %s608 = scalar_lea.vmem %s0, 138
  %s609 = smov 192
  %v610 = vld [vmem:[%s608] ss:$16 sm:%s609]
  %vm611 = vcmask 1047558
  %v612 = vsel %vm611, %v610, %v607
  %613 = vrot.lane.b32.xlu0 %v612, 64
  %v614 = vpop.permute.xlu0 %613
  %vm615 = vcmask 785920
  %s616 = scalar_lea.vmem %s1, 80
  %617 = vst.msk [vmem:[%s616] sm:$0x3f] %vm615, %v614
  %s618 = scalar_lea.vmem %s1, 48
  %619 = vst.msk [vmem:[%s618] sm:$0xc0] %vm615, %v614
  %s620 = scalar_lea.vmem %s0, 394
  %v621 = vld [vmem:[%s620] sm:$0x1]
  %s622 = scalar_lea.vmem %s0, 346
  %s623 = smov 6
  %v624 = vld [vmem:[%s622] ss:$16 sm:%s623]
  %vm625 = vcmask 1042433
  %v626 = vsel %vm625, %v624, %v621
  %s627 = scalar_lea.vmem %s0, 4294967262
  %s628 = smov 24
  %v629 = vld [vmem:[%s627] ss:$16 sm:%s628]
  %vm630 = vcmask 1044483
  %v631 = vsel %vm630, %v629, %v626
  %s632 = scalar_lea.vmem %s0, 4294967262
  %s633 = smov 96
  %v634 = vld [vmem:[%s632] ss:$16 sm:%s633]
  %vm635 = vcmask 1046533
  %v636 = vsel %vm635, %v634, %v631
  %s637 = scalar_lea.vmem %s0, 71
  %v638 = vld [vmem:[%s637] sm:$0x80]
  %vm639 = vcmask 1047559
  %v640 = vsel %vm639, %v638, %v636
  %641 = vrot.lane.b32.xlu0 %v640, 64
  %v642 = vpop.permute.xlu0 %641
  %vm643 = vcmask 785920
  %s644 = scalar_lea.vmem %s1, 112
  %645 = vst.msk [vmem:[%s644] ss:$-26 sm:$0x3] %vm643, %v642
  %s646 = scalar_lea.vmem %s1, 213
  %647 = vst.msk [vmem:[%s646] ss:$-63 sm:$0xc] %vm643, %v642
  %s648 = scalar_lea.vmem %s1, 21
  %649 = vst.msk [vmem:[%s648] sm:$0xf0] %vm643, %v642
  %s650 = scalar_lea.vmem %s0, 142
  %s651 = smov 3
  %v652 = vld [vmem:[%s650] ss:$16 sm:%s651]
  %s653 = scalar_lea.vmem %s0, 142
  %s654 = smov 12
  %v655 = vld [vmem:[%s653] ss:$16 sm:%s654]
  %vm656 = vcmask 1043458
  %v657 = vsel %vm656, %v655, %v652
  %s658 = scalar_lea.vmem %s0, 654
  %s659 = smov 48
  %v660 = vld [vmem:[%s658] ss:$-112 sm:%s659]
  %vm661 = vcmask 1045508
  %v662 = vsel %vm661, %v660, %v657
  %s663 = scalar_lea.vmem %s0, 14
  %s664 = smov 192
  %v665 = vld [vmem:[%s663] ss:$16 sm:%s664]
  %vm666 = vcmask 1047558
  %v667 = vsel %vm666, %v665, %v662
  %668 = vrot.lane.b32.xlu0 %v667, 64
  %v669 = vpop.permute.xlu0 %668
  %vm670 = vcmask 785920
  %s671 = scalar_lea.vmem %s1, 56
  %672 = vst.msk [vmem:[%s671] sm:$0x1f] %vm670, %v669
  %s673 = scalar_lea.vmem %s1, 24
  %674 = vst.msk [vmem:[%s673] sm:$0xe0] %vm670, %v669
  %s675 = scalar_lea.vmem %s0, 270
  %s676 = smov 3
  %v677 = vld [vmem:[%s675] ss:$16 sm:%s676]
  %s678 = scalar_lea.vmem %s0, 270
  %s679 = smov 12
  %v680 = vld [vmem:[%s678] ss:$16 sm:%s679]
  %vm681 = vcmask 1043458
  %v682 = vsel %vm681, %v680, %v677
  %s683 = scalar_lea.vmem %s0, 782
  %s684 = smov 48
  %v685 = vld [vmem:[%s683] ss:$-112 sm:%s684]
  %vm686 = vcmask 1045508
  %v687 = vsel %vm686, %v685, %v682
  %s688 = scalar_lea.vmem %s0, 142
  %s689 = smov 192
  %v690 = vld [vmem:[%s688] ss:$16 sm:%s689]
  %vm691 = vcmask 1047558
  %v692 = vsel %vm691, %v690, %v687
  %693 = vrot.lane.b32.xlu0 %v692, 64
  %v694 = vpop.permute.xlu0 %693
  %vm695 = vcmask 785920
  %s696 = scalar_lea.vmem %s1, 88
  %697 = vst.msk [vmem:[%s696] sm:$0x1f] %vm695, %v694
  %s698 = scalar_lea.vmem %s1, 56
  %699 = vst.msk [vmem:[%s698] sm:$0xe0] %vm695, %v694
  %s700 = scalar_lea.vmem %s0, 398
  %s701 = smov 3
  %v702 = vld [vmem:[%s700] ss:$-48 sm:%s701]
  %s703 = scalar_lea.vmem %s0, 334
  %s704 = smov 12
  %v705 = vld [vmem:[%s703] ss:$16 sm:%s704]
  %vm706 = vcmask 1043458
  %v707 = vsel %vm706, %v705, %v702
  %708 = vrot.lane.b32.xlu0 %v707, 64
  %v709 = vpop.permute.xlu0 %708
  %vm710 = vcmask 785920
  %s711 = scalar_lea.vmem %s1, 120
  %712 = vst.msk [vmem:[%s711] ss:$-27 sm:$0x3] %vm710, %v709
  %s713 = scalar_lea.vmem %s1, 92
  %714 = vst.msk [vmem:[%s713] sm:$0xc] %vm710, %v709
  %s715 = scalar_lea.vmem %s0, 1
  %s716 = smov 3
  %v717 = vld [vmem:[%s715] ss:$16 sm:%s716]
  %s718 = scalar_lea.vmem %s0, 1
  %s719 = smov 12
  %v720 = vld [vmem:[%s718] ss:$16 sm:%s719]
  %vm721 = vcmask 1043458
  %v722 = vsel %vm721, %v720, %v717
  %s723 = scalar_lea.vmem %s0, 1
  %s724 = smov 48
  %v725 = vld [vmem:[%s723] ss:$16 sm:%s724]
  %vm726 = vcmask 1045508
  %v727 = vsel %vm726, %v725, %v722
  %s728 = scalar_lea.vmem %s0, 1
  %s729 = smov 192
  %v730 = vld [vmem:[%s728] ss:$16 sm:%s729]
  %vm731 = vcmask 1047558
  %v732 = vsel %vm731, %v730, %v727
  %733 = vrot.lane.b32.xlu0 %v732, 32
  %v734 = vpop.permute.xlu0 %733
  %vm735 = vcmask 523520
  %736 = vst.msk [vmem:[%s1] sm:$0xff] %vm735, %v734
  %s737 = scalar_lea.vmem %s0, 129
  %s738 = smov 3
  %v739 = vld [vmem:[%s737] ss:$16 sm:%s738]
  %s740 = scalar_lea.vmem %s0, 129
  %s741 = smov 12
  %v742 = vld [vmem:[%s740] ss:$16 sm:%s741]
  %vm743 = vcmask 1043458
  %v744 = vsel %vm743, %v742, %v739
  %s745 = scalar_lea.vmem %s0, 129
  %s746 = smov 48
  %v747 = vld [vmem:[%s745] ss:$16 sm:%s746]
  %vm748 = vcmask 1045508
  %v749 = vsel %vm748, %v747, %v744
  %s750 = scalar_lea.vmem %s0, 129
  %s751 = smov 192
  %v752 = vld [vmem:[%s750] ss:$16 sm:%s751]
  %vm753 = vcmask 1047558
  %v754 = vsel %vm753, %v752, %v749
  %755 = vrot.lane.b32.xlu0 %v754, 32
  %v756 = vpop.permute.xlu0 %755
  %vm757 = vcmask 523520
  %s758 = scalar_lea.vmem %s1, 32
  %759 = vst.msk [vmem:[%s758] sm:$0xff] %vm757, %v756
  %s760 = scalar_lea.vmem %s0, 257
  %s761 = smov 3
  %v762 = vld [vmem:[%s760] ss:$16 sm:%s761]
  %s763 = scalar_lea.vmem %s0, 257
  %s764 = smov 12
  %v765 = vld [vmem:[%s763] ss:$16 sm:%s764]
  %vm766 = vcmask 1043458
  %v767 = vsel %vm766, %v765, %v762
  %s768 = scalar_lea.vmem %s0, 257
  %s769 = smov 48
  %v770 = vld [vmem:[%s768] ss:$16 sm:%s769]
  %vm771 = vcmask 1045508
  %v772 = vsel %vm771, %v770, %v767
  %s773 = scalar_lea.vmem %s0, 257
  %s774 = smov 192
  %v775 = vld [vmem:[%s773] ss:$16 sm:%s774]
  %vm776 = vcmask 1047558
  %v777 = vsel %vm776, %v775, %v772
  %778 = vrot.lane.b32.xlu0 %v777, 32
  %v779 = vpop.permute.xlu0 %778
  %vm780 = vcmask 523520
  %s781 = scalar_lea.vmem %s1, 64
  %782 = vst.msk [vmem:[%s781] sm:$0xff] %vm780, %v779
  %s783 = scalar_lea.vmem %s0, 385
  %s784 = smov 3
  %v785 = vld [vmem:[%s783] ss:$-380 sm:%s784]
  %s786 = scalar_lea.vmem %s0, 4294967285
  %s787 = smov 12
  %v788 = vld [vmem:[%s786] ss:$16 sm:%s787]
  %vm789 = vcmask 1043458
  %v790 = vsel %vm789, %v788, %v785
  %s791 = scalar_lea.vmem %s0, 4294967285
  %s792 = smov 48
  %v793 = vld [vmem:[%s791] ss:$16 sm:%s792]
  %vm794 = vcmask 1045508
  %v795 = vsel %vm794, %v793, %v790
  %s796 = scalar_lea.vmem %s0, 4294967285
  %s797 = smov 192
  %v798 = vld [vmem:[%s796] ss:$16 sm:%s797]
  %vm799 = vcmask 1047558
  %v800 = vsel %vm799, %v798, %v795
  %801 = vrot.lane.b32.xlu0 %v800, 32
  %v802 = vpop.permute.xlu0 %801
  %vm803 = vcmask 523520
  %s804 = scalar_lea.vmem %s1, 96
  %805 = vst.msk [vmem:[%s804] ss:$-88 sm:$0x3] %vm803, %v802
  %s806 = scalar_lea.vmem %s1, 7
  %807 = vst.msk [vmem:[%s806] sm:$0xfc] %vm803, %v802
  %s808 = scalar_lea.vmem %s0, 133
  %s809 = smov 3
  %v810 = vld [vmem:[%s808] ss:$16 sm:%s809]
  %s811 = scalar_lea.vmem %s0, 133
  %s812 = smov 12
  %v813 = vld [vmem:[%s811] ss:$16 sm:%s812]
  %vm814 = vcmask 1043458
  %v815 = vsel %vm814, %v813, %v810
  %s816 = scalar_lea.vmem %s0, 133
  %s817 = smov 48
  %v818 = vld [vmem:[%s816] ss:$16 sm:%s817]
  %vm819 = vcmask 1045508
  %v820 = vsel %vm819, %v818, %v815
  %s821 = scalar_lea.vmem %s0, 901
  %s822 = smov 192
  %v823 = vld [vmem:[%s821] ss:$-112 sm:%s822]
  %vm824 = vcmask 1047558
  %v825 = vsel %vm824, %v823, %v820
  %826 = vrot.lane.b32.xlu0 %v825, 32
  %v827 = vpop.permute.xlu0 %826
  %vm828 = vcmask 523520
  %s829 = scalar_lea.vmem %s1, 40
  %830 = vst.msk [vmem:[%s829] sm:$0x7f] %vm828, %v827
  %s831 = scalar_lea.vmem %s1, 8
  %832 = vst.msk [vmem:[%s831] sm:$0x80] %vm828, %v827
  %s833 = scalar_lea.vmem %s0, 261
  %s834 = smov 3
  %v835 = vld [vmem:[%s833] ss:$16 sm:%s834]
  %s836 = scalar_lea.vmem %s0, 261
  %s837 = smov 12
  %v838 = vld [vmem:[%s836] ss:$16 sm:%s837]
  %vm839 = vcmask 1043458
  %v840 = vsel %vm839, %v838, %v835
  %s841 = scalar_lea.vmem %s0, 261
  %s842 = smov 48
  %v843 = vld [vmem:[%s841] ss:$16 sm:%s842]
  %vm844 = vcmask 1045508
  %v845 = vsel %vm844, %v843, %v840
  %s846 = scalar_lea.vmem %s0, 1029
  %s847 = smov 192
  %v848 = vld [vmem:[%s846] ss:$-112 sm:%s847]
  %vm849 = vcmask 1047558
  %v850 = vsel %vm849, %v848, %v845
  %851 = vrot.lane.b32.xlu0 %v850, 32
  %v852 = vpop.permute.xlu0 %851
  %vm853 = vcmask 523520
  %s854 = scalar_lea.vmem %s1, 72
  %855 = vst.msk [vmem:[%s854] sm:$0x7f] %vm853, %v852
  %s856 = scalar_lea.vmem %s1, 40
  %857 = vst.msk [vmem:[%s856] sm:$0x80] %vm853, %v852
  %s858 = scalar_lea.vmem %s0, 389
  %s859 = smov 3
  %v860 = vld [vmem:[%s858] ss:$-16 sm:%s859]
  %s861 = scalar_lea.vmem %s0, 4294967273
  %s862 = smov 12
  %v863 = vld [vmem:[%s861] ss:$16 sm:%s862]
  %vm864 = vcmask 1043458
  %v865 = vsel %vm864, %v863, %v860
  %s866 = scalar_lea.vmem %s0, 4294967273
  %s867 = smov 48
  %v868 = vld [vmem:[%s866] ss:$16 sm:%s867]
  %vm869 = vcmask 1045508
  %v870 = vsel %vm869, %v868, %v865
  %s871 = scalar_lea.vmem %s0, 4294967273
  %s872 = smov 192
  %v873 = vld [vmem:[%s871] ss:$16 sm:%s872]
  %vm874 = vcmask 1047558
  %v875 = vsel %vm874, %v873, %v870
  %876 = vrot.lane.b32.xlu0 %v875, 32
  %v877 = vpop.permute.xlu0 %876
  %vm878 = vcmask 523520
  %s879 = scalar_lea.vmem %s1, 104
  %880 = vst.msk [vmem:[%s879] ss:$-25 sm:$0x3] %vm878, %v877
  %s881 = scalar_lea.vmem %s1, 14
  %882 = vst.msk [vmem:[%s881] sm:$0xfc] %vm878, %v877
  %s883 = scalar_lea.vmem %s0, 137
  %s884 = smov 3
  %v885 = vld [vmem:[%s883] ss:$16 sm:%s884]
  %s886 = scalar_lea.vmem %s0, 137
  %s887 = smov 12
  %v888 = vld [vmem:[%s886] ss:$16 sm:%s887]
  %vm889 = vcmask 1043458
  %v890 = vsel %vm889, %v888, %v885
  %s891 = scalar_lea.vmem %s0, 137
  %s892 = smov 48
  %v893 = vld [vmem:[%s891] ss:$16 sm:%s892]
  %vm894 = vcmask 1045508
  %v895 = vsel %vm894, %v893, %v890
  %s896 = scalar_lea.vmem %s0, 9
  %s897 = smov 192
  %v898 = vld [vmem:[%s896] ss:$16 sm:%s897]
  %vm899 = vcmask 1047558
  %v900 = vsel %vm899, %v898, %v895
  %901 = vrot.lane.b32.xlu0 %v900, 32
  %v902 = vpop.permute.xlu0 %901
  %vm903 = vcmask 523520
  %s904 = scalar_lea.vmem %s1, 48
  %905 = vst.msk [vmem:[%s904] sm:$0x3f] %vm903, %v902
  %s906 = scalar_lea.vmem %s1, 16
  %907 = vst.msk [vmem:[%s906] sm:$0xc0] %vm903, %v902
  %s908 = scalar_lea.vmem %s0, 265
  %s909 = smov 3
  %v910 = vld [vmem:[%s908] ss:$16 sm:%s909]
  %s911 = scalar_lea.vmem %s0, 265
  %s912 = smov 12
  %v913 = vld [vmem:[%s911] ss:$16 sm:%s912]
  %vm914 = vcmask 1043458
  %v915 = vsel %vm914, %v913, %v910
  %s916 = scalar_lea.vmem %s0, 265
  %s917 = smov 48
  %v918 = vld [vmem:[%s916] ss:$16 sm:%s917]
  %vm919 = vcmask 1045508
  %v920 = vsel %vm919, %v918, %v915
  %s921 = scalar_lea.vmem %s0, 137
  %s922 = smov 192
  %v923 = vld [vmem:[%s921] ss:$16 sm:%s922]
  %vm924 = vcmask 1047558
  %v925 = vsel %vm924, %v923, %v920
  %926 = vrot.lane.b32.xlu0 %v925, 32
  %v927 = vpop.permute.xlu0 %926
  %vm928 = vcmask 523520
  %s929 = scalar_lea.vmem %s1, 80
  %930 = vst.msk [vmem:[%s929] sm:$0x3f] %vm928, %v927
  %s931 = scalar_lea.vmem %s1, 48
  %932 = vst.msk [vmem:[%s931] sm:$0xc0] %vm928, %v927
  %s933 = scalar_lea.vmem %s0, 393
  %v934 = vld [vmem:[%s933] sm:$0x1]
  %s935 = scalar_lea.vmem %s0, 345
  %s936 = smov 6
  %v937 = vld [vmem:[%s935] ss:$16 sm:%s936]
  %vm938 = vcmask 1042433
  %v939 = vsel %vm938, %v937, %v934
  %s940 = scalar_lea.vmem %s0, 4294967261
  %s941 = smov 24
  %v942 = vld [vmem:[%s940] ss:$16 sm:%s941]
  %vm943 = vcmask 1044483
  %v944 = vsel %vm943, %v942, %v939
  %s945 = scalar_lea.vmem %s0, 4294967261
  %s946 = smov 96
  %v947 = vld [vmem:[%s945] ss:$16 sm:%s946]
  %vm948 = vcmask 1046533
  %v949 = vsel %vm948, %v947, %v944
  %s950 = scalar_lea.vmem %s0, 70
  %v951 = vld [vmem:[%s950] sm:$0x80]
  %vm952 = vcmask 1047559
  %v953 = vsel %vm952, %v951, %v949
  %954 = vrot.lane.b32.xlu0 %v953, 32
  %v955 = vpop.permute.xlu0 %954
  %vm956 = vcmask 523520
  %s957 = scalar_lea.vmem %s1, 112
  %958 = vst.msk [vmem:[%s957] ss:$-26 sm:$0x3] %vm956, %v955
  %s959 = scalar_lea.vmem %s1, 213
  %960 = vst.msk [vmem:[%s959] ss:$-63 sm:$0xc] %vm956, %v955
  %s961 = scalar_lea.vmem %s1, 21
  %962 = vst.msk [vmem:[%s961] sm:$0xf0] %vm956, %v955
  %s963 = scalar_lea.vmem %s0, 141
  %s964 = smov 3
  %v965 = vld [vmem:[%s963] ss:$16 sm:%s964]
  %s966 = scalar_lea.vmem %s0, 141
  %s967 = smov 12
  %v968 = vld [vmem:[%s966] ss:$16 sm:%s967]
  %vm969 = vcmask 1043458
  %v970 = vsel %vm969, %v968, %v965
  %s971 = scalar_lea.vmem %s0, 653
  %s972 = smov 48
  %v973 = vld [vmem:[%s971] ss:$-112 sm:%s972]
  %vm974 = vcmask 1045508
  %v975 = vsel %vm974, %v973, %v970
  %s976 = scalar_lea.vmem %s0, 13
  %s977 = smov 192
  %v978 = vld [vmem:[%s976] ss:$16 sm:%s977]
  %vm979 = vcmask 1047558
  %v980 = vsel %vm979, %v978, %v975
  %981 = vrot.lane.b32.xlu0 %v980, 32
  %v982 = vpop.permute.xlu0 %981
  %vm983 = vcmask 523520
  %s984 = scalar_lea.vmem %s1, 56
  %985 = vst.msk [vmem:[%s984] sm:$0x1f] %vm983, %v982
  %s986 = scalar_lea.vmem %s1, 24
  %987 = vst.msk [vmem:[%s986] sm:$0xe0] %vm983, %v982
  %s988 = scalar_lea.vmem %s0, 269
  %s989 = smov 3
  %v990 = vld [vmem:[%s988] ss:$16 sm:%s989]
  %s991 = scalar_lea.vmem %s0, 269
  %s992 = smov 12
  %v993 = vld [vmem:[%s991] ss:$16 sm:%s992]
  %vm994 = vcmask 1043458
  %v995 = vsel %vm994, %v993, %v990
  %s996 = scalar_lea.vmem %s0, 781
  %s997 = smov 48
  %v998 = vld [vmem:[%s996] ss:$-112 sm:%s997]
  %vm999 = vcmask 1045508
  %v1000 = vsel %vm999, %v998, %v995
  %s1001 = scalar_lea.vmem %s0, 141
  %s1002 = smov 192
  %v1003 = vld [vmem:[%s1001] ss:$16 sm:%s1002]
  %vm1004 = vcmask 1047558
  %v1005 = vsel %vm1004, %v1003, %v1000
  %1006 = vrot.lane.b32.xlu0 %v1005, 32
  %v1007 = vpop.permute.xlu0 %1006
  %vm1008 = vcmask 523520
  %s1009 = scalar_lea.vmem %s1, 88
  %1010 = vst.msk [vmem:[%s1009] sm:$0x1f] %vm1008, %v1007
  %s1011 = scalar_lea.vmem %s1, 56
  %1012 = vst.msk [vmem:[%s1011] sm:$0xe0] %vm1008, %v1007
  %s1013 = scalar_lea.vmem %s0, 397
  %s1014 = smov 3
  %v1015 = vld [vmem:[%s1013] ss:$-48 sm:%s1014]
  %s1016 = scalar_lea.vmem %s0, 333
  %s1017 = smov 12
  %v1018 = vld [vmem:[%s1016] ss:$16 sm:%s1017]
  %vm1019 = vcmask 1043458
  %v1020 = vsel %vm1019, %v1018, %v1015
  %1021 = vrot.lane.b32.xlu0 %v1020, 32
  %v1022 = vpop.permute.xlu0 %1021
  %vm1023 = vcmask 523520
  %s1024 = scalar_lea.vmem %s1, 120
  %1025 = vst.msk [vmem:[%s1024] ss:$-27 sm:$0x3] %vm1023, %v1022
  %s1026 = scalar_lea.vmem %s1, 92
  %1027 = vst.msk [vmem:[%s1026] sm:$0xc] %vm1023, %v1022

// kernel: tile.24
$region0: #{tile.24}
  #allocation0 [shape = 's32[1]{0}', space=sflag, size = 0x4, scoped, tag = 'scoped memory for tile.24']
  %s0 = inlined_call_operand.vmem [shape: f32[32], index: 0, kind: input, shape index: {}]
  %s1 = inlined_call_operand.vmem [shape: f32[8,32], index: 1, kind: output, shape index: {}]
  // Predicated region
  $region2: #{tile.24} parent=0 // pred_check
    _
  $region3: #{tile.24} parent=0 // pred_check_branch
    %3 = sbr.rel (0) target = $region5
  $region4: #{tile.24} parent=0 // pred_region
    _
  $region5: #{tile.24} parent=0 // pred_fallthru
    _
  %v4 = vld [vmem:[%s0] ss:$0 sm:$0xff]
  %5 = vst [vmem:[%s1] sm:$0xff] %v4

// kernel: tile.25
$region0: #{tile.25}
  %s0 = inlined_call_operand.vmem [shape: f32[8,32], index: 0, kind: input, shape index: {}]
  %s1 = inlined_call_operand.vmem [shape: f32[1,256], index: 1, kind: output, shape index: {}]
  $region1: #{tile.25} parent=0
    #allocation0 [shape = 'u8[8192]{0}', space=vmem, size = 0x2000, scoped, tag = 'scoped mem for output reshape']
    %s2 = smov 3
    %v3 = vld [vmem:[%s0] ss:$4 sm:%s2]
    %vm4 = vcmask 261120
    %5 = vst.msk [vmem:[#allocation0] ss:$8 sm:$0x3] %vm4, %v3
    %s6 = scalar_lea.vmem %s0, 3
    %s7 = smov 3
    %v8 = vld [vmem:[%s6] ss:$4 sm:%s7]
    %9 = vrot.lane.b32.xlu0 %v8, 96
    %v10 = vpop.permute.xlu0 %9
    %vm11 = vcmask 1048320
    %12 = vst.msk [vmem:[#allocation0] ss:$8 sm:$0x3] %vm11, %v10
    %s13 = scalar_lea.vmem %s0, 2
    %s14 = smov 3
    %v15 = vld [vmem:[%s13] ss:$4 sm:%s14]
    %16 = vrot.lane.b32.xlu0 %v15, 64
    %v17 = vpop.permute.xlu0 %16
    %vm18 = vcmask 785920
    %19 = vst.msk [vmem:[#allocation0] ss:$8 sm:$0x3] %vm18, %v17
    %s20 = scalar_lea.vmem %s0, 1
    %s21 = smov 3
    %v22 = vld [vmem:[%s20] ss:$4 sm:%s21]
    %23 = vrot.lane.b32.xlu0 %v22, 32
    %v24 = vpop.permute.xlu0 %23
    %vm25 = vcmask 523520
    %26 = vst.msk [vmem:[#allocation0] ss:$8 sm:$0x3] %vm25, %v24
    %s28 = ssub.s32 2, 1
    %v29 = vld [vmem:[#allocation0] sm:%s28]
    %s31 = ssub.s32 2, 1
    %32 = vst [vmem:[%s1] sm:%s31] %v29
    %s33 = scalar_lea.vmem [#allocation0], 8
    %v34 = vld [vmem:[%s33] sm:%s28]
    %s36 = ssub.s32 2, 1
    %s37 = scalar_lea.vmem %s1, 1
    %38 = vst [vmem:[%s37] sm:%s36] %v34

// kernel: spatial_attention2.1
$region0: #{spatial_attention2.1}
  #allocation0 [shape = 'u32[]', space=smem, size = 0x4, offset = 0x4, fixed_abs, tag = 'smem constant byte address 0x4 - core index']
  #allocation1 [shape = 'u32[72,128]{1,0:T(1,128)}', space=vmem, size = 0x9000, scoped, tag = 'internal scratch']
  %s0 = inlined_call_operand.vmem [shape: f32[2,24,768], index: 0, kind: input, shape index: {}]
  %s1 = inlined_call_operand.vmem [shape: f32[25,512], index: 1, kind: input, shape index: {}]
  %s2 = inlined_call_operand.vmem [shape: f32[1,512], index: 2, kind: input, shape index: {}]
  %s3 = inlined_call_operand.vmem [shape: bf16[256,256], index: 3, kind: input, shape index: {}]
  %s4 = inlined_call_operand.vmem [shape: f32[1,256], index: 4, kind: input, shape index: {}]
  %s5 = inlined_call_operand.vmem [shape: f32[2,16,512], index: 5, kind: output, shape index: {}]
  %s6 = sld [smem:[#allocation0]]
  $region53: #{spatial_attention2.1} parent=0
    _
  %s8 = ssub.s32 1, %s6
  %s9 = scalar_select 0, %s8, %s6
  loop: start=0, step=1, limit=4
  $region2: #{spatial_attention2.1} parent=0 // loop_pre_header
    _
  $region3: #{spatial_attention2.1} parent=0 // loop_header
    %s11 = sphi 0, %s15
    %p12 = scmp.ge.s32.totalorder %s11, 4
    %s18 = sphi 0, %s30
    %s19 = sphi 0, %s26
    %s20 = sphi 0, %s18
    %s21 = sphi 0, %s19
    %s22 = sphi 0, %s20
    %s23 = sphi 0, %s21
    %s33 = sphi 0, %s35
    %s36 = sphi 0, %s33
    %s37 = sphi 0, %s36
    %s53 = sphi 0, %s37
    %s57 = sphi 0, %s57
    %s59 = sphi 0, %s57
    %s60 = sphi 0, %s59
    %s74 = sphi 0, %s60
    %s78 = sphi 0, %s78
    %s80 = sphi 0, %s78
    %s81 = sphi 0, %s80
    %s95 = sphi 0, %s81
    %s99 = sphi 0, %s99
    %s101 = sphi 0, %s99
    %s102 = sphi 0, %s101
    %s116 = sphi 0, %s102
    %s120 = sphi 0, %s120
    %s122 = sphi 0, %s120
    %s123 = sphi 0, %s122
    %s137 = sphi 0, %s123
    %s145 = sphi 0, %s147
    %s148 = sphi 0, %s145
    %s149 = sphi 0, %s148
    %s165 = sphi 0, %s149
  $region4: #{spatial_attention2.1} parent=0 // loop_header_branch
    %14 = sbr.rel (%p12) target = $region8
  $region5: #{spatial_attention2.1} parent=0 // loop_body
    %s16 = ssub.s32 %s11, 1
    %s17 = ssub.s32 %s11, 2
    %s24 = sadd.s32 1, %s19
    %p25 = scmp.ge.s32.totalorder %s24, 1
    %s26 = scalar_select %p25, 0, %s24
    %s27 = sadd.s32 1, %s18
    %s28 = scalar_select %p25, %s27, %s18
    %p29 = scmp.ge.s32.totalorder %s28, 2
    %s30 = scalar_select %p29, 0, %s28
    %s31 = ssub.s32 %s18, %s30
    %p32 = scmp.eq.s32.totalorder %s31, 0
    %s34 = sadd.s32 %s33, 1
    %s35 = scalar_select %p32, %s33, %s34
    %p38 = pneg %p32
    %p39 = scmp.eq.s32.totalorder %s11, 1
    %p40 = por %p38, %p39
    %p41 = scmp.ne.s32.totalorder %s33, %s36
    %p42 = scmp.eq.s32.totalorder %s11, 0
    %p43 = por %p41, %p42
    %p44 = scmp.ne.s32.totalorder %s33, %s36
    %p45 = scmp.eq.s32.totalorder %s16, 1
    %p46 = por %p44, %p45
    %p47 = scmp.ne.s32.totalorder %s36, %s37
    %p48 = scmp.eq.s32.totalorder %s16, 0
    %p49 = por %p47, %p48
    %p50 = scmp.ne.s32.totalorder %s36, %s37
    %p51 = scmp.eq.s32.totalorder %s17, 1
    %p52 = por %p50, %p51
    %p54 = scmp.ne.s32.totalorder %s37, %s53
    %p55 = scmp.eq.s32.totalorder %s17, 0
    %p56 = por %p54, %p55
    %s58 = sadd.s32 %s57, 1
    %p61 = scmp.eq.s32.totalorder %s11, 1
    %p62 = scmp.ne.s32.totalorder %s57, %s59
    %p63 = scmp.eq.s32.totalorder %s11, 0
    %p64 = por %p62, %p63
    %p65 = scmp.ne.s32.totalorder %s57, %s59
    %p66 = scmp.eq.s32.totalorder %s16, 1
    %p67 = por %p65, %p66
    %p68 = scmp.ne.s32.totalorder %s59, %s60
    %p69 = scmp.eq.s32.totalorder %s16, 0
    %p70 = por %p68, %p69
    %p71 = scmp.ne.s32.totalorder %s59, %s60
    %p72 = scmp.eq.s32.totalorder %s17, 1
    %p73 = por %p71, %p72
    %p75 = scmp.ne.s32.totalorder %s60, %s74
    %p76 = scmp.eq.s32.totalorder %s17, 0
    %p77 = por %p75, %p76
    %s79 = sadd.s32 %s78, 1
    %p82 = scmp.eq.s32.totalorder %s11, 1
    %p83 = scmp.ne.s32.totalorder %s78, %s80
    %p84 = scmp.eq.s32.totalorder %s11, 0
    %p85 = por %p83, %p84
    %p86 = scmp.ne.s32.totalorder %s78, %s80
    %p87 = scmp.eq.s32.totalorder %s16, 1
    %p88 = por %p86, %p87
    %p89 = scmp.ne.s32.totalorder %s80, %s81
    %p90 = scmp.eq.s32.totalorder %s16, 0
    %p91 = por %p89, %p90
    %p92 = scmp.ne.s32.totalorder %s80, %s81
    %p93 = scmp.eq.s32.totalorder %s17, 1
    %p94 = por %p92, %p93
    %p96 = scmp.ne.s32.totalorder %s81, %s95
    %p97 = scmp.eq.s32.totalorder %s17, 0
    %p98 = por %p96, %p97
    %s100 = sadd.s32 %s99, 1
    %p103 = scmp.eq.s32.totalorder %s11, 1
    %p104 = scmp.ne.s32.totalorder %s99, %s101
    %p105 = scmp.eq.s32.totalorder %s11, 0
    %p106 = por %p104, %p105
    %p107 = scmp.ne.s32.totalorder %s99, %s101
    %p108 = scmp.eq.s32.totalorder %s16, 1
    %p109 = por %p107, %p108
    %p110 = scmp.ne.s32.totalorder %s101, %s102
    %p111 = scmp.eq.s32.totalorder %s16, 0
    %p112 = por %p110, %p111
    %p113 = scmp.ne.s32.totalorder %s101, %s102
    %p114 = scmp.eq.s32.totalorder %s17, 1
    %p115 = por %p113, %p114
    %p117 = scmp.ne.s32.totalorder %s102, %s116
    %p118 = scmp.eq.s32.totalorder %s17, 0
    %p119 = por %p117, %p118
    %s121 = sadd.s32 %s120, 1
    %p124 = scmp.eq.s32.totalorder %s11, 1
    %p125 = scmp.ne.s32.totalorder %s120, %s122
    %p126 = scmp.eq.s32.totalorder %s11, 0
    %p127 = por %p125, %p126
    %p128 = scmp.ne.s32.totalorder %s120, %s122
    %p129 = scmp.eq.s32.totalorder %s16, 1
    %p130 = por %p128, %p129
    %p131 = scmp.ne.s32.totalorder %s122, %s123
    %p132 = scmp.eq.s32.totalorder %s16, 0
    %p133 = por %p131, %p132
    %p134 = scmp.ne.s32.totalorder %s122, %s123
    %p135 = scmp.eq.s32.totalorder %s17, 1
    %p136 = por %p134, %p135
    %p138 = scmp.ne.s32.totalorder %s123, %s137
    %p139 = scmp.eq.s32.totalorder %s17, 0
    %p140 = por %p138, %p139
    %s141 = ssub.s32 %s18, %s30
    %s142 = ssub.s32 %s19, %s26
    %s143 = sor.u32 %s141, %s142
    %p144 = scmp.eq.s32.totalorder %s143, 0
    %s146 = sadd.s32 %s145, 1
    %s147 = scalar_select %p144, %s145, %s146
    %p150 = pneg %p144
    %p151 = scmp.eq.s32.totalorder %s11, 1
    %p152 = por %p150, %p151
    %p153 = scmp.ne.s32.totalorder %s145, %s148
    %p154 = scmp.eq.s32.totalorder %s11, 0
    %p155 = por %p153, %p154
    %p156 = scmp.ne.s32.totalorder %s145, %s148
    %p157 = scmp.eq.s32.totalorder %s16, 1
    %p158 = por %p156, %p157
    %p159 = scmp.ne.s32.totalorder %s148, %s149
    %p160 = scmp.eq.s32.totalorder %s16, 0
    %p161 = por %p159, %p160
    %p162 = scmp.ne.s32.totalorder %s148, %s149
    %p163 = scmp.eq.s32.totalorder %s17, 1
    %p164 = por %p162, %p163
    %p166 = scmp.ne.s32.totalorder %s149, %s165
    %p167 = scmp.eq.s32.totalorder %s17, 0
    %p168 = por %p166, %p167
    %p169 = scmp.le.s32.totalorder 1, %s11
    %p170 = scmp.lt.s32.totalorder %s11, 3
    %p171 = pnand %p169, %p170
    %p172 = pneg %p171
    // Predicated region
    $region9: #{spatial_attention2.1} parent=5 // pred_check
      _
    $region10: #{spatial_attention2.1} parent=5 // pred_check_branch
      %174 = sbr.rel (%p171) target = $region12
    $region11: #{spatial_attention2.1} parent=5 // pred_region
      %s175 = ssub.s32 %s11, 1
      // Predicated region
      $region13: #{spatial_attention2.1} parent=11 // pred_check
        %p176 = pneg %p70
      $region14: #{spatial_attention2.1} parent=11 // pred_check_branch
        %178 = sbr.rel (%p176) target = $region16
      $region15: #{spatial_attention2.1} parent=11 // pred_region
        _
      $region16: #{spatial_attention2.1} parent=11 // pred_fallthru
        _
      // Predicated region
      $region17: #{spatial_attention2.1} parent=11 // pred_check
        %p179 = pneg %p91
      $region18: #{spatial_attention2.1} parent=11 // pred_check_branch
        %181 = sbr.rel (%p179) target = $region20
      $region19: #{spatial_attention2.1} parent=11 // pred_region
        _
      $region20: #{spatial_attention2.1} parent=11 // pred_fallthru
        _
      // Predicated region
      $region21: #{spatial_attention2.1} parent=11 // pred_check
        %p182 = pneg %p112
      $region22: #{spatial_attention2.1} parent=11 // pred_check_branch
        %184 = sbr.rel (%p182) target = $region24
      $region23: #{spatial_attention2.1} parent=11 // pred_region
        _
      $region24: #{spatial_attention2.1} parent=11 // pred_fallthru
        _
      // Predicated region
      $region25: #{spatial_attention2.1} parent=11 // pred_check
        %p185 = pneg %p133
      $region26: #{spatial_attention2.1} parent=11 // pred_check_branch
        %187 = sbr.rel (%p185) target = $region28
      $region27: #{spatial_attention2.1} parent=11 // pred_region
        _
      $region28: #{spatial_attention2.1} parent=11 // pred_fallthru
        _
    $region12: #{spatial_attention2.1} parent=5 // pred_fallthru
      _
    %p188 = scmp.lt.s32.totalorder %s11, 2
    // Predicated region
    $region29: #{spatial_attention2.1} parent=5 // pred_check
      %p189 = pneg %p188
    $region30: #{spatial_attention2.1} parent=5 // pred_check_branch
      %191 = sbr.rel (%p189) target = $region32
    $region31: #{spatial_attention2.1} parent=5 // pred_region
      // Predicated region
      $region33: #{spatial_attention2.1} parent=31 // pred_check
        %p192 = pneg %p43
      $region34: #{spatial_attention2.1} parent=31 // pred_check_branch
        %194 = sbr.rel (%p192) target = $region36
      $region35: #{spatial_attention2.1} parent=31 // pred_region
        %p195 = scmp.lt.s32.totalorder %s18, 1
        %s196 = scalar_select %p195, %s18, 1
        %s197 = smul.addr %s196, 18
        %s198 = smul.addr %s197, 8
        %s199 = scalar_lea.vmem %s0, %s198
      $region36: #{spatial_attention2.1} parent=31 // pred_fallthru
        _
    $region32: #{spatial_attention2.1} parent=5 // pred_fallthru
      _
    %p200 = scmp.le.s32.totalorder 1, %s11
    %p201 = scmp.lt.s32.totalorder %s11, 3
    %p202 = pnand %p200, %p201
    %p203 = pneg %p202
    // Predicated region
    $region37: #{spatial_attention2.1} parent=5 // pred_check
      _
    $region38: #{spatial_attention2.1} parent=5 // pred_check_branch
      %205 = sbr.rel (%p202) target = $region40
    $region39: #{spatial_attention2.1} parent=5 // pred_region
      %s206 = ssub.s32 %s11, 1
      %p207 = scmp.lt.s32.totalorder %s20, 1
      %s208 = scalar_select %p207, %s20, 1
      %s209 = smul.addr %s208, 18
      %s210 = smul.addr %s209, 8
      %s211 = scalar_lea.vmem %s0, %s210
      %p212 = pneg %p49
      %p213 = pneg %p46
      %p214 = pneg %p70
      %p215 = pneg %p67
      %p216 = pneg %p91
      %p217 = pneg %p88
      %p218 = pneg %p112
      %p219 = pneg %p109
      %p220 = pneg %p133
      %p221 = pneg %p130
      %p222 = pneg %p161
      %p223 = pneg %p158
      %s224 = smul.u32 2, %s21
      %p225 = scmp.lt.s32.totalorder %s20, 1
      %s226 = scalar_select %p225, %s20, 1
      %p227 = scmp.lt.s32.totalorder %s224, 1
      %s228 = scalar_select %p227, %s224, 1
      %s229 = smul.addr %s228, 4
      %s230 = smul.addr %s226, 8
      %s231 = sadd.s32 %s229, %s230
      %s232 = smul.addr %s231, 8
      %s233 = scalar_lea.vmem %s5, %s232
      %p234 = scmp.lt.s32.totalorder %s20, 1
      %s235 = scalar_select %p234, %s20, 1
      %s236 = smul.addr %s235, 18
      %s237 = smul.addr %s236, 8
      %s238 = scalar_lea.vmem %s0, %s237
      %s239 = smul.u32 2, %s21
      %p240 = scmp.lt.s32.totalorder %s20, 1
      %s241 = scalar_select %p240, %s20, 1
      %p242 = scmp.lt.s32.totalorder %s239, 1
      %s243 = scalar_select %p242, %s239, 1
      %s244 = smul.addr %s243, 4
      %s245 = smul.addr %s241, 8
      %s246 = sadd.s32 %s244, %s245
      %s247 = smul.addr %s246, 8
      %s248 = scalar_lea.vmem %s5, %s247
      %s249 = smul.u32 2, %s21
      %v250 = vld [vmem:[%s238] sm:$0xff]
      %v251 = vld [vmem:[%s238 + $0x8] sm:$0xff]
      %v252 = vld [vmem:[%s238 + $0x10] sm:$0xff]
      %v253 = vld [vmem:[%s238 + $0x18] sm:$0xff]
      %v254 = vld [vmem:[%s238 + $0x20] sm:$0xff]
      %v255 = vld [vmem:[%s238 + $0x28] sm:$0xff]
      %v256 = vld [vmem:[%s238 + $0x30] sm:$0xff]
      %v257 = vld [vmem:[%s238 + $0x38] sm:$0xff]
      %v258 = vld [vmem:[%s238 + $0x40] sm:$0xff]
      %v259 = vld [vmem:[%s238 + $0x48] sm:$0xff]
      %v260 = vld [vmem:[%s238 + $0x50] sm:$0xff]
      %v261 = vld [vmem:[%s238 + $0x58] sm:$0xff]
      %v262 = vld [vmem:[%s1] ss:$8 sm:$0xf]
      %v264 = vperm.slane %v262, 0
      %v265 = vperm.slane %v262, 1
      %v266 = vperm.slane %v262, 2
      %v267 = vperm.slane %v262, 3
      %v272 = vmul.f32 %v250, %v264
      %v273 = vmul.f32 %v251, %v265
      %v274 = vmul.f32 %v252, %v266
      %v275 = vmul.f32 %v253, %v267
      %v276 = vmul.f32 %v256, %v264
      %v277 = vmul.f32 %v257, %v265
      %v278 = vmul.f32 %v258, %v266
      %v279 = vmul.f32 %v259, %v267
      %v280 = vadd.f32 %v272, 0.0
      %v281 = vadd.f32 %v273, 0.0
      %v282 = vadd.f32 %v274, 0.0
      %v283 = vadd.f32 %v275, 0.0
      %v284 = vadd.f32 %v276, 0.0
      %v285 = vadd.f32 %v277, 0.0
      %v286 = vadd.f32 %v278, 0.0
      %v287 = vadd.f32 %v279, 0.0
      %s288 = scalar_lea.vmem %s1, 1
      %v289 = vld [vmem:[%s288] ss:$8 sm:$0xf]
      %v291 = vperm.slane %v289, 0
      %v292 = vperm.slane %v289, 1
      %v293 = vperm.slane %v289, 2
      %v294 = vperm.slane %v289, 3
      %295 = vrot.lane.b32.xlu0 %v291, 64
      %v296 = vpop.permute.xlu0 %295
      %297 = vrot.lane.b32.xlu0 %v292, 64
      %v298 = vpop.permute.xlu0 %297
      %299 = vrot.lane.b32.xlu0 %v293, 64
      %v300 = vpop.permute.xlu0 %299
      %301 = vrot.lane.b32.xlu0 %v294, 64
      %v302 = vpop.permute.xlu0 %301
      %vm303 = vcmask 523264
      %v304 = vsel %vm303, %v296, %v298
      %v305 = vsel %vm303, %v298, %v300
      %v306 = vsel %vm303, %v300, %v302
      %v312 = vmul.f32 %v250, %v296
      %v313 = vmul.f32 %v251, %v304
      %v314 = vmul.f32 %v252, %v305
      %v315 = vmul.f32 %v253, %v306
      %v316 = vmul.f32 %v254, %v302
      %v317 = vmul.f32 %v256, %v296
      %v318 = vmul.f32 %v257, %v304
      %v319 = vmul.f32 %v258, %v305
      %v320 = vmul.f32 %v259, %v306
      %v321 = vmul.f32 %v260, %v302
      %332 = vrot.lane.b32.xlu0 %v312, 64
      %v333 = vpop.permute.xlu0 %332
      %334 = vrot.lane.b32.xlu0 %v313, 64
      %v335 = vpop.permute.xlu0 %334
      %336 = vrot.lane.b32.xlu0 %v314, 64
      %v337 = vpop.permute.xlu0 %336
      %338 = vrot.lane.b32.xlu0 %v315, 64
      %v339 = vpop.permute.xlu0 %338
      %340 = vrot.lane.b32.xlu0 %v316, 64
      %v341 = vpop.permute.xlu0 %340
      %342 = vrot.lane.b32.xlu0 %v317, 64
      %v343 = vpop.permute.xlu0 %342
      %344 = vrot.lane.b32.xlu0 %v318, 64
      %v345 = vpop.permute.xlu0 %344
      %346 = vrot.lane.b32.xlu0 %v319, 64
      %v347 = vpop.permute.xlu0 %346
      %348 = vrot.lane.b32.xlu0 %v320, 64
      %v349 = vpop.permute.xlu0 %348
      %350 = vrot.lane.b32.xlu0 %v321, 64
      %v351 = vpop.permute.xlu0 %350
      %v352 = vsel %vm303, %v333, %v335
      %v353 = vsel %vm303, %v335, %v337
      %v354 = vsel %vm303, %v337, %v339
      %v355 = vsel %vm303, %v339, %v341
      %v356 = vsel %vm303, %v343, %v345
      %v357 = vsel %vm303, %v345, %v347
      %v358 = vsel %vm303, %v347, %v349
      %v359 = vsel %vm303, %v349, %v351
      %v368 = vadd.f32 %v280, %v352
      %v369 = vadd.f32 %v281, %v353
      %v370 = vadd.f32 %v282, %v354
      %v371 = vadd.f32 %v283, %v355
      %v372 = vadd.f32 %v284, %v356
      %v373 = vadd.f32 %v285, %v357
      %v374 = vadd.f32 %v286, %v358
      %v375 = vadd.f32 %v287, %v359
      %s376 = scalar_lea.vmem %s1, 2
      %v377 = vld [vmem:[%s376] ss:$8 sm:$0xf]
      %v379 = vperm.slane %v377, 0
      %v380 = vperm.slane %v377, 1
      %v381 = vperm.slane %v377, 2
      %v382 = vperm.slane %v377, 3
      %v387 = vmul.f32 %v251, %v379
      %v388 = vmul.f32 %v252, %v380
      %v389 = vmul.f32 %v253, %v381
      %v390 = vmul.f32 %v254, %v382
      %v391 = vmul.f32 %v257, %v379
      %v392 = vmul.f32 %v258, %v380
      %v393 = vmul.f32 %v259, %v381
      %v394 = vmul.f32 %v260, %v382
      %v395 = vadd.f32 %v368, %v387
      %v396 = vadd.f32 %v369, %v388
      %v397 = vadd.f32 %v370, %v389
      %v398 = vadd.f32 %v371, %v390
      %v399 = vadd.f32 %v372, %v391
      %v400 = vadd.f32 %v373, %v392
      %v401 = vadd.f32 %v374, %v393
      %v402 = vadd.f32 %v375, %v394
      %s403 = scalar_lea.vmem %s1, 3
      %v404 = vld [vmem:[%s403] ss:$8 sm:$0xf]
      %v406 = vperm.slane %v404, 0
      %v407 = vperm.slane %v404, 1
      %v408 = vperm.slane %v404, 2
      %v409 = vperm.slane %v404, 3
      %410 = vrot.lane.b32.xlu0 %v406, 64
      %v411 = vpop.permute.xlu0 %410
      %412 = vrot.lane.b32.xlu0 %v407, 64
      %v413 = vpop.permute.xlu0 %412
      %414 = vrot.lane.b32.xlu0 %v408, 64
      %v415 = vpop.permute.xlu0 %414
      %416 = vrot.lane.b32.xlu0 %v409, 64
      %v417 = vpop.permute.xlu0 %416
      %v418 = vsel %vm303, %v411, %v413
      %v419 = vsel %vm303, %v413, %v415
      %v420 = vsel %vm303, %v415, %v417
      %v426 = vmul.f32 %v251, %v411
      %v427 = vmul.f32 %v252, %v418
      %v428 = vmul.f32 %v253, %v419
      %v429 = vmul.f32 %v254, %v420
      %v430 = vmul.f32 %v255, %v417
      %v431 = vmul.f32 %v257, %v411
      %v432 = vmul.f32 %v258, %v418
      %v433 = vmul.f32 %v259, %v419
      %v434 = vmul.f32 %v260, %v420
      %v435 = vmul.f32 %v261, %v417
      %446 = vrot.lane.b32.xlu0 %v426, 64
      %v447 = vpop.permute.xlu0 %446
      %448 = vrot.lane.b32.xlu0 %v427, 64
      %v449 = vpop.permute.xlu0 %448
      %450 = vrot.lane.b32.xlu0 %v428, 64
      %v451 = vpop.permute.xlu0 %450
      %452 = vrot.lane.b32.xlu0 %v429, 64
      %v453 = vpop.permute.xlu0 %452
      %454 = vrot.lane.b32.xlu0 %v430, 64
      %v455 = vpop.permute.xlu0 %454
      %456 = vrot.lane.b32.xlu0 %v431, 64
      %v457 = vpop.permute.xlu0 %456
      %458 = vrot.lane.b32.xlu0 %v432, 64
      %v459 = vpop.permute.xlu0 %458
      %460 = vrot.lane.b32.xlu0 %v433, 64
      %v461 = vpop.permute.xlu0 %460
      %462 = vrot.lane.b32.xlu0 %v434, 64
      %v463 = vpop.permute.xlu0 %462
      %464 = vrot.lane.b32.xlu0 %v435, 64
      %v465 = vpop.permute.xlu0 %464
      %v466 = vsel %vm303, %v447, %v449
      %v467 = vsel %vm303, %v449, %v451
      %v468 = vsel %vm303, %v451, %v453
      %v469 = vsel %vm303, %v453, %v455
      %v470 = vsel %vm303, %v457, %v459
      %v471 = vsel %vm303, %v459, %v461
      %v472 = vsel %vm303, %v461, %v463
      %v473 = vsel %vm303, %v463, %v465
      %v482 = vadd.f32 %v395, %v466
      %v483 = vadd.f32 %v396, %v467
      %v484 = vadd.f32 %v397, %v468
      %v485 = vadd.f32 %v398, %v469
      %v486 = vadd.f32 %v399, %v470
      %v487 = vadd.f32 %v400, %v471
      %v488 = vadd.f32 %v401, %v472
      %v489 = vadd.f32 %v402, %v473
      %s490 = scalar_lea.vmem %s1, 4
      %v491 = vld [vmem:[%s490] ss:$8 sm:$0xf]
      %v493 = vperm.slane %v491, 0
      %v494 = vperm.slane %v491, 1
      %v495 = vperm.slane %v491, 2
      %v496 = vperm.slane %v491, 3
      %v501 = vmul.f32 %v252, %v493
      %v502 = vmul.f32 %v253, %v494
      %v503 = vmul.f32 %v254, %v495
      %v504 = vmul.f32 %v255, %v496
      %v505 = vmul.f32 %v258, %v493
      %v506 = vmul.f32 %v259, %v494
      %v507 = vmul.f32 %v260, %v495
      %v508 = vmul.f32 %v261, %v496
      %v509 = vadd.f32 %v482, %v501
      %v510 = vadd.f32 %v483, %v502
      %v511 = vadd.f32 %v484, %v503
      %v512 = vadd.f32 %v485, %v504
      %v513 = vadd.f32 %v486, %v505
      %v514 = vadd.f32 %v487, %v506
      %v515 = vadd.f32 %v488, %v507
      %v516 = vadd.f32 %v489, %v508
      %v517 = vld [vmem:[%s238] sm:$0xfc]
      %v518 = vld [vmem:[%s238 + $0x8] sm:$0xfc]
      %v519 = vld [vmem:[%s238 + $0x10] sm:$0xfc]
      %v520 = vld [vmem:[%s238 + $0x18] sm:$0xfc]
      %v521 = vld [vmem:[%s238 + $0x20] sm:$0xfc]
      %v522 = vld [vmem:[%s238 + $0x28] sm:$0xfc]
      %v523 = vld [vmem:[%s238 + $0x30] sm:$0xff]
      %v524 = vld [vmem:[%s238 + $0x38] sm:$0xff]
      %v525 = vld [vmem:[%s238 + $0x40] sm:$0xff]
      %v526 = vld [vmem:[%s238 + $0x48] sm:$0xff]
      %v527 = vld [vmem:[%s238 + $0x50] sm:$0xff]
      %v528 = vld [vmem:[%s238 + $0x58] sm:$0xff]
      %v529 = vld [vmem:[%s238 + $0x60] sm:$0x3]
      %v530 = vld [vmem:[%s238 + $0x68] sm:$0x3]
      %v531 = vld [vmem:[%s238 + $0x70] sm:$0x3]
      %v532 = vld [vmem:[%s238 + $0x78] sm:$0x3]
      %v533 = vld [vmem:[%s238 + $0x80] sm:$0x3]
      %v534 = vld [vmem:[%s238 + $0x88] sm:$0x3]
      %s535 = scalar_lea.vmem %s1, 5
      %v536 = vld [vmem:[%s535] ss:$8 sm:$0xf]
      %v538 = vperm.slane %v536, 0
      %v539 = vperm.slane %v536, 1
      %v540 = vperm.slane %v536, 2
      %v541 = vperm.slane %v536, 3
      %v546 = vmul.f32 %v517, %v538
      %v547 = vmul.f32 %v518, %v539
      %v548 = vmul.f32 %v519, %v540
      %v549 = vmul.f32 %v520, %v541
      %v550 = vmul.f32 %v523, %v538
      %v551 = vmul.f32 %v524, %v539
      %v552 = vmul.f32 %v525, %v540
      %v553 = vmul.f32 %v526, %v541
      %v554 = vmul.f32 %v529, %v538
      %v555 = vmul.f32 %v530, %v539
      %v556 = vmul.f32 %v531, %v540
      %v557 = vmul.f32 %v532, %v541
      %vm570 = vcmask 1045504
      %v571 = vrot.slane %v546, 2
      %v572 = vrot.slane %v550, 2
      %v573 = vsel %vm570, %v571, %v572
      %v574 = vrot.slane %v547, 2
      %v575 = vrot.slane %v551, 2
      %v576 = vsel %vm570, %v574, %v575
      %v577 = vrot.slane %v548, 2
      %v578 = vrot.slane %v552, 2
      %v579 = vsel %vm570, %v577, %v578
      %v580 = vrot.slane %v549, 2
      %v581 = vrot.slane %v553, 2
      %v582 = vsel %vm570, %v580, %v581
      %v583 = vrot.slane %v554, 2
      %v584 = vsel %vm570, %v572, %v583
      %v585 = vrot.slane %v555, 2
      %v586 = vsel %vm570, %v575, %v585
      %v587 = vrot.slane %v556, 2
      %v588 = vsel %vm570, %v578, %v587
      %v589 = vrot.slane %v557, 2
      %v590 = vsel %vm570, %v581, %v589
      %v599 = vadd.f32 %v509, %v573
      %v600 = vadd.f32 %v510, %v576
      %v601 = vadd.f32 %v511, %v579
      %v602 = vadd.f32 %v512, %v582
      %v603 = vadd.f32 %v513, %v584
      %v604 = vadd.f32 %v514, %v586
      %v605 = vadd.f32 %v515, %v588
      %v606 = vadd.f32 %v516, %v590
      %s607 = scalar_lea.vmem %s1, 6
      %v608 = vld [vmem:[%s607] ss:$8 sm:$0xf]
      %v610 = vperm.slane %v608, 0
      %v611 = vperm.slane %v608, 1
      %v612 = vperm.slane %v608, 2
      %v613 = vperm.slane %v608, 3
      %614 = vrot.lane.b32.xlu0 %v610, 64
      %v615 = vpop.permute.xlu0 %614
      %616 = vrot.lane.b32.xlu0 %v611, 64
      %v617 = vpop.permute.xlu0 %616
      %618 = vrot.lane.b32.xlu0 %v612, 64
      %v619 = vpop.permute.xlu0 %618
      %620 = vrot.lane.b32.xlu0 %v613, 64
      %v621 = vpop.permute.xlu0 %620
      %v622 = vsel %vm303, %v615, %v617
      %v623 = vsel %vm303, %v617, %v619
      %v624 = vsel %vm303, %v619, %v621
      %v630 = vmul.f32 %v517, %v615
      %v631 = vmul.f32 %v518, %v622
      %v632 = vmul.f32 %v519, %v623
      %v633 = vmul.f32 %v520, %v624
      %v634 = vmul.f32 %v521, %v621
      %v635 = vmul.f32 %v523, %v615
      %v636 = vmul.f32 %v524, %v622
      %v637 = vmul.f32 %v525, %v623
      %v638 = vmul.f32 %v526, %v624
      %v639 = vmul.f32 %v527, %v621
      %v640 = vmul.f32 %v529, %v615
      %v641 = vmul.f32 %v530, %v622
      %v642 = vmul.f32 %v531, %v623
      %v643 = vmul.f32 %v532, %v624
      %v644 = vmul.f32 %v533, %v621
      %v660 = vrot.slane %v630, 2
      %v661 = vrot.slane %v635, 2
      %v662 = vsel %vm570, %v660, %v661
      %v663 = vrot.slane %v631, 2
      %v664 = vrot.slane %v636, 2
      %v665 = vsel %vm570, %v663, %v664
      %v666 = vrot.slane %v632, 2
      %v667 = vrot.slane %v637, 2
      %v668 = vsel %vm570, %v666, %v667
      %v669 = vrot.slane %v633, 2
      %v670 = vrot.slane %v638, 2
      %v671 = vsel %vm570, %v669, %v670
      %v672 = vrot.slane %v634, 2
      %v673 = vrot.slane %v639, 2
      %v674 = vsel %vm570, %v672, %v673
      %v675 = vrot.slane %v640, 2
      %v676 = vsel %vm570, %v661, %v675
      %v677 = vrot.slane %v641, 2
      %v678 = vsel %vm570, %v664, %v677
      %v679 = vrot.slane %v642, 2
      %v680 = vsel %vm570, %v667, %v679
      %v681 = vrot.slane %v643, 2
      %v682 = vsel %vm570, %v670, %v681
      %v683 = vrot.slane %v644, 2
      %v684 = vsel %vm570, %v673, %v683
      %685 = vrot.lane.b32.xlu0 %v662, 64
      %v686 = vpop.permute.xlu0 %685
      %687 = vrot.lane.b32.xlu0 %v665, 64
      %v688 = vpop.permute.xlu0 %687
      %689 = vrot.lane.b32.xlu0 %v668, 64
      %v690 = vpop.permute.xlu0 %689
      %691 = vrot.lane.b32.xlu0 %v671, 64
      %v692 = vpop.permute.xlu0 %691
      %693 = vrot.lane.b32.xlu0 %v674, 64
      %v694 = vpop.permute.xlu0 %693
      %695 = vrot.lane.b32.xlu0 %v676, 64
      %v696 = vpop.permute.xlu0 %695
      %697 = vrot.lane.b32.xlu0 %v678, 64
      %v698 = vpop.permute.xlu0 %697
      %699 = vrot.lane.b32.xlu0 %v680, 64
      %v700 = vpop.permute.xlu0 %699
      %701 = vrot.lane.b32.xlu0 %v682, 64
      %v702 = vpop.permute.xlu0 %701
      %703 = vrot.lane.b32.xlu0 %v684, 64
      %v704 = vpop.permute.xlu0 %703
      %v705 = vsel %vm303, %v686, %v688
      %v706 = vsel %vm303, %v688, %v690
      %v707 = vsel %vm303, %v690, %v692
      %v708 = vsel %vm303, %v692, %v694
      %v709 = vsel %vm303, %v696, %v698
      %v710 = vsel %vm303, %v698, %v700
      %v711 = vsel %vm303, %v700, %v702
      %v712 = vsel %vm303, %v702, %v704
      %v721 = vadd.f32 %v599, %v705
      %v722 = vadd.f32 %v600, %v706
      %v723 = vadd.f32 %v601, %v707
      %v724 = vadd.f32 %v602, %v708
      %v725 = vadd.f32 %v603, %v709
      %v726 = vadd.f32 %v604, %v710
      %v727 = vadd.f32 %v605, %v711
      %v728 = vadd.f32 %v606, %v712
      %s729 = scalar_lea.vmem %s1, 7
      %v730 = vld [vmem:[%s729] ss:$8 sm:$0xf]
      %v732 = vperm.slane %v730, 0
      %v733 = vperm.slane %v730, 1
      %v734 = vperm.slane %v730, 2
      %v735 = vperm.slane %v730, 3
      %v740 = vmul.f32 %v518, %v732
      %v741 = vmul.f32 %v519, %v733
      %v742 = vmul.f32 %v520, %v734
      %v743 = vmul.f32 %v521, %v735
      %v744 = vmul.f32 %v524, %v732
      %v745 = vmul.f32 %v525, %v733
      %v746 = vmul.f32 %v526, %v734
      %v747 = vmul.f32 %v527, %v735
      %v748 = vmul.f32 %v530, %v732
      %v749 = vmul.f32 %v531, %v733
      %v750 = vmul.f32 %v532, %v734
      %v751 = vmul.f32 %v533, %v735
      %v764 = vrot.slane %v740, 2
      %v765 = vrot.slane %v744, 2
      %v766 = vsel %vm570, %v764, %v765
      %v767 = vrot.slane %v741, 2
      %v768 = vrot.slane %v745, 2
      %v769 = vsel %vm570, %v767, %v768
      %v770 = vrot.slane %v742, 2
      %v771 = vrot.slane %v746, 2
      %v772 = vsel %vm570, %v770, %v771
      %v773 = vrot.slane %v743, 2
      %v774 = vrot.slane %v747, 2
      %v775 = vsel %vm570, %v773, %v774
      %v776 = vrot.slane %v748, 2
      %v777 = vsel %vm570, %v765, %v776
      %v778 = vrot.slane %v749, 2
      %v779 = vsel %vm570, %v768, %v778
      %v780 = vrot.slane %v750, 2
      %v781 = vsel %vm570, %v771, %v780
      %v782 = vrot.slane %v751, 2
      %v783 = vsel %vm570, %v774, %v782
      %v792 = vadd.f32 %v721, %v766
      %v793 = vadd.f32 %v722, %v769
      %v794 = vadd.f32 %v723, %v772
      %v795 = vadd.f32 %v724, %v775
      %v796 = vadd.f32 %v725, %v777
      %v797 = vadd.f32 %v726, %v779
      %v798 = vadd.f32 %v727, %v781
      %v799 = vadd.f32 %v728, %v783
      %s800 = scalar_lea.vmem %s1, 32
      %v801 = vld [vmem:[%s800] ss:$8 sm:$0xf]
      %v803 = vperm.slane %v801, 0
      %v804 = vperm.slane %v801, 1
      %v805 = vperm.slane %v801, 2
      %v806 = vperm.slane %v801, 3
      %807 = vrot.lane.b32.xlu0 %v803, 64
      %v808 = vpop.permute.xlu0 %807
      %809 = vrot.lane.b32.xlu0 %v804, 64
      %v810 = vpop.permute.xlu0 %809
      %811 = vrot.lane.b32.xlu0 %v805, 64
      %v812 = vpop.permute.xlu0 %811
      %813 = vrot.lane.b32.xlu0 %v806, 64
      %v814 = vpop.permute.xlu0 %813
      %v815 = vsel %vm303, %v808, %v810
      %v816 = vsel %vm303, %v810, %v812
      %v817 = vsel %vm303, %v812, %v814
      %v823 = vmul.f32 %v518, %v808
      %v824 = vmul.f32 %v519, %v815
      %v825 = vmul.f32 %v520, %v816
      %v826 = vmul.f32 %v521, %v817
      %v827 = vmul.f32 %v522, %v814
      %v828 = vmul.f32 %v524, %v808
      %v829 = vmul.f32 %v525, %v815
      %v830 = vmul.f32 %v526, %v816
      %v831 = vmul.f32 %v527, %v817
      %v832 = vmul.f32 %v528, %v814
      %v833 = vmul.f32 %v530, %v808
      %v834 = vmul.f32 %v531, %v815
      %v835 = vmul.f32 %v532, %v816
      %v836 = vmul.f32 %v533, %v817
      %v837 = vmul.f32 %v534, %v814
      %v853 = vrot.slane %v823, 2
      %v854 = vrot.slane %v828, 2
      %v855 = vsel %vm570, %v853, %v854
      %v856 = vrot.slane %v824, 2
      %v857 = vrot.slane %v829, 2
      %v858 = vsel %vm570, %v856, %v857
      %v859 = vrot.slane %v825, 2
      %v860 = vrot.slane %v830, 2
      %v861 = vsel %vm570, %v859, %v860
      %v862 = vrot.slane %v826, 2
      %v863 = vrot.slane %v831, 2
      %v864 = vsel %vm570, %v862, %v863
      %v865 = vrot.slane %v827, 2
      %v866 = vrot.slane %v832, 2
      %v867 = vsel %vm570, %v865, %v866
      %v868 = vrot.slane %v833, 2
      %v869 = vsel %vm570, %v854, %v868
      %v870 = vrot.slane %v834, 2
      %v871 = vsel %vm570, %v857, %v870
      %v872 = vrot.slane %v835, 2
      %v873 = vsel %vm570, %v860, %v872
      %v874 = vrot.slane %v836, 2
      %v875 = vsel %vm570, %v863, %v874
      %v876 = vrot.slane %v837, 2
      %v877 = vsel %vm570, %v866, %v876
      %878 = vrot.lane.b32.xlu0 %v855, 64
      %v879 = vpop.permute.xlu0 %878
      %880 = vrot.lane.b32.xlu0 %v858, 64
      %v881 = vpop.permute.xlu0 %880
      %882 = vrot.lane.b32.xlu0 %v861, 64
      %v883 = vpop.permute.xlu0 %882
      %884 = vrot.lane.b32.xlu0 %v864, 64
      %v885 = vpop.permute.xlu0 %884
      %886 = vrot.lane.b32.xlu0 %v867, 64
      %v887 = vpop.permute.xlu0 %886
      %888 = vrot.lane.b32.xlu0 %v869, 64
      %v889 = vpop.permute.xlu0 %888
      %890 = vrot.lane.b32.xlu0 %v871, 64
      %v891 = vpop.permute.xlu0 %890
      %892 = vrot.lane.b32.xlu0 %v873, 64
      %v893 = vpop.permute.xlu0 %892
      %894 = vrot.lane.b32.xlu0 %v875, 64
      %v895 = vpop.permute.xlu0 %894
      %896 = vrot.lane.b32.xlu0 %v877, 64
      %v897 = vpop.permute.xlu0 %896
      %v898 = vsel %vm303, %v879, %v881
      %v899 = vsel %vm303, %v881, %v883
      %v900 = vsel %vm303, %v883, %v885
      %v901 = vsel %vm303, %v885, %v887
      %v902 = vsel %vm303, %v889, %v891
      %v903 = vsel %vm303, %v891, %v893
      %v904 = vsel %vm303, %v893, %v895
      %v905 = vsel %vm303, %v895, %v897
      %v914 = vadd.f32 %v792, %v898
      %v915 = vadd.f32 %v793, %v899
      %v916 = vadd.f32 %v794, %v900
      %v917 = vadd.f32 %v795, %v901
      %v918 = vadd.f32 %v796, %v902
      %v919 = vadd.f32 %v797, %v903
      %v920 = vadd.f32 %v798, %v904
      %v921 = vadd.f32 %v799, %v905
      %s922 = scalar_lea.vmem %s1, 33
      %v923 = vld [vmem:[%s922] ss:$8 sm:$0xf]
      %v925 = vperm.slane %v923, 0
      %v926 = vperm.slane %v923, 1
      %v927 = vperm.slane %v923, 2
      %v928 = vperm.slane %v923, 3
      %v933 = vmul.f32 %v519, %v925
      %v934 = vmul.f32 %v520, %v926
      %v935 = vmul.f32 %v521, %v927
      %v936 = vmul.f32 %v522, %v928
      %v937 = vmul.f32 %v525, %v925
      %v938 = vmul.f32 %v526, %v926
      %v939 = vmul.f32 %v527, %v927
      %v940 = vmul.f32 %v528, %v928
      %v941 = vmul.f32 %v531, %v925
      %v942 = vmul.f32 %v532, %v926
      %v943 = vmul.f32 %v533, %v927
      %v944 = vmul.f32 %v534, %v928
      %v957 = vrot.slane %v933, 2
      %v958 = vrot.slane %v937, 2
      %v959 = vsel %vm570, %v957, %v958
      %v960 = vrot.slane %v934, 2
      %v961 = vrot.slane %v938, 2
      %v962 = vsel %vm570, %v960, %v961
      %v963 = vrot.slane %v935, 2
      %v964 = vrot.slane %v939, 2
      %v965 = vsel %vm570, %v963, %v964
      %v966 = vrot.slane %v936, 2
      %v967 = vrot.slane %v940, 2
      %v968 = vsel %vm570, %v966, %v967
      %v969 = vrot.slane %v941, 2
      %v970 = vsel %vm570, %v958, %v969
      %v971 = vrot.slane %v942, 2
      %v972 = vsel %vm570, %v961, %v971
      %v973 = vrot.slane %v943, 2
      %v974 = vsel %vm570, %v964, %v973
      %v975 = vrot.slane %v944, 2
      %v976 = vsel %vm570, %v967, %v975
      %v985 = vadd.f32 %v914, %v959
      %v986 = vadd.f32 %v915, %v962
      %v987 = vadd.f32 %v916, %v965
      %v988 = vadd.f32 %v917, %v968
      %v989 = vadd.f32 %v918, %v970
      %v990 = vadd.f32 %v919, %v972
      %v991 = vadd.f32 %v920, %v974
      %v992 = vadd.f32 %v921, %v976
      %v993 = vld [vmem:[%s238] sm:$0xf0]
      %v994 = vld [vmem:[%s238 + $0x8] sm:$0xf0]
      %v995 = vld [vmem:[%s238 + $0x10] sm:$0xf0]
      %v996 = vld [vmem:[%s238 + $0x18] sm:$0xf0]
      %v997 = vld [vmem:[%s238 + $0x20] sm:$0xf0]
      %v998 = vld [vmem:[%s238 + $0x28] sm:$0xf0]
      %v999 = vld [vmem:[%s238 + $0x60] sm:$0xf]
      %v1000 = vld [vmem:[%s238 + $0x68] sm:$0xf]
      %v1001 = vld [vmem:[%s238 + $0x70] sm:$0xf]
      %v1002 = vld [vmem:[%s238 + $0x78] sm:$0xf]
      %v1003 = vld [vmem:[%s238 + $0x80] sm:$0xf]
      %v1004 = vld [vmem:[%s238 + $0x88] sm:$0xf]
      %s1005 = scalar_lea.vmem %s1, 34
      %v1006 = vld [vmem:[%s1005] ss:$8 sm:$0xf]
      %v1008 = vperm.slane %v1006, 0
      %v1009 = vperm.slane %v1006, 1
      %v1010 = vperm.slane %v1006, 2
      %v1011 = vperm.slane %v1006, 3
      %v1016 = vmul.f32 %v993, %v1008
      %v1017 = vmul.f32 %v994, %v1009
      %v1018 = vmul.f32 %v995, %v1010
      %v1019 = vmul.f32 %v996, %v1011
      %v1020 = vmul.f32 %v523, %v1008
      %v1021 = vmul.f32 %v524, %v1009
      %v1022 = vmul.f32 %v525, %v1010
      %v1023 = vmul.f32 %v526, %v1011
      %v1024 = vmul.f32 %v999, %v1008
      %v1025 = vmul.f32 %v1000, %v1009
      %v1026 = vmul.f32 %v1001, %v1010
      %v1027 = vmul.f32 %v1002, %v1011
      %vm1040 = vcmask 1043456
      %v1041 = vrot.slane %v1016, 4
      %v1042 = vrot.slane %v1020, 4
      %v1043 = vsel %vm1040, %v1041, %v1042
      %v1044 = vrot.slane %v1017, 4
      %v1045 = vrot.slane %v1021, 4
      %v1046 = vsel %vm1040, %v1044, %v1045
      %v1047 = vrot.slane %v1018, 4
      %v1048 = vrot.slane %v1022, 4
      %v1049 = vsel %vm1040, %v1047, %v1048
      %v1050 = vrot.slane %v1019, 4
      %v1051 = vrot.slane %v1023, 4
      %v1052 = vsel %vm1040, %v1050, %v1051
      %v1053 = vrot.slane %v1024, 4
      %v1054 = vsel %vm1040, %v1042, %v1053
      %v1055 = vrot.slane %v1025, 4
      %v1056 = vsel %vm1040, %v1045, %v1055
      %v1057 = vrot.slane %v1026, 4
      %v1058 = vsel %vm1040, %v1048, %v1057
      %v1059 = vrot.slane %v1027, 4
      %v1060 = vsel %vm1040, %v1051, %v1059
      %v1069 = vadd.f32 %v985, %v1043
      %v1070 = vadd.f32 %v986, %v1046
      %v1071 = vadd.f32 %v987, %v1049
      %v1072 = vadd.f32 %v988, %v1052
      %v1073 = vadd.f32 %v989, %v1054
      %v1074 = vadd.f32 %v990, %v1056
      %v1075 = vadd.f32 %v991, %v1058
      %v1076 = vadd.f32 %v992, %v1060
      %s1077 = scalar_lea.vmem %s1, 35
      %v1078 = vld [vmem:[%s1077] ss:$8 sm:$0xf]
      %v1080 = vperm.slane %v1078, 0
      %v1081 = vperm.slane %v1078, 1
      %v1082 = vperm.slane %v1078, 2
      %v1083 = vperm.slane %v1078, 3
      %1084 = vrot.lane.b32.xlu0 %v1080, 64
      %v1085 = vpop.permute.xlu0 %1084
      %1086 = vrot.lane.b32.xlu0 %v1081, 64
      %v1087 = vpop.permute.xlu0 %1086
      %1088 = vrot.lane.b32.xlu0 %v1082, 64
      %v1089 = vpop.permute.xlu0 %1088
      %1090 = vrot.lane.b32.xlu0 %v1083, 64
      %v1091 = vpop.permute.xlu0 %1090
      %v1092 = vsel %vm303, %v1085, %v1087
      %v1093 = vsel %vm303, %v1087, %v1089
      %v1094 = vsel %vm303, %v1089, %v1091
      %v1100 = vmul.f32 %v993, %v1085
      %v1101 = vmul.f32 %v994, %v1092
      %v1102 = vmul.f32 %v995, %v1093
      %v1103 = vmul.f32 %v996, %v1094
      %v1104 = vmul.f32 %v997, %v1091
      %v1105 = vmul.f32 %v523, %v1085
      %v1106 = vmul.f32 %v524, %v1092
      %v1107 = vmul.f32 %v525, %v1093
      %v1108 = vmul.f32 %v526, %v1094
      %v1109 = vmul.f32 %v527, %v1091
      %v1110 = vmul.f32 %v999, %v1085
      %v1111 = vmul.f32 %v1000, %v1092
      %v1112 = vmul.f32 %v1001, %v1093
      %v1113 = vmul.f32 %v1002, %v1094
      %v1114 = vmul.f32 %v1003, %v1091
      %v1130 = vrot.slane %v1100, 4
      %v1131 = vrot.slane %v1105, 4
      %v1132 = vsel %vm1040, %v1130, %v1131
      %v1133 = vrot.slane %v1101, 4
      %v1134 = vrot.slane %v1106, 4
      %v1135 = vsel %vm1040, %v1133, %v1134
      %v1136 = vrot.slane %v1102, 4
      %v1137 = vrot.slane %v1107, 4
      %v1138 = vsel %vm1040, %v1136, %v1137
      %v1139 = vrot.slane %v1103, 4
      %v1140 = vrot.slane %v1108, 4
      %v1141 = vsel %vm1040, %v1139, %v1140
      %v1142 = vrot.slane %v1104, 4
      %v1143 = vrot.slane %v1109, 4
      %v1144 = vsel %vm1040, %v1142, %v1143
      %v1145 = vrot.slane %v1110, 4
      %v1146 = vsel %vm1040, %v1131, %v1145
      %v1147 = vrot.slane %v1111, 4
      %v1148 = vsel %vm1040, %v1134, %v1147
      %v1149 = vrot.slane %v1112, 4
      %v1150 = vsel %vm1040, %v1137, %v1149
      %v1151 = vrot.slane %v1113, 4
      %v1152 = vsel %vm1040, %v1140, %v1151
      %v1153 = vrot.slane %v1114, 4
      %v1154 = vsel %vm1040, %v1143, %v1153
      %1155 = vrot.lane.b32.xlu0 %v1132, 64
      %v1156 = vpop.permute.xlu0 %1155
      %1157 = vrot.lane.b32.xlu0 %v1135, 64
      %v1158 = vpop.permute.xlu0 %1157
      %1159 = vrot.lane.b32.xlu0 %v1138, 64
      %v1160 = vpop.permute.xlu0 %1159
      %1161 = vrot.lane.b32.xlu0 %v1141, 64
      %v1162 = vpop.permute.xlu0 %1161
      %1163 = vrot.lane.b32.xlu0 %v1144, 64
      %v1164 = vpop.permute.xlu0 %1163
      %1165 = vrot.lane.b32.xlu0 %v1146, 64
      %v1166 = vpop.permute.xlu0 %1165
      %1167 = vrot.lane.b32.xlu0 %v1148, 64
      %v1168 = vpop.permute.xlu0 %1167
      %1169 = vrot.lane.b32.xlu0 %v1150, 64
      %v1170 = vpop.permute.xlu0 %1169
      %1171 = vrot.lane.b32.xlu0 %v1152, 64
      %v1172 = vpop.permute.xlu0 %1171
      %1173 = vrot.lane.b32.xlu0 %v1154, 64
      %v1174 = vpop.permute.xlu0 %1173
      %v1175 = vsel %vm303, %v1156, %v1158
      %v1176 = vsel %vm303, %v1158, %v1160
      %v1177 = vsel %vm303, %v1160, %v1162
      %v1178 = vsel %vm303, %v1162, %v1164
      %v1179 = vsel %vm303, %v1166, %v1168
      %v1180 = vsel %vm303, %v1168, %v1170
      %v1181 = vsel %vm303, %v1170, %v1172
      %v1182 = vsel %vm303, %v1172, %v1174
      %v1191 = vadd.f32 %v1069, %v1175
      %v1192 = vadd.f32 %v1070, %v1176
      %v1193 = vadd.f32 %v1071, %v1177
      %v1194 = vadd.f32 %v1072, %v1178
      %v1195 = vadd.f32 %v1073, %v1179
      %v1196 = vadd.f32 %v1074, %v1180
      %v1197 = vadd.f32 %v1075, %v1181
      %v1198 = vadd.f32 %v1076, %v1182
      %s1199 = scalar_lea.vmem %s1, 36
      %v1200 = vld [vmem:[%s1199] ss:$8 sm:$0xf]
      %v1202 = vperm.slane %v1200, 0
      %v1203 = vperm.slane %v1200, 1
      %v1204 = vperm.slane %v1200, 2
      %v1205 = vperm.slane %v1200, 3
      %v1210 = vmul.f32 %v994, %v1202
      %v1211 = vmul.f32 %v995, %v1203
      %v1212 = vmul.f32 %v996, %v1204
      %v1213 = vmul.f32 %v997, %v1205
      %v1214 = vmul.f32 %v524, %v1202
      %v1215 = vmul.f32 %v525, %v1203
      %v1216 = vmul.f32 %v526, %v1204
      %v1217 = vmul.f32 %v527, %v1205
      %v1218 = vmul.f32 %v1000, %v1202
      %v1219 = vmul.f32 %v1001, %v1203
      %v1220 = vmul.f32 %v1002, %v1204
      %v1221 = vmul.f32 %v1003, %v1205
      %v1234 = vrot.slane %v1210, 4
      %v1235 = vrot.slane %v1214, 4
      %v1236 = vsel %vm1040, %v1234, %v1235
      %v1237 = vrot.slane %v1211, 4
      %v1238 = vrot.slane %v1215, 4
      %v1239 = vsel %vm1040, %v1237, %v1238
      %v1240 = vrot.slane %v1212, 4
      %v1241 = vrot.slane %v1216, 4
      %v1242 = vsel %vm1040, %v1240, %v1241
      %v1243 = vrot.slane %v1213, 4
      %v1244 = vrot.slane %v1217, 4
      %v1245 = vsel %vm1040, %v1243, %v1244
      %v1246 = vrot.slane %v1218, 4
      %v1247 = vsel %vm1040, %v1235, %v1246
      %v1248 = vrot.slane %v1219, 4
      %v1249 = vsel %vm1040, %v1238, %v1248
      %v1250 = vrot.slane %v1220, 4
      %v1251 = vsel %vm1040, %v1241, %v1250
      %v1252 = vrot.slane %v1221, 4
      %v1253 = vsel %vm1040, %v1244, %v1252
      %v1262 = vadd.f32 %v1191, %v1236
      %v1263 = vadd.f32 %v1192, %v1239
      %v1264 = vadd.f32 %v1193, %v1242
      %v1265 = vadd.f32 %v1194, %v1245
      %v1266 = vadd.f32 %v1195, %v1247
      %v1267 = vadd.f32 %v1196, %v1249
      %v1268 = vadd.f32 %v1197, %v1251
      %v1269 = vadd.f32 %v1198, %v1253
      %s1270 = scalar_lea.vmem %s1, 37
      %v1271 = vld [vmem:[%s1270] ss:$8 sm:$0xf]
      %v1273 = vperm.slane %v1271, 0
      %v1274 = vperm.slane %v1271, 1
      %v1275 = vperm.slane %v1271, 2
      %v1276 = vperm.slane %v1271, 3
      %1277 = vrot.lane.b32.xlu0 %v1273, 64
      %v1278 = vpop.permute.xlu0 %1277
      %1279 = vrot.lane.b32.xlu0 %v1274, 64
      %v1280 = vpop.permute.xlu0 %1279
      %1281 = vrot.lane.b32.xlu0 %v1275, 64
      %v1282 = vpop.permute.xlu0 %1281
      %1283 = vrot.lane.b32.xlu0 %v1276, 64
      %v1284 = vpop.permute.xlu0 %1283
      %v1285 = vsel %vm303, %v1278, %v1280
      %v1286 = vsel %vm303, %v1280, %v1282
      %v1287 = vsel %vm303, %v1282, %v1284
      %v1293 = vmul.f32 %v994, %v1278
      %v1294 = vmul.f32 %v995, %v1285
      %v1295 = vmul.f32 %v996, %v1286
      %v1296 = vmul.f32 %v997, %v1287
      %v1297 = vmul.f32 %v998, %v1284
      %v1298 = vmul.f32 %v524, %v1278
      %v1299 = vmul.f32 %v525, %v1285
      %v1300 = vmul.f32 %v526, %v1286
      %v1301 = vmul.f32 %v527, %v1287
      %v1302 = vmul.f32 %v528, %v1284
      %v1303 = vmul.f32 %v1000, %v1278
      %v1304 = vmul.f32 %v1001, %v1285
      %v1305 = vmul.f32 %v1002, %v1286
      %v1306 = vmul.f32 %v1003, %v1287
      %v1307 = vmul.f32 %v1004, %v1284
      %v1323 = vrot.slane %v1293, 4
      %v1324 = vrot.slane %v1298, 4
      %v1325 = vsel %vm1040, %v1323, %v1324
      %v1326 = vrot.slane %v1294, 4
      %v1327 = vrot.slane %v1299, 4
      %v1328 = vsel %vm1040, %v1326, %v1327
      %v1329 = vrot.slane %v1295, 4
      %v1330 = vrot.slane %v1300, 4
      %v1331 = vsel %vm1040, %v1329, %v1330
      %v1332 = vrot.slane %v1296, 4
      %v1333 = vrot.slane %v1301, 4
      %v1334 = vsel %vm1040, %v1332, %v1333
      %v1335 = vrot.slane %v1297, 4
      %v1336 = vrot.slane %v1302, 4
      %v1337 = vsel %vm1040, %v1335, %v1336
      %v1338 = vrot.slane %v1303, 4
      %v1339 = vsel %vm1040, %v1324, %v1338
      %v1340 = vrot.slane %v1304, 4
      %v1341 = vsel %vm1040, %v1327, %v1340
      %v1342 = vrot.slane %v1305, 4
      %v1343 = vsel %vm1040, %v1330, %v1342
      %v1344 = vrot.slane %v1306, 4
      %v1345 = vsel %vm1040, %v1333, %v1344
      %v1346 = vrot.slane %v1307, 4
      %v1347 = vsel %vm1040, %v1336, %v1346
      %1348 = vrot.lane.b32.xlu0 %v1325, 64
      %v1349 = vpop.permute.xlu0 %1348
      %1350 = vrot.lane.b32.xlu0 %v1328, 64
      %v1351 = vpop.permute.xlu0 %1350
      %1352 = vrot.lane.b32.xlu0 %v1331, 64
      %v1353 = vpop.permute.xlu0 %1352
      %1354 = vrot.lane.b32.xlu0 %v1334, 64
      %v1355 = vpop.permute.xlu0 %1354
      %1356 = vrot.lane.b32.xlu0 %v1337, 64
      %v1357 = vpop.permute.xlu0 %1356
      %1358 = vrot.lane.b32.xlu0 %v1339, 64
      %v1359 = vpop.permute.xlu0 %1358
      %1360 = vrot.lane.b32.xlu0 %v1341, 64
      %v1361 = vpop.permute.xlu0 %1360
      %1362 = vrot.lane.b32.xlu0 %v1343, 64
      %v1363 = vpop.permute.xlu0 %1362
      %1364 = vrot.lane.b32.xlu0 %v1345, 64
      %v1365 = vpop.permute.xlu0 %1364
      %1366 = vrot.lane.b32.xlu0 %v1347, 64
      %v1367 = vpop.permute.xlu0 %1366
      %v1368 = vsel %vm303, %v1349, %v1351
      %v1369 = vsel %vm303, %v1351, %v1353
      %v1370 = vsel %vm303, %v1353, %v1355
      %v1371 = vsel %vm303, %v1355, %v1357
      %v1372 = vsel %vm303, %v1359, %v1361
      %v1373 = vsel %vm303, %v1361, %v1363
      %v1374 = vsel %vm303, %v1363, %v1365
      %v1375 = vsel %vm303, %v1365, %v1367
      %v1384 = vadd.f32 %v1262, %v1368
      %v1385 = vadd.f32 %v1263, %v1369
      %v1386 = vadd.f32 %v1264, %v1370
      %v1387 = vadd.f32 %v1265, %v1371
      %v1388 = vadd.f32 %v1266, %v1372
      %v1389 = vadd.f32 %v1267, %v1373
      %v1390 = vadd.f32 %v1268, %v1374
      %v1391 = vadd.f32 %v1269, %v1375
      %s1392 = scalar_lea.vmem %s1, 38
      %v1393 = vld [vmem:[%s1392] ss:$8 sm:$0xf]
      %v1395 = vperm.slane %v1393, 0
      %v1396 = vperm.slane %v1393, 1
      %v1397 = vperm.slane %v1393, 2
      %v1398 = vperm.slane %v1393, 3
      %v1403 = vmul.f32 %v995, %v1395
      %v1404 = vmul.f32 %v996, %v1396
      %v1405 = vmul.f32 %v997, %v1397
      %v1406 = vmul.f32 %v998, %v1398
      %v1407 = vmul.f32 %v525, %v1395
      %v1408 = vmul.f32 %v526, %v1396
      %v1409 = vmul.f32 %v527, %v1397
      %v1410 = vmul.f32 %v528, %v1398
      %v1411 = vmul.f32 %v1001, %v1395
      %v1412 = vmul.f32 %v1002, %v1396
      %v1413 = vmul.f32 %v1003, %v1397
      %v1414 = vmul.f32 %v1004, %v1398
      %v1427 = vrot.slane %v1403, 4
      %v1428 = vrot.slane %v1407, 4
      %v1429 = vsel %vm1040, %v1427, %v1428
      %v1430 = vrot.slane %v1404, 4
      %v1431 = vrot.slane %v1408, 4
      %v1432 = vsel %vm1040, %v1430, %v1431
      %v1433 = vrot.slane %v1405, 4
      %v1434 = vrot.slane %v1409, 4
      %v1435 = vsel %vm1040, %v1433, %v1434
      %v1436 = vrot.slane %v1406, 4
      %v1437 = vrot.slane %v1410, 4
      %v1438 = vsel %vm1040, %v1436, %v1437
      %v1439 = vrot.slane %v1411, 4
      %v1440 = vsel %vm1040, %v1428, %v1439
      %v1441 = vrot.slane %v1412, 4
      %v1442 = vsel %vm1040, %v1431, %v1441
      %v1443 = vrot.slane %v1413, 4
      %v1444 = vsel %vm1040, %v1434, %v1443
      %v1445 = vrot.slane %v1414, 4
      %v1446 = vsel %vm1040, %v1437, %v1445
      %v1455 = vadd.f32 %v1384, %v1429
      %v1456 = vadd.f32 %v1385, %v1432
      %v1457 = vadd.f32 %v1386, %v1435
      %v1458 = vadd.f32 %v1387, %v1438
      %v1459 = vadd.f32 %v1388, %v1440
      %v1460 = vadd.f32 %v1389, %v1442
      %v1461 = vadd.f32 %v1390, %v1444
      %v1462 = vadd.f32 %v1391, %v1446
      %v1463 = vld [vmem:[%s238] sm:$0xc0]
      %v1464 = vld [vmem:[%s238 + $0x8] sm:$0xc0]
      %v1465 = vld [vmem:[%s238 + $0x10] sm:$0xc0]
      %v1466 = vld [vmem:[%s238 + $0x18] sm:$0xc0]
      %v1467 = vld [vmem:[%s238 + $0x20] sm:$0xc0]
      %v1468 = vld [vmem:[%s238 + $0x28] sm:$0xc0]
      %v1469 = vld [vmem:[%s238 + $0x60] sm:$0x3f]
      %v1470 = vld [vmem:[%s238 + $0x68] sm:$0x3f]
      %v1471 = vld [vmem:[%s238 + $0x70] sm:$0x3f]
      %v1472 = vld [vmem:[%s238 + $0x78] sm:$0x3f]
      %v1473 = vld [vmem:[%s238 + $0x80] sm:$0x3f]
      %v1474 = vld [vmem:[%s238 + $0x88] sm:$0x3f]
      %s1475 = scalar_lea.vmem %s1, 39
      %v1476 = vld [vmem:[%s1475] ss:$8 sm:$0xf]
      %v1478 = vperm.slane %v1476, 0
      %v1479 = vperm.slane %v1476, 1
      %v1480 = vperm.slane %v1476, 2
      %v1481 = vperm.slane %v1476, 3
      %v1486 = vmul.f32 %v1463, %v1478
      %v1487 = vmul.f32 %v1464, %v1479
      %v1488 = vmul.f32 %v1465, %v1480
      %v1489 = vmul.f32 %v1466, %v1481
      %v1490 = vmul.f32 %v523, %v1478
      %v1491 = vmul.f32 %v524, %v1479
      %v1492 = vmul.f32 %v525, %v1480
      %v1493 = vmul.f32 %v526, %v1481
      %v1494 = vmul.f32 %v1469, %v1478
      %v1495 = vmul.f32 %v1470, %v1479
      %v1496 = vmul.f32 %v1471, %v1480
      %v1497 = vmul.f32 %v1472, %v1481
      %vm1510 = vcmask 1041408
      %v1511 = vrot.slane %v1486, 6
      %v1512 = vrot.slane %v1490, 6
      %v1513 = vsel %vm1510, %v1511, %v1512
      %v1514 = vrot.slane %v1487, 6
      %v1515 = vrot.slane %v1491, 6
      %v1516 = vsel %vm1510, %v1514, %v1515
      %v1517 = vrot.slane %v1488, 6
      %v1518 = vrot.slane %v1492, 6
      %v1519 = vsel %vm1510, %v1517, %v1518
      %v1520 = vrot.slane %v1489, 6
      %v1521 = vrot.slane %v1493, 6
      %v1522 = vsel %vm1510, %v1520, %v1521
      %v1523 = vrot.slane %v1494, 6
      %v1524 = vsel %vm1510, %v1512, %v1523
      %v1525 = vrot.slane %v1495, 6
      %v1526 = vsel %vm1510, %v1515, %v1525
      %v1527 = vrot.slane %v1496, 6
      %v1528 = vsel %vm1510, %v1518, %v1527
      %v1529 = vrot.slane %v1497, 6
      %v1530 = vsel %vm1510, %v1521, %v1529
      %v1539 = vadd.f32 %v1455, %v1513
      %v1540 = vadd.f32 %v1456, %v1516
      %v1541 = vadd.f32 %v1457, %v1519
      %v1542 = vadd.f32 %v1458, %v1522
      %v1543 = vadd.f32 %v1459, %v1524
      %v1544 = vadd.f32 %v1460, %v1526
      %v1545 = vadd.f32 %v1461, %v1528
      %v1546 = vadd.f32 %v1462, %v1530
      %s1547 = scalar_lea.vmem %s1, 64
      %v1548 = vld [vmem:[%s1547] ss:$8 sm:$0xf]
      %v1550 = vperm.slane %v1548, 0
      %v1551 = vperm.slane %v1548, 1
      %v1552 = vperm.slane %v1548, 2
      %v1553 = vperm.slane %v1548, 3
      %1554 = vrot.lane.b32.xlu0 %v1550, 64
      %v1555 = vpop.permute.xlu0 %1554
      %1556 = vrot.lane.b32.xlu0 %v1551, 64
      %v1557 = vpop.permute.xlu0 %1556
      %1558 = vrot.lane.b32.xlu0 %v1552, 64
      %v1559 = vpop.permute.xlu0 %1558
      %1560 = vrot.lane.b32.xlu0 %v1553, 64
      %v1561 = vpop.permute.xlu0 %1560
      %v1562 = vsel %vm303, %v1555, %v1557
      %v1563 = vsel %vm303, %v1557, %v1559
      %v1564 = vsel %vm303, %v1559, %v1561
      %v1570 = vmul.f32 %v1463, %v1555
      %v1571 = vmul.f32 %v1464, %v1562
      %v1572 = vmul.f32 %v1465, %v1563
      %v1573 = vmul.f32 %v1466, %v1564
      %v1574 = vmul.f32 %v1467, %v1561
      %v1575 = vmul.f32 %v523, %v1555
      %v1576 = vmul.f32 %v524, %v1562
      %v1577 = vmul.f32 %v525, %v1563
      %v1578 = vmul.f32 %v526, %v1564
      %v1579 = vmul.f32 %v527, %v1561
      %v1580 = vmul.f32 %v1469, %v1555
      %v1581 = vmul.f32 %v1470, %v1562
      %v1582 = vmul.f32 %v1471, %v1563
      %v1583 = vmul.f32 %v1472, %v1564
      %v1584 = vmul.f32 %v1473, %v1561
      %v1600 = vrot.slane %v1570, 6
      %v1601 = vrot.slane %v1575, 6
      %v1602 = vsel %vm1510, %v1600, %v1601
      %v1603 = vrot.slane %v1571, 6
      %v1604 = vrot.slane %v1576, 6
      %v1605 = vsel %vm1510, %v1603, %v1604
      %v1606 = vrot.slane %v1572, 6
      %v1607 = vrot.slane %v1577, 6
      %v1608 = vsel %vm1510, %v1606, %v1607
      %v1609 = vrot.slane %v1573, 6
      %v1610 = vrot.slane %v1578, 6
      %v1611 = vsel %vm1510, %v1609, %v1610
      %v1612 = vrot.slane %v1574, 6
      %v1613 = vrot.slane %v1579, 6
      %v1614 = vsel %vm1510, %v1612, %v1613
      %v1615 = vrot.slane %v1580, 6
      %v1616 = vsel %vm1510, %v1601, %v1615
      %v1617 = vrot.slane %v1581, 6
      %v1618 = vsel %vm1510, %v1604, %v1617
      %v1619 = vrot.slane %v1582, 6
      %v1620 = vsel %vm1510, %v1607, %v1619
      %v1621 = vrot.slane %v1583, 6
      %v1622 = vsel %vm1510, %v1610, %v1621
      %v1623 = vrot.slane %v1584, 6
      %v1624 = vsel %vm1510, %v1613, %v1623
      %1625 = vrot.lane.b32.xlu0 %v1602, 64
      %v1626 = vpop.permute.xlu0 %1625
      %1627 = vrot.lane.b32.xlu0 %v1605, 64
      %v1628 = vpop.permute.xlu0 %1627
      %1629 = vrot.lane.b32.xlu0 %v1608, 64
      %v1630 = vpop.permute.xlu0 %1629
      %1631 = vrot.lane.b32.xlu0 %v1611, 64
      %v1632 = vpop.permute.xlu0 %1631
      %1633 = vrot.lane.b32.xlu0 %v1614, 64
      %v1634 = vpop.permute.xlu0 %1633
      %1635 = vrot.lane.b32.xlu0 %v1616, 64
      %v1636 = vpop.permute.xlu0 %1635
      %1637 = vrot.lane.b32.xlu0 %v1618, 64
      %v1638 = vpop.permute.xlu0 %1637
      %1639 = vrot.lane.b32.xlu0 %v1620, 64
      %v1640 = vpop.permute.xlu0 %1639
      %1641 = vrot.lane.b32.xlu0 %v1622, 64
      %v1642 = vpop.permute.xlu0 %1641
      %1643 = vrot.lane.b32.xlu0 %v1624, 64
      %v1644 = vpop.permute.xlu0 %1643
      %v1645 = vsel %vm303, %v1626, %v1628
      %v1646 = vsel %vm303, %v1628, %v1630
      %v1647 = vsel %vm303, %v1630, %v1632
      %v1648 = vsel %vm303, %v1632, %v1634
      %v1649 = vsel %vm303, %v1636, %v1638
      %v1650 = vsel %vm303, %v1638, %v1640
      %v1651 = vsel %vm303, %v1640, %v1642
      %v1652 = vsel %vm303, %v1642, %v1644
      %v1661 = vadd.f32 %v1539, %v1645
      %v1662 = vadd.f32 %v1540, %v1646
      %v1663 = vadd.f32 %v1541, %v1647
      %v1664 = vadd.f32 %v1542, %v1648
      %v1665 = vadd.f32 %v1543, %v1649
      %v1666 = vadd.f32 %v1544, %v1650
      %v1667 = vadd.f32 %v1545, %v1651
      %v1668 = vadd.f32 %v1546, %v1652
      %s1669 = scalar_lea.vmem %s1, 65
      %v1670 = vld [vmem:[%s1669] ss:$8 sm:$0xf]
      %v1672 = vperm.slane %v1670, 0
      %v1673 = vperm.slane %v1670, 1
      %v1674 = vperm.slane %v1670, 2
      %v1675 = vperm.slane %v1670, 3
      %v1680 = vmul.f32 %v1464, %v1672
      %v1681 = vmul.f32 %v1465, %v1673
      %v1682 = vmul.f32 %v1466, %v1674
      %v1683 = vmul.f32 %v1467, %v1675
      %v1684 = vmul.f32 %v524, %v1672
      %v1685 = vmul.f32 %v525, %v1673
      %v1686 = vmul.f32 %v526, %v1674
      %v1687 = vmul.f32 %v527, %v1675
      %v1688 = vmul.f32 %v1470, %v1672
      %v1689 = vmul.f32 %v1471, %v1673
      %v1690 = vmul.f32 %v1472, %v1674
      %v1691 = vmul.f32 %v1473, %v1675
      %v1704 = vrot.slane %v1680, 6
      %v1705 = vrot.slane %v1684, 6
      %v1706 = vsel %vm1510, %v1704, %v1705
      %v1707 = vrot.slane %v1681, 6
      %v1708 = vrot.slane %v1685, 6
      %v1709 = vsel %vm1510, %v1707, %v1708
      %v1710 = vrot.slane %v1682, 6
      %v1711 = vrot.slane %v1686, 6
      %v1712 = vsel %vm1510, %v1710, %v1711
      %v1713 = vrot.slane %v1683, 6
      %v1714 = vrot.slane %v1687, 6
      %v1715 = vsel %vm1510, %v1713, %v1714
      %v1716 = vrot.slane %v1688, 6
      %v1717 = vsel %vm1510, %v1705, %v1716
      %v1718 = vrot.slane %v1689, 6
      %v1719 = vsel %vm1510, %v1708, %v1718
      %v1720 = vrot.slane %v1690, 6
      %v1721 = vsel %vm1510, %v1711, %v1720
      %v1722 = vrot.slane %v1691, 6
      %v1723 = vsel %vm1510, %v1714, %v1722
      %v1732 = vadd.f32 %v1661, %v1706
      %v1733 = vadd.f32 %v1662, %v1709
      %v1734 = vadd.f32 %v1663, %v1712
      %v1735 = vadd.f32 %v1664, %v1715
      %v1736 = vadd.f32 %v1665, %v1717
      %v1737 = vadd.f32 %v1666, %v1719
      %v1738 = vadd.f32 %v1667, %v1721
      %v1739 = vadd.f32 %v1668, %v1723
      %s1740 = scalar_lea.vmem %s1, 66
      %v1741 = vld [vmem:[%s1740] ss:$8 sm:$0xf]
      %v1743 = vperm.slane %v1741, 0
      %v1744 = vperm.slane %v1741, 1
      %v1745 = vperm.slane %v1741, 2
      %v1746 = vperm.slane %v1741, 3
      %1747 = vrot.lane.b32.xlu0 %v1743, 64
      %v1748 = vpop.permute.xlu0 %1747
      %1749 = vrot.lane.b32.xlu0 %v1744, 64
      %v1750 = vpop.permute.xlu0 %1749
      %1751 = vrot.lane.b32.xlu0 %v1745, 64
      %v1752 = vpop.permute.xlu0 %1751
      %1753 = vrot.lane.b32.xlu0 %v1746, 64
      %v1754 = vpop.permute.xlu0 %1753
      %v1755 = vsel %vm303, %v1748, %v1750
      %v1756 = vsel %vm303, %v1750, %v1752
      %v1757 = vsel %vm303, %v1752, %v1754
      %v1763 = vmul.f32 %v1464, %v1748
      %v1764 = vmul.f32 %v1465, %v1755
      %v1765 = vmul.f32 %v1466, %v1756
      %v1766 = vmul.f32 %v1467, %v1757
      %v1767 = vmul.f32 %v1468, %v1754
      %v1768 = vmul.f32 %v524, %v1748
      %v1769 = vmul.f32 %v525, %v1755
      %v1770 = vmul.f32 %v526, %v1756
      %v1771 = vmul.f32 %v527, %v1757
      %v1772 = vmul.f32 %v528, %v1754
      %v1773 = vmul.f32 %v1470, %v1748
      %v1774 = vmul.f32 %v1471, %v1755
      %v1775 = vmul.f32 %v1472, %v1756
      %v1776 = vmul.f32 %v1473, %v1757
      %v1777 = vmul.f32 %v1474, %v1754
      %v1793 = vrot.slane %v1763, 6
      %v1794 = vrot.slane %v1768, 6
      %v1795 = vsel %vm1510, %v1793, %v1794
      %v1796 = vrot.slane %v1764, 6
      %v1797 = vrot.slane %v1769, 6
      %v1798 = vsel %vm1510, %v1796, %v1797
      %v1799 = vrot.slane %v1765, 6
      %v1800 = vrot.slane %v1770, 6
      %v1801 = vsel %vm1510, %v1799, %v1800
      %v1802 = vrot.slane %v1766, 6
      %v1803 = vrot.slane %v1771, 6
      %v1804 = vsel %vm1510, %v1802, %v1803
      %v1805 = vrot.slane %v1767, 6
      %v1806 = vrot.slane %v1772, 6
      %v1807 = vsel %vm1510, %v1805, %v1806
      %v1808 = vrot.slane %v1773, 6
      %v1809 = vsel %vm1510, %v1794, %v1808
      %v1810 = vrot.slane %v1774, 6
      %v1811 = vsel %vm1510, %v1797, %v1810
      %v1812 = vrot.slane %v1775, 6
      %v1813 = vsel %vm1510, %v1800, %v1812
      %v1814 = vrot.slane %v1776, 6
      %v1815 = vsel %vm1510, %v1803, %v1814
      %v1816 = vrot.slane %v1777, 6
      %v1817 = vsel %vm1510, %v1806, %v1816
      %1818 = vrot.lane.b32.xlu0 %v1795, 64
      %v1819 = vpop.permute.xlu0 %1818
      %1820 = vrot.lane.b32.xlu0 %v1798, 64
      %v1821 = vpop.permute.xlu0 %1820
      %1822 = vrot.lane.b32.xlu0 %v1801, 64
      %v1823 = vpop.permute.xlu0 %1822
      %1824 = vrot.lane.b32.xlu0 %v1804, 64
      %v1825 = vpop.permute.xlu0 %1824
      %1826 = vrot.lane.b32.xlu0 %v1807, 64
      %v1827 = vpop.permute.xlu0 %1826
      %1828 = vrot.lane.b32.xlu0 %v1809, 64
      %v1829 = vpop.permute.xlu0 %1828
      %1830 = vrot.lane.b32.xlu0 %v1811, 64
      %v1831 = vpop.permute.xlu0 %1830
      %1832 = vrot.lane.b32.xlu0 %v1813, 64
      %v1833 = vpop.permute.xlu0 %1832
      %1834 = vrot.lane.b32.xlu0 %v1815, 64
      %v1835 = vpop.permute.xlu0 %1834
      %1836 = vrot.lane.b32.xlu0 %v1817, 64
      %v1837 = vpop.permute.xlu0 %1836
      %v1838 = vsel %vm303, %v1819, %v1821
      %v1839 = vsel %vm303, %v1821, %v1823
      %v1840 = vsel %vm303, %v1823, %v1825
      %v1841 = vsel %vm303, %v1825, %v1827
      %v1842 = vsel %vm303, %v1829, %v1831
      %v1843 = vsel %vm303, %v1831, %v1833
      %v1844 = vsel %vm303, %v1833, %v1835
      %v1845 = vsel %vm303, %v1835, %v1837
      %v1854 = vadd.f32 %v1732, %v1838
      %v1855 = vadd.f32 %v1733, %v1839
      %v1856 = vadd.f32 %v1734, %v1840
      %v1857 = vadd.f32 %v1735, %v1841
      %v1858 = vadd.f32 %v1736, %v1842
      %v1859 = vadd.f32 %v1737, %v1843
      %v1860 = vadd.f32 %v1738, %v1844
      %v1861 = vadd.f32 %v1739, %v1845
      %s1862 = scalar_lea.vmem %s1, 67
      %v1863 = vld [vmem:[%s1862] ss:$8 sm:$0xf]
      %v1865 = vperm.slane %v1863, 0
      %v1866 = vperm.slane %v1863, 1
      %v1867 = vperm.slane %v1863, 2
      %v1868 = vperm.slane %v1863, 3
      %v1873 = vmul.f32 %v1465, %v1865
      %v1874 = vmul.f32 %v1466, %v1866
      %v1875 = vmul.f32 %v1467, %v1867
      %v1876 = vmul.f32 %v1468, %v1868
      %v1877 = vmul.f32 %v525, %v1865
      %v1878 = vmul.f32 %v526, %v1866
      %v1879 = vmul.f32 %v527, %v1867
      %v1880 = vmul.f32 %v528, %v1868
      %v1881 = vmul.f32 %v1471, %v1865
      %v1882 = vmul.f32 %v1472, %v1866
      %v1883 = vmul.f32 %v1473, %v1867
      %v1884 = vmul.f32 %v1474, %v1868
      %v1897 = vrot.slane %v1873, 6
      %v1898 = vrot.slane %v1877, 6
      %v1899 = vsel %vm1510, %v1897, %v1898
      %v1900 = vrot.slane %v1874, 6
      %v1901 = vrot.slane %v1878, 6
      %v1902 = vsel %vm1510, %v1900, %v1901
      %v1903 = vrot.slane %v1875, 6
      %v1904 = vrot.slane %v1879, 6
      %v1905 = vsel %vm1510, %v1903, %v1904
      %v1906 = vrot.slane %v1876, 6
      %v1907 = vrot.slane %v1880, 6
      %v1908 = vsel %vm1510, %v1906, %v1907
      %v1909 = vrot.slane %v1881, 6
      %v1910 = vsel %vm1510, %v1898, %v1909
      %v1911 = vrot.slane %v1882, 6
      %v1912 = vsel %vm1510, %v1901, %v1911
      %v1913 = vrot.slane %v1883, 6
      %v1914 = vsel %vm1510, %v1904, %v1913
      %v1915 = vrot.slane %v1884, 6
      %v1916 = vsel %vm1510, %v1907, %v1915
      %v1925 = vadd.f32 %v1854, %v1899
      %v1926 = vadd.f32 %v1855, %v1902
      %v1927 = vadd.f32 %v1856, %v1905
      %v1928 = vadd.f32 %v1857, %v1908
      %v1929 = vadd.f32 %v1858, %v1910
      %v1930 = vadd.f32 %v1859, %v1912
      %v1931 = vadd.f32 %v1860, %v1914
      %v1932 = vadd.f32 %v1861, %v1916
      %v1933 = vld [vmem:[%s238 + $0x60] sm:$0xff]
      %v1934 = vld [vmem:[%s238 + $0x68] sm:$0xff]
      %v1935 = vld [vmem:[%s238 + $0x70] sm:$0xff]
      %v1936 = vld [vmem:[%s238 + $0x78] sm:$0xff]
      %v1937 = vld [vmem:[%s238 + $0x80] sm:$0xff]
      %v1938 = vld [vmem:[%s238 + $0x88] sm:$0xff]
      %s1939 = scalar_lea.vmem %s1, 68
      %v1940 = vld [vmem:[%s1939] ss:$8 sm:$0xf]
      %v1942 = vperm.slane %v1940, 0
      %v1943 = vperm.slane %v1940, 1
      %v1944 = vperm.slane %v1940, 2
      %v1945 = vperm.slane %v1940, 3
      %v1950 = vmul.f32 %v523, %v1942
      %v1951 = vmul.f32 %v524, %v1943
      %v1952 = vmul.f32 %v525, %v1944
      %v1953 = vmul.f32 %v526, %v1945
      %v1954 = vmul.f32 %v1933, %v1942
      %v1955 = vmul.f32 %v1934, %v1943
      %v1956 = vmul.f32 %v1935, %v1944
      %v1957 = vmul.f32 %v1936, %v1945
      %v1958 = vadd.f32 %v1925, %v1950
      %v1959 = vadd.f32 %v1926, %v1951
      %v1960 = vadd.f32 %v1927, %v1952
      %v1961 = vadd.f32 %v1928, %v1953
      %v1962 = vadd.f32 %v1929, %v1954
      %v1963 = vadd.f32 %v1930, %v1955
      %v1964 = vadd.f32 %v1931, %v1956
      %v1965 = vadd.f32 %v1932, %v1957
      %s1966 = scalar_lea.vmem %s1, 69
      %v1967 = vld [vmem:[%s1966] ss:$8 sm:$0xf]
      %v1969 = vperm.slane %v1967, 0
      %v1970 = vperm.slane %v1967, 1
      %v1971 = vperm.slane %v1967, 2
      %v1972 = vperm.slane %v1967, 3
      %1973 = vrot.lane.b32.xlu0 %v1969, 64
      %v1974 = vpop.permute.xlu0 %1973
      %1975 = vrot.lane.b32.xlu0 %v1970, 64
      %v1976 = vpop.permute.xlu0 %1975
      %1977 = vrot.lane.b32.xlu0 %v1971, 64
      %v1978 = vpop.permute.xlu0 %1977
      %1979 = vrot.lane.b32.xlu0 %v1972, 64
      %v1980 = vpop.permute.xlu0 %1979
      %v1981 = vsel %vm303, %v1974, %v1976
      %v1982 = vsel %vm303, %v1976, %v1978
      %v1983 = vsel %vm303, %v1978, %v1980
      %v1989 = vmul.f32 %v523, %v1974
      %v1990 = vmul.f32 %v524, %v1981
      %v1991 = vmul.f32 %v525, %v1982
      %v1992 = vmul.f32 %v526, %v1983
      %v1993 = vmul.f32 %v527, %v1980
      %v1994 = vmul.f32 %v1933, %v1974
      %v1995 = vmul.f32 %v1934, %v1981
      %v1996 = vmul.f32 %v1935, %v1982
      %v1997 = vmul.f32 %v1936, %v1983
      %v1998 = vmul.f32 %v1937, %v1980
      %2009 = vrot.lane.b32.xlu0 %v1989, 64
      %v2010 = vpop.permute.xlu0 %2009
      %2011 = vrot.lane.b32.xlu0 %v1990, 64
      %v2012 = vpop.permute.xlu0 %2011
      %2013 = vrot.lane.b32.xlu0 %v1991, 64
      %v2014 = vpop.permute.xlu0 %2013
      %2015 = vrot.lane.b32.xlu0 %v1992, 64
      %v2016 = vpop.permute.xlu0 %2015
      %2017 = vrot.lane.b32.xlu0 %v1993, 64
      %v2018 = vpop.permute.xlu0 %2017
      %2019 = vrot.lane.b32.xlu0 %v1994, 64
      %v2020 = vpop.permute.xlu0 %2019
      %2021 = vrot.lane.b32.xlu0 %v1995, 64
      %v2022 = vpop.permute.xlu0 %2021
      %2023 = vrot.lane.b32.xlu0 %v1996, 64
      %v2024 = vpop.permute.xlu0 %2023
      %2025 = vrot.lane.b32.xlu0 %v1997, 64
      %v2026 = vpop.permute.xlu0 %2025
      %2027 = vrot.lane.b32.xlu0 %v1998, 64
      %v2028 = vpop.permute.xlu0 %2027
      %v2029 = vsel %vm303, %v2010, %v2012
      %v2030 = vsel %vm303, %v2012, %v2014
      %v2031 = vsel %vm303, %v2014, %v2016
      %v2032 = vsel %vm303, %v2016, %v2018
      %v2033 = vsel %vm303, %v2020, %v2022
      %v2034 = vsel %vm303, %v2022, %v2024
      %v2035 = vsel %vm303, %v2024, %v2026
      %v2036 = vsel %vm303, %v2026, %v2028
      %v2045 = vadd.f32 %v1958, %v2029
      %v2046 = vadd.f32 %v1959, %v2030
      %v2047 = vadd.f32 %v1960, %v2031
      %v2048 = vadd.f32 %v1961, %v2032
      %v2049 = vadd.f32 %v1962, %v2033
      %v2050 = vadd.f32 %v1963, %v2034
      %v2051 = vadd.f32 %v1964, %v2035
      %v2052 = vadd.f32 %v1965, %v2036
      %s2053 = scalar_lea.vmem %s1, 70
      %v2054 = vld [vmem:[%s2053] ss:$8 sm:$0xf]
      %v2056 = vperm.slane %v2054, 0
      %v2057 = vperm.slane %v2054, 1
      %v2058 = vperm.slane %v2054, 2
      %v2059 = vperm.slane %v2054, 3
      %v2064 = vmul.f32 %v524, %v2056
      %v2065 = vmul.f32 %v525, %v2057
      %v2066 = vmul.f32 %v526, %v2058
      %v2067 = vmul.f32 %v527, %v2059
      %v2068 = vmul.f32 %v1934, %v2056
      %v2069 = vmul.f32 %v1935, %v2057
      %v2070 = vmul.f32 %v1936, %v2058
      %v2071 = vmul.f32 %v1937, %v2059
      %v2072 = vadd.f32 %v2045, %v2064
      %v2073 = vadd.f32 %v2046, %v2065
      %v2074 = vadd.f32 %v2047, %v2066
      %v2075 = vadd.f32 %v2048, %v2067
      %v2076 = vadd.f32 %v2049, %v2068
      %v2077 = vadd.f32 %v2050, %v2069
      %v2078 = vadd.f32 %v2051, %v2070
      %v2079 = vadd.f32 %v2052, %v2071
      %s2080 = scalar_lea.vmem %s1, 71
      %v2081 = vld [vmem:[%s2080] ss:$8 sm:$0xf]
      %v2083 = vperm.slane %v2081, 0
      %v2084 = vperm.slane %v2081, 1
      %v2085 = vperm.slane %v2081, 2
      %v2086 = vperm.slane %v2081, 3
      %2087 = vrot.lane.b32.xlu0 %v2083, 64
      %v2088 = vpop.permute.xlu0 %2087
      %2089 = vrot.lane.b32.xlu0 %v2084, 64
      %v2090 = vpop.permute.xlu0 %2089
      %2091 = vrot.lane.b32.xlu0 %v2085, 64
      %v2092 = vpop.permute.xlu0 %2091
      %2093 = vrot.lane.b32.xlu0 %v2086, 64
      %v2094 = vpop.permute.xlu0 %2093
      %v2095 = vsel %vm303, %v2088, %v2090
      %v2096 = vsel %vm303, %v2090, %v2092
      %v2097 = vsel %vm303, %v2092, %v2094
      %v2103 = vmul.f32 %v524, %v2088
      %v2104 = vmul.f32 %v525, %v2095
      %v2105 = vmul.f32 %v526, %v2096
      %v2106 = vmul.f32 %v527, %v2097
      %v2107 = vmul.f32 %v528, %v2094
      %v2108 = vmul.f32 %v1934, %v2088
      %v2109 = vmul.f32 %v1935, %v2095
      %v2110 = vmul.f32 %v1936, %v2096
      %v2111 = vmul.f32 %v1937, %v2097
      %v2112 = vmul.f32 %v1938, %v2094
      %2123 = vrot.lane.b32.xlu0 %v2103, 64
      %v2124 = vpop.permute.xlu0 %2123
      %2125 = vrot.lane.b32.xlu0 %v2104, 64
      %v2126 = vpop.permute.xlu0 %2125
      %2127 = vrot.lane.b32.xlu0 %v2105, 64
      %v2128 = vpop.permute.xlu0 %2127
      %2129 = vrot.lane.b32.xlu0 %v2106, 64
      %v2130 = vpop.permute.xlu0 %2129
      %2131 = vrot.lane.b32.xlu0 %v2107, 64
      %v2132 = vpop.permute.xlu0 %2131
      %2133 = vrot.lane.b32.xlu0 %v2108, 64
      %v2134 = vpop.permute.xlu0 %2133
      %2135 = vrot.lane.b32.xlu0 %v2109, 64
      %v2136 = vpop.permute.xlu0 %2135
      %2137 = vrot.lane.b32.xlu0 %v2110, 64
      %v2138 = vpop.permute.xlu0 %2137
      %2139 = vrot.lane.b32.xlu0 %v2111, 64
      %v2140 = vpop.permute.xlu0 %2139
      %2141 = vrot.lane.b32.xlu0 %v2112, 64
      %v2142 = vpop.permute.xlu0 %2141
      %v2143 = vsel %vm303, %v2124, %v2126
      %v2144 = vsel %vm303, %v2126, %v2128
      %v2145 = vsel %vm303, %v2128, %v2130
      %v2146 = vsel %vm303, %v2130, %v2132
      %v2147 = vsel %vm303, %v2134, %v2136
      %v2148 = vsel %vm303, %v2136, %v2138
      %v2149 = vsel %vm303, %v2138, %v2140
      %v2150 = vsel %vm303, %v2140, %v2142
      %v2159 = vadd.f32 %v2072, %v2143
      %v2160 = vadd.f32 %v2073, %v2144
      %v2161 = vadd.f32 %v2074, %v2145
      %v2162 = vadd.f32 %v2075, %v2146
      %v2163 = vadd.f32 %v2076, %v2147
      %v2164 = vadd.f32 %v2077, %v2148
      %v2165 = vadd.f32 %v2078, %v2149
      %v2166 = vadd.f32 %v2079, %v2150
      %s2167 = scalar_lea.vmem %s1, 96
      %v2168 = vld [vmem:[%s2167] ss:$8 sm:$0xf]
      %v2170 = vperm.slane %v2168, 0
      %v2171 = vperm.slane %v2168, 1
      %v2172 = vperm.slane %v2168, 2
      %v2173 = vperm.slane %v2168, 3
      %v2178 = vmul.f32 %v525, %v2170
      %v2179 = vmul.f32 %v526, %v2171
      %v2180 = vmul.f32 %v527, %v2172
      %v2181 = vmul.f32 %v528, %v2173
      %v2182 = vmul.f32 %v1935, %v2170
      %v2183 = vmul.f32 %v1936, %v2171
      %v2184 = vmul.f32 %v1937, %v2172
      %v2185 = vmul.f32 %v1938, %v2173
      %v2186 = vadd.f32 %v2159, %v2178
      %v2187 = vadd.f32 %v2160, %v2179
      %v2188 = vadd.f32 %v2161, %v2180
      %v2189 = vadd.f32 %v2162, %v2181
      %v2190 = vadd.f32 %v2163, %v2182
      %v2191 = vadd.f32 %v2164, %v2183
      %v2192 = vadd.f32 %v2165, %v2184
      %v2193 = vadd.f32 %v2166, %v2185
      %v2194 = vld [vmem:[%s2] sm:$0xf]
      %v2196 = vperm.slane %v2194, 0
      %v2197 = vperm.slane %v2194, 1
      %v2198 = vperm.slane %v2194, 2
      %v2199 = vperm.slane %v2194, 3
      %v2204 = vadd.f32 %v2186, %v2196
      %v2205 = vadd.f32 %v2187, %v2197
      %v2206 = vadd.f32 %v2188, %v2198
      %v2207 = vadd.f32 %v2189, %v2199
      %v2208 = vadd.f32 %v2190, %v2196
      %v2209 = vadd.f32 %v2191, %v2197
      %v2210 = vadd.f32 %v2192, %v2198
      %v2211 = vadd.f32 %v2193, %v2199
      %v2212 = vmax.f32 %v2204, 0.0
      %v2213 = vmax.f32 %v2205, 0.0
      %v2214 = vmax.f32 %v2206, 0.0
      %v2215 = vmax.f32 %v2207, 0.0
      %v2216 = vmax.f32 %v2208, 0.0
      %v2217 = vmax.f32 %v2209, 0.0
      %v2218 = vmax.f32 %v2210, 0.0
      %v2219 = vmax.f32 %v2211, 0.0
      %v2220 = vld [vmem:[%s238 + $0x8] sm:$0xf0]
      %v2221 = vld [vmem:[%s238 + $0x10] sm:$0xf0]
      %v2222 = vld [vmem:[%s238 + $0x18] sm:$0xf0]
      %v2223 = vld [vmem:[%s238 + $0x20] sm:$0xf0]
      %v2224 = vld [vmem:[%s238 + $0x68] sm:$0xf]
      %v2225 = vld [vmem:[%s238 + $0x70] sm:$0xf]
      %v2226 = vld [vmem:[%s238 + $0x78] sm:$0xf]
      %v2227 = vld [vmem:[%s238 + $0x80] sm:$0xf]
      %v2228 = vpack.c.bf16 %v2216, %v2212
      %v2229 = vpack.c.bf16 %v2217, %v2213
      %v2230 = vpack.c.bf16 %v2218, %v2214
      %v2231 = vpack.c.bf16 %v2219, %v2215
      %v2232 = vld [vmem:[%s3] sm:$0xff]
      %v2233 = vld [vmem:[%s3 + $0x8] sm:$0xff]
      %v2234 = vld [vmem:[%s3 + $0x10] sm:$0xff]
      %v2235 = vld [vmem:[%s3 + $0x18] sm:$0xff]
      %v2236 = vld [vmem:[%s3 + $0x20] sm:$0xff]
      %v2237 = vld [vmem:[%s3 + $0x28] sm:$0xff]
      %v2238 = vld [vmem:[%s3 + $0x30] sm:$0xff]
      %v2239 = vld [vmem:[%s3 + $0x38] sm:$0xff]
      %v2240 = vld [vmem:[%s3 + $0x40] sm:$0xff]
      %v2241 = vld [vmem:[%s3 + $0x48] sm:$0xff]
      %v2242 = vld [vmem:[%s3 + $0x50] sm:$0xff]
      %v2243 = vld [vmem:[%s3 + $0x58] sm:$0xff]
      %v2244 = vld [vmem:[%s3 + $0x60] sm:$0xff]
      %v2245 = vld [vmem:[%s3 + $0x68] sm:$0xff]
      %v2246 = vld [vmem:[%s3 + $0x70] sm:$0xff]
      %v2247 = vld [vmem:[%s3 + $0x78] sm:$0xff]
      %v2248 = vld [vmem:[%s3 + $0x80] sm:$0xff]
      %v2249 = vld [vmem:[%s3 + $0x88] sm:$0xff]
      %v2250 = vld [vmem:[%s3 + $0x90] sm:$0xff]
      %v2251 = vld [vmem:[%s3 + $0x98] sm:$0xff]
      %v2252 = vld [vmem:[%s3 + $0xa0] sm:$0xff]
      %v2253 = vld [vmem:[%s3 + $0xa8] sm:$0xff]
      %v2254 = vld [vmem:[%s3 + $0xb0] sm:$0xff]
      %v2255 = vld [vmem:[%s3 + $0xb8] sm:$0xff]
      %v2256 = vld [vmem:[%s3 + $0xc0] sm:$0xff]
      %v2257 = vld [vmem:[%s3 + $0xc8] sm:$0xff]
      %v2258 = vld [vmem:[%s3 + $0xd0] sm:$0xff]
      %v2259 = vld [vmem:[%s3 + $0xd8] sm:$0xff]
      %v2260 = vld [vmem:[%s3 + $0xe0] sm:$0xff]
      %v2261 = vld [vmem:[%s3 + $0xe8] sm:$0xff]
      %v2262 = vld [vmem:[%s3 + $0xf0] sm:$0xff]
      %v2263 = vld [vmem:[%s3 + $0xf8] sm:$0xff]
      %v2264 = vld [vmem:[%s4] sm:$0x3]
      %v2266 = vperm.slane %v2264, 0
      %v2267 = vperm.slane %v2264, 1
      %v2302 = vunpack.c.l.b16 %v2232
      %v2303 = vunpack.c.h.b16 %v2232
      %v2304 = vunpack.c.l.b16 %v2233
      %v2305 = vunpack.c.h.b16 %v2233
      %v2306 = vunpack.c.l.b16 %v2234
      %v2307 = vunpack.c.h.b16 %v2234
      %v2308 = vunpack.c.l.b16 %v2235
      %v2309 = vunpack.c.h.b16 %v2235
      %v2310 = vunpack.c.l.b16 %v2236
      %v2311 = vunpack.c.h.b16 %v2236
      %v2312 = vunpack.c.l.b16 %v2237
      %v2313 = vunpack.c.h.b16 %v2237
      %v2314 = vunpack.c.l.b16 %v2238
      %v2315 = vunpack.c.h.b16 %v2238
      %v2316 = vunpack.c.l.b16 %v2239
      %v2317 = vunpack.c.h.b16 %v2239
      %v2318 = vunpack.c.l.b16 %v2240
      %v2319 = vunpack.c.h.b16 %v2240
      %v2320 = vunpack.c.l.b16 %v2241
      %v2321 = vunpack.c.h.b16 %v2241
      %v2322 = vunpack.c.l.b16 %v2242
      %v2323 = vunpack.c.h.b16 %v2242
      %v2324 = vunpack.c.l.b16 %v2243
      %v2325 = vunpack.c.h.b16 %v2243
      %v2326 = vunpack.c.l.b16 %v2244
      %v2327 = vunpack.c.h.b16 %v2244
      %v2328 = vunpack.c.l.b16 %v2245
      %v2329 = vunpack.c.h.b16 %v2245
      %v2330 = vunpack.c.l.b16 %v2246
      %v2331 = vunpack.c.h.b16 %v2246
      %v2332 = vunpack.c.l.b16 %v2247
      %v2333 = vunpack.c.h.b16 %v2247
      %v2334 = vunpack.c.l.b16 %v2248
      %v2335 = vunpack.c.h.b16 %v2248
      %v2336 = vunpack.c.l.b16 %v2249
      %v2337 = vunpack.c.h.b16 %v2249
      %v2338 = vunpack.c.l.b16 %v2250
      %v2339 = vunpack.c.h.b16 %v2250
      %v2340 = vunpack.c.l.b16 %v2251
      %v2341 = vunpack.c.h.b16 %v2251
      %v2342 = vunpack.c.l.b16 %v2252
      %v2343 = vunpack.c.h.b16 %v2252
      %v2344 = vunpack.c.l.b16 %v2253
      %v2345 = vunpack.c.h.b16 %v2253
      %v2346 = vunpack.c.l.b16 %v2254
      %v2347 = vunpack.c.h.b16 %v2254
      %v2348 = vunpack.c.l.b16 %v2255
      %v2349 = vunpack.c.h.b16 %v2255
      %v2350 = vunpack.c.l.b16 %v2256
      %v2351 = vunpack.c.h.b16 %v2256
      %v2352 = vunpack.c.l.b16 %v2257
      %v2353 = vunpack.c.h.b16 %v2257
      %v2354 = vunpack.c.l.b16 %v2258
      %v2355 = vunpack.c.h.b16 %v2258
      %v2356 = vunpack.c.l.b16 %v2259
      %v2357 = vunpack.c.h.b16 %v2259
      %v2358 = vunpack.c.l.b16 %v2260
      %v2359 = vunpack.c.h.b16 %v2260
      %v2360 = vunpack.c.l.b16 %v2261
      %v2361 = vunpack.c.h.b16 %v2261
      %v2362 = vunpack.c.l.b16 %v2262
      %v2363 = vunpack.c.h.b16 %v2262
      %v2364 = vunpack.c.l.b16 %v2263
      %v2365 = vunpack.c.h.b16 %v2263
      %v2366 = vpack.c.b16 %v2304, %v2302
      %v2367 = vpack.c.b16 %v2305, %v2303
      %v2368 = vpack.c.b16 %v2308, %v2306
      %v2369 = vpack.c.b16 %v2309, %v2307
      %v2370 = vpack.c.b16 %v2312, %v2310
      %v2371 = vpack.c.b16 %v2313, %v2311
      %v2372 = vpack.c.b16 %v2316, %v2314
      %v2373 = vpack.c.b16 %v2317, %v2315
      %v2374 = vpack.c.b16 %v2320, %v2318
      %v2375 = vpack.c.b16 %v2321, %v2319
      %v2376 = vpack.c.b16 %v2324, %v2322
      %v2377 = vpack.c.b16 %v2325, %v2323
      %v2378 = vpack.c.b16 %v2328, %v2326
      %v2379 = vpack.c.b16 %v2329, %v2327
      %v2380 = vpack.c.b16 %v2332, %v2330
      %v2381 = vpack.c.b16 %v2333, %v2331
      %v2382 = vpack.c.b16 %v2336, %v2334
      %v2383 = vpack.c.b16 %v2337, %v2335
      %v2384 = vpack.c.b16 %v2340, %v2338
      %v2385 = vpack.c.b16 %v2341, %v2339
      %v2386 = vpack.c.b16 %v2344, %v2342
      %v2387 = vpack.c.b16 %v2345, %v2343
      %v2388 = vpack.c.b16 %v2348, %v2346
      %v2389 = vpack.c.b16 %v2349, %v2347
      %v2390 = vpack.c.b16 %v2352, %v2350
      %v2391 = vpack.c.b16 %v2353, %v2351
      %v2392 = vpack.c.b16 %v2356, %v2354
      %v2393 = vpack.c.b16 %v2357, %v2355
      %v2394 = vpack.c.b16 %v2360, %v2358
      %v2395 = vpack.c.b16 %v2361, %v2359
      %v2396 = vpack.c.b16 %v2364, %v2362
      %v2397 = vpack.c.b16 %v2365, %v2363
      %2430 = vmatpush.bf16.msra.mxu0 %v2380
      %2431 = vmatpush.bf16.msra.mxu0 %v2378
      %2432 = vmatpush.bf16.msra.mxu0 %v2376
      %2433 = vmatpush.bf16.msra.mxu0 %v2374
      %2434 = vmatpush.bf16.msra.mxu0 %v2372
      %2435 = vmatpush.bf16.msra.mxu0 %v2370
      %2436 = vmatpush.bf16.msra.mxu0 %v2368
      %2437 = vmatpush.bf16.msra.mxu0 %v2366
      %2438 = vmatmul.bf16.gmra.mxu0 %v2228
      %v2439 = vpop.f32.mrf.mxu0
      %v2440 = vadd.f32 %v2266, %v2439
      %v2441 = vpop.f32.mrf.mxu0
      %v2442 = vadd.f32 %v2266, %v2441
      %2443 = vmatmul.bf16.gmra.mxu0 %v2230
      %v2444 = vpop.f32.mrf.mxu0
      %v2445 = vadd.f32 %v2266, %v2444
      %v2446 = vpop.f32.mrf.mxu0
      %v2447 = vadd.f32 %v2266, %v2446
      %2448 = vdwg.mxu0
      %2449 = vmatpush.bf16.msra.mxu0 %v2396
      %2450 = vmatpush.bf16.msra.mxu0 %v2394
      %2451 = vmatpush.bf16.msra.mxu0 %v2392
      %2452 = vmatpush.bf16.msra.mxu0 %v2390
      %2453 = vmatpush.bf16.msra.mxu0 %v2388
      %2454 = vmatpush.bf16.msra.mxu0 %v2386
      %2455 = vmatpush.bf16.msra.mxu0 %v2384
      %2456 = vmatpush.bf16.msra.mxu0 %v2382
      %2457 = vmatmul.bf16.gmra.mxu0 %v2229
      %v2458 = vpop.f32.mrf.mxu0
      %v2459 = vadd.f32 %v2440, %v2458
      %v2460 = vpop.f32.mrf.mxu0
      %v2461 = vadd.f32 %v2442, %v2460
      %2462 = vmatmul.bf16.gmra.mxu0 %v2231
      %v2463 = vpop.f32.mrf.mxu0
      %v2464 = vadd.f32 %v2445, %v2463
      %v2465 = vpop.f32.mrf.mxu0
      %v2466 = vadd.f32 %v2447, %v2465
      %2467 = vdwg.mxu0
      %2468 = vmatpush.bf16.msra.mxu0 %v2381
      %2469 = vmatpush.bf16.msra.mxu0 %v2379
      %2470 = vmatpush.bf16.msra.mxu0 %v2377
      %2471 = vmatpush.bf16.msra.mxu0 %v2375
      %2472 = vmatpush.bf16.msra.mxu0 %v2373
      %2473 = vmatpush.bf16.msra.mxu0 %v2371
      %2474 = vmatpush.bf16.msra.mxu0 %v2369
      %2475 = vmatpush.bf16.msra.mxu0 %v2367
      %2476 = vmatmul.bf16.gmra.mxu0 %v2228
      %v2477 = vpop.f32.mrf.mxu0
      %v2478 = vadd.f32 %v2267, %v2477
      %v2479 = vpop.f32.mrf.mxu0
      %v2480 = vadd.f32 %v2267, %v2479
      %2481 = vmatmul.bf16.gmra.mxu0 %v2230
      %v2482 = vpop.f32.mrf.mxu0
      %v2483 = vadd.f32 %v2267, %v2482
      %v2484 = vpop.f32.mrf.mxu0
      %v2485 = vadd.f32 %v2267, %v2484
      %2486 = vdwg.mxu0
      %2487 = vmatpush.bf16.msra.mxu0 %v2397
      %2488 = vmatpush.bf16.msra.mxu0 %v2395
      %2489 = vmatpush.bf16.msra.mxu0 %v2393
      %2490 = vmatpush.bf16.msra.mxu0 %v2391
      %2491 = vmatpush.bf16.msra.mxu0 %v2389
      %2492 = vmatpush.bf16.msra.mxu0 %v2387
      %2493 = vmatpush.bf16.msra.mxu0 %v2385
      %2494 = vmatpush.bf16.msra.mxu0 %v2383
      %2495 = vmatmul.bf16.gmra.mxu0 %v2229
      %v2496 = vpop.f32.mrf.mxu0
      %v2497 = vadd.f32 %v2478, %v2496
      %v2498 = vpop.f32.mrf.mxu0
      %v2499 = vadd.f32 %v2480, %v2498
      %2500 = vmatmul.bf16.gmra.mxu0 %v2231
      %v2501 = vpop.f32.mrf.mxu0
      %v2502 = vadd.f32 %v2483, %v2501
      %v2503 = vpop.f32.mrf.mxu0
      %v2504 = vadd.f32 %v2485, %v2503
      %2505 = vdwg.mxu0
      %v2506 = vxor.u32 %v2459, 2147483648
      %v2507 = vxor.u32 %v2497, 2147483648
      %v2508 = vxor.u32 %v2461, 2147483648
      %v2509 = vxor.u32 %v2499, 2147483648
      %v2510 = vxor.u32 %v2464, 2147483648
      %v2511 = vxor.u32 %v2502, 2147483648
      %v2512 = vxor.u32 %v2466, 2147483648
      %v2513 = vxor.u32 %v2504, 2147483648
      %v2514 = vmul.f32 %v2506, 1.442695
      %v2515 = vpow.pop %v2514
      %v2516 = vmul.f32 %v2507, 1.442695
      %v2517 = vpow.pop %v2516
      %v2518 = vmul.f32 %v2508, 1.442695
      %v2519 = vpow.pop %v2518
      %v2520 = vmul.f32 %v2509, 1.442695
      %v2521 = vpow.pop %v2520
      %v2522 = vmul.f32 %v2510, 1.442695
      %v2523 = vpow.pop %v2522
      %v2524 = vmul.f32 %v2511, 1.442695
      %v2525 = vpow.pop %v2524
      %v2526 = vmul.f32 %v2512, 1.442695
      %v2527 = vpow.pop %v2526
      %v2528 = vmul.f32 %v2513, 1.442695
      %v2529 = vpow.pop %v2528
      %v2530 = vadd.f32 %v2515, 1.0
      %v2531 = vadd.f32 %v2517, 1.0
      %v2532 = vadd.f32 %v2519, 1.0
      %v2533 = vadd.f32 %v2521, 1.0
      %v2534 = vadd.f32 %v2523, 1.0
      %v2535 = vadd.f32 %v2525, 1.0
      %v2536 = vadd.f32 %v2527, 1.0
      %v2537 = vadd.f32 %v2529, 1.0
      %v2538 = vrcp.pop %v2530
      %v2539 = vmul.f32 %v2530, %v2538
      %v2540 = vsub.f32 1.0, %v2539
      %v2541 = vmul.f32 %v2538, %v2540
      %v2542 = vadd.f32 %v2538, %v2541
      %vm2543 = vweird.f32 %v2530
      %vm2544 = vweird.f32 %v2538
      %vm2545 = vmor %vm2543, %vm2544
      %v2546 = vsel %vm2545, %v2538, %v2542
      %v2547 = vand.u32 2147483647, %v2530
      %vm2548 = vcmp.eq.f32.partialorder %v2547, 8.507059e+37
      %v2549 = vand.u32 %v2530, 2147483648
      %v2550 = vor.u32 1.1754944e-38, %v2549
      %v2551 = vsel %vm2548, %v2550, %v2546
      %v2552 = vmul.f32 1.0, %v2551
      %v2553 = vrcp.pop %v2531
      %v2554 = vmul.f32 %v2531, %v2553
      %v2555 = vsub.f32 1.0, %v2554
      %v2556 = vmul.f32 %v2553, %v2555
      %v2557 = vadd.f32 %v2553, %v2556
      %vm2558 = vweird.f32 %v2531
      %vm2559 = vweird.f32 %v2553
      %vm2560 = vmor %vm2558, %vm2559
      %v2561 = vsel %vm2560, %v2553, %v2557
      %v2562 = vand.u32 2147483647, %v2531
      %vm2563 = vcmp.eq.f32.partialorder %v2562, 8.507059e+37
      %v2564 = vand.u32 %v2531, 2147483648
      %v2565 = vor.u32 1.1754944e-38, %v2564
      %v2566 = vsel %vm2563, %v2565, %v2561
      %v2567 = vmul.f32 1.0, %v2566
      %v2568 = vrcp.pop %v2532
      %v2569 = vmul.f32 %v2532, %v2568
      %v2570 = vsub.f32 1.0, %v2569
      %v2571 = vmul.f32 %v2568, %v2570
      %v2572 = vadd.f32 %v2568, %v2571
      %vm2573 = vweird.f32 %v2532
      %vm2574 = vweird.f32 %v2568
      %vm2575 = vmor %vm2573, %vm2574
      %v2576 = vsel %vm2575, %v2568, %v2572
      %v2577 = vand.u32 2147483647, %v2532
      %vm2578 = vcmp.eq.f32.partialorder %v2577, 8.507059e+37
      %v2579 = vand.u32 %v2532, 2147483648
      %v2580 = vor.u32 1.1754944e-38, %v2579
      %v2581 = vsel %vm2578, %v2580, %v2576
      %v2582 = vmul.f32 1.0, %v2581
      %v2583 = vrcp.pop %v2533
      %v2584 = vmul.f32 %v2533, %v2583
      %v2585 = vsub.f32 1.0, %v2584
      %v2586 = vmul.f32 %v2583, %v2585
      %v2587 = vadd.f32 %v2583, %v2586
      %vm2588 = vweird.f32 %v2533
      %vm2589 = vweird.f32 %v2583
      %vm2590 = vmor %vm2588, %vm2589
      %v2591 = vsel %vm2590, %v2583, %v2587
      %v2592 = vand.u32 2147483647, %v2533
      %vm2593 = vcmp.eq.f32.partialorder %v2592, 8.507059e+37
      %v2594 = vand.u32 %v2533, 2147483648
      %v2595 = vor.u32 1.1754944e-38, %v2594
      %v2596 = vsel %vm2593, %v2595, %v2591
      %v2597 = vmul.f32 1.0, %v2596
      %v2598 = vrcp.pop %v2534
      %v2599 = vmul.f32 %v2534, %v2598
      %v2600 = vsub.f32 1.0, %v2599
      %v2601 = vmul.f32 %v2598, %v2600
      %v2602 = vadd.f32 %v2598, %v2601
      %vm2603 = vweird.f32 %v2534
      %vm2604 = vweird.f32 %v2598
      %vm2605 = vmor %vm2603, %vm2604
      %v2606 = vsel %vm2605, %v2598, %v2602
      %v2607 = vand.u32 2147483647, %v2534
      %vm2608 = vcmp.eq.f32.partialorder %v2607, 8.507059e+37
      %v2609 = vand.u32 %v2534, 2147483648
      %v2610 = vor.u32 1.1754944e-38, %v2609
      %v2611 = vsel %vm2608, %v2610, %v2606
      %v2612 = vmul.f32 1.0, %v2611
      %v2613 = vrcp.pop %v2535
      %v2614 = vmul.f32 %v2535, %v2613
      %v2615 = vsub.f32 1.0, %v2614
      %v2616 = vmul.f32 %v2613, %v2615
      %v2617 = vadd.f32 %v2613, %v2616
      %vm2618 = vweird.f32 %v2535
      %vm2619 = vweird.f32 %v2613
      %vm2620 = vmor %vm2618, %vm2619
      %v2621 = vsel %vm2620, %v2613, %v2617
      %v2622 = vand.u32 2147483647, %v2535
      %vm2623 = vcmp.eq.f32.partialorder %v2622, 8.507059e+37
      %v2624 = vand.u32 %v2535, 2147483648
      %v2625 = vor.u32 1.1754944e-38, %v2624
      %v2626 = vsel %vm2623, %v2625, %v2621
      %v2627 = vmul.f32 1.0, %v2626
      %v2628 = vrcp.pop %v2536
      %v2629 = vmul.f32 %v2536, %v2628
      %v2630 = vsub.f32 1.0, %v2629
      %v2631 = vmul.f32 %v2628, %v2630
      %v2632 = vadd.f32 %v2628, %v2631
      %vm2633 = vweird.f32 %v2536
      %vm2634 = vweird.f32 %v2628
      %vm2635 = vmor %vm2633, %vm2634
      %v2636 = vsel %vm2635, %v2628, %v2632
      %v2637 = vand.u32 2147483647, %v2536
      %vm2638 = vcmp.eq.f32.partialorder %v2637, 8.507059e+37
      %v2639 = vand.u32 %v2536, 2147483648
      %v2640 = vor.u32 1.1754944e-38, %v2639
      %v2641 = vsel %vm2638, %v2640, %v2636
      %v2642 = vmul.f32 1.0, %v2641
      %v2643 = vrcp.pop %v2537
      %v2644 = vmul.f32 %v2537, %v2643
      %v2645 = vsub.f32 1.0, %v2644
      %v2646 = vmul.f32 %v2643, %v2645
      %v2647 = vadd.f32 %v2643, %v2646
      %vm2648 = vweird.f32 %v2537
      %vm2649 = vweird.f32 %v2643
      %vm2650 = vmor %vm2648, %vm2649
      %v2651 = vsel %vm2650, %v2643, %v2647
      %v2652 = vand.u32 2147483647, %v2537
      %vm2653 = vcmp.eq.f32.partialorder %v2652, 8.507059e+37
      %v2654 = vand.u32 %v2537, 2147483648
      %v2655 = vor.u32 1.1754944e-38, %v2654
      %v2656 = vsel %vm2653, %v2655, %v2651
      %v2657 = vmul.f32 1.0, %v2656
      %v2658 = vxor.u32 %v2552, 2147483648
      %v2659 = vxor.u32 %v2567, 2147483648
      %v2660 = vxor.u32 %v2582, 2147483648
      %v2661 = vxor.u32 %v2597, 2147483648
      %v2662 = vxor.u32 %v2612, 2147483648
      %v2663 = vxor.u32 %v2627, 2147483648
      %v2664 = vxor.u32 %v2642, 2147483648
      %v2665 = vxor.u32 %v2657, 2147483648
      %v2666 = vmul.f32 %v2658, 1.442695
      %v2667 = vpow.pop %v2666
      %v2668 = vmul.f32 %v2659, 1.442695
      %v2669 = vpow.pop %v2668
      %v2670 = vmul.f32 %v2660, 1.442695
      %v2671 = vpow.pop %v2670
      %v2672 = vmul.f32 %v2661, 1.442695
      %v2673 = vpow.pop %v2672
      %v2674 = vmul.f32 %v2662, 1.442695
      %v2675 = vpow.pop %v2674
      %v2676 = vmul.f32 %v2663, 1.442695
      %v2677 = vpow.pop %v2676
      %v2678 = vmul.f32 %v2664, 1.442695
      %v2679 = vpow.pop %v2678
      %v2680 = vmul.f32 %v2665, 1.442695
      %v2681 = vpow.pop %v2680
      %v2682 = vadd.f32 %v2667, 1.0
      %v2683 = vadd.f32 %v2669, 1.0
      %v2684 = vadd.f32 %v2671, 1.0
      %v2685 = vadd.f32 %v2673, 1.0
      %v2686 = vadd.f32 %v2675, 1.0
      %v2687 = vadd.f32 %v2677, 1.0
      %v2688 = vadd.f32 %v2679, 1.0
      %v2689 = vadd.f32 %v2681, 1.0
      %v2690 = vrcp.pop %v2682
      %v2691 = vmul.f32 %v2682, %v2690
      %v2692 = vsub.f32 1.0, %v2691
      %v2693 = vmul.f32 %v2690, %v2692
      %v2694 = vadd.f32 %v2690, %v2693
      %vm2695 = vweird.f32 %v2682
      %vm2696 = vweird.f32 %v2690
      %vm2697 = vmor %vm2695, %vm2696
      %v2698 = vsel %vm2697, %v2690, %v2694
      %v2699 = vand.u32 2147483647, %v2682
      %vm2700 = vcmp.eq.f32.partialorder %v2699, 8.507059e+37
      %v2701 = vand.u32 %v2682, 2147483648
      %v2702 = vor.u32 1.1754944e-38, %v2701
      %v2703 = vsel %vm2700, %v2702, %v2698
      %v2704 = vmul.f32 1.0, %v2703
      %v2705 = vrcp.pop %v2683
      %v2706 = vmul.f32 %v2683, %v2705
      %v2707 = vsub.f32 1.0, %v2706
      %v2708 = vmul.f32 %v2705, %v2707
      %v2709 = vadd.f32 %v2705, %v2708
      %vm2710 = vweird.f32 %v2683
      %vm2711 = vweird.f32 %v2705
      %vm2712 = vmor %vm2710, %vm2711
      %v2713 = vsel %vm2712, %v2705, %v2709
      %v2714 = vand.u32 2147483647, %v2683
      %vm2715 = vcmp.eq.f32.partialorder %v2714, 8.507059e+37
      %v2716 = vand.u32 %v2683, 2147483648
      %v2717 = vor.u32 1.1754944e-38, %v2716
      %v2718 = vsel %vm2715, %v2717, %v2713
      %v2719 = vmul.f32 1.0, %v2718
      %v2720 = vrcp.pop %v2684
      %v2721 = vmul.f32 %v2684, %v2720
      %v2722 = vsub.f32 1.0, %v2721
      %v2723 = vmul.f32 %v2720, %v2722
      %v2724 = vadd.f32 %v2720, %v2723
      %vm2725 = vweird.f32 %v2684
      %vm2726 = vweird.f32 %v2720
      %vm2727 = vmor %vm2725, %vm2726
      %v2728 = vsel %vm2727, %v2720, %v2724
      %v2729 = vand.u32 2147483647, %v2684
      %vm2730 = vcmp.eq.f32.partialorder %v2729, 8.507059e+37
      %v2731 = vand.u32 %v2684, 2147483648
      %v2732 = vor.u32 1.1754944e-38, %v2731
      %v2733 = vsel %vm2730, %v2732, %v2728
      %v2734 = vmul.f32 1.0, %v2733
      %v2735 = vrcp.pop %v2685
      %v2736 = vmul.f32 %v2685, %v2735
      %v2737 = vsub.f32 1.0, %v2736
      %v2738 = vmul.f32 %v2735, %v2737
      %v2739 = vadd.f32 %v2735, %v2738
      %vm2740 = vweird.f32 %v2685
      %vm2741 = vweird.f32 %v2735
      %vm2742 = vmor %vm2740, %vm2741
      %v2743 = vsel %vm2742, %v2735, %v2739
      %v2744 = vand.u32 2147483647, %v2685
      %vm2745 = vcmp.eq.f32.partialorder %v2744, 8.507059e+37
      %v2746 = vand.u32 %v2685, 2147483648
      %v2747 = vor.u32 1.1754944e-38, %v2746
      %v2748 = vsel %vm2745, %v2747, %v2743
      %v2749 = vmul.f32 1.0, %v2748
      %v2750 = vrcp.pop %v2686
      %v2751 = vmul.f32 %v2686, %v2750
      %v2752 = vsub.f32 1.0, %v2751
      %v2753 = vmul.f32 %v2750, %v2752
      %v2754 = vadd.f32 %v2750, %v2753
      %vm2755 = vweird.f32 %v2686
      %vm2756 = vweird.f32 %v2750
      %vm2757 = vmor %vm2755, %vm2756
      %v2758 = vsel %vm2757, %v2750, %v2754
      %v2759 = vand.u32 2147483647, %v2686
      %vm2760 = vcmp.eq.f32.partialorder %v2759, 8.507059e+37
      %v2761 = vand.u32 %v2686, 2147483648
      %v2762 = vor.u32 1.1754944e-38, %v2761
      %v2763 = vsel %vm2760, %v2762, %v2758
      %v2764 = vmul.f32 1.0, %v2763
      %v2765 = vrcp.pop %v2687
      %v2766 = vmul.f32 %v2687, %v2765
      %v2767 = vsub.f32 1.0, %v2766
      %v2768 = vmul.f32 %v2765, %v2767
      %v2769 = vadd.f32 %v2765, %v2768
      %vm2770 = vweird.f32 %v2687
      %vm2771 = vweird.f32 %v2765
      %vm2772 = vmor %vm2770, %vm2771
      %v2773 = vsel %vm2772, %v2765, %v2769
      %v2774 = vand.u32 2147483647, %v2687
      %vm2775 = vcmp.eq.f32.partialorder %v2774, 8.507059e+37
      %v2776 = vand.u32 %v2687, 2147483648
      %v2777 = vor.u32 1.1754944e-38, %v2776
      %v2778 = vsel %vm2775, %v2777, %v2773
      %v2779 = vmul.f32 1.0, %v2778
      %v2780 = vrcp.pop %v2688
      %v2781 = vmul.f32 %v2688, %v2780
      %v2782 = vsub.f32 1.0, %v2781
      %v2783 = vmul.f32 %v2780, %v2782
      %v2784 = vadd.f32 %v2780, %v2783
      %vm2785 = vweird.f32 %v2688
      %vm2786 = vweird.f32 %v2780
      %vm2787 = vmor %vm2785, %vm2786
      %v2788 = vsel %vm2787, %v2780, %v2784
      %v2789 = vand.u32 2147483647, %v2688
      %vm2790 = vcmp.eq.f32.partialorder %v2789, 8.507059e+37
      %v2791 = vand.u32 %v2688, 2147483648
      %v2792 = vor.u32 1.1754944e-38, %v2791
      %v2793 = vsel %vm2790, %v2792, %v2788
      %v2794 = vmul.f32 1.0, %v2793
      %v2795 = vrcp.pop %v2689
      %v2796 = vmul.f32 %v2689, %v2795
      %v2797 = vsub.f32 1.0, %v2796
      %v2798 = vmul.f32 %v2795, %v2797
      %v2799 = vadd.f32 %v2795, %v2798
      %vm2800 = vweird.f32 %v2689
      %vm2801 = vweird.f32 %v2795
      %vm2802 = vmor %vm2800, %vm2801
      %v2803 = vsel %vm2802, %v2795, %v2799
      %v2804 = vand.u32 2147483647, %v2689
      %vm2805 = vcmp.eq.f32.partialorder %v2804, 8.507059e+37
      %v2806 = vand.u32 %v2689, 2147483648
      %v2807 = vor.u32 1.1754944e-38, %v2806
      %v2808 = vsel %vm2805, %v2807, %v2803
      %v2809 = vmul.f32 1.0, %v2808
      %v2818 = vrot.slane %v2704, 4
      %v2819 = vrot.slane %v2719, 4
      %v2820 = vrot.slane %v2764, 4
      %v2821 = vrot.slane %v2779, 4
      %v2822 = vrot.slane %v2734, 4
      %v2823 = vsel %vm1040, %v2818, %v2822
      %v2824 = vrot.slane %v2749, 4
      %v2825 = vsel %vm1040, %v2819, %v2824
      %v2826 = vrot.slane %v2794, 4
      %v2827 = vsel %vm1040, %v2820, %v2826
      %v2828 = vrot.slane %v2809, 4
      %v2829 = vsel %vm1040, %v2821, %v2828
      %v2842 = vmul.f32 %v2220, %v2818
      %v2843 = vmul.f32 %v2221, %v2819
      %v2844 = vmul.f32 %v2222, %v2820
      %v2845 = vmul.f32 %v2223, %v2821
      %v2846 = vmul.f32 %v257, %v2823
      %v2847 = vmul.f32 %v258, %v2825
      %v2848 = vmul.f32 %v259, %v2827
      %v2849 = vmul.f32 %v260, %v2829
      %v2850 = vmul.f32 %v2224, %v2822
      %v2851 = vmul.f32 %v2225, %v2824
      %v2852 = vmul.f32 %v2226, %v2826
      %v2853 = vmul.f32 %v2227, %v2828
      %v2866 = vrot.slane %v2842, 4
      %v2867 = vrot.slane %v2846, 4
      %v2868 = vsel %vm1040, %v2866, %v2867
      %v2869 = vrot.slane %v2843, 4
      %v2870 = vrot.slane %v2847, 4
      %v2871 = vsel %vm1040, %v2869, %v2870
      %v2872 = vrot.slane %v2844, 4
      %v2873 = vrot.slane %v2848, 4
      %v2874 = vsel %vm1040, %v2872, %v2873
      %v2875 = vrot.slane %v2845, 4
      %v2876 = vrot.slane %v2849, 4
      %v2877 = vsel %vm1040, %v2875, %v2876
      %v2878 = vrot.slane %v2850, 4
      %v2879 = vsel %vm1040, %v2867, %v2878
      %v2880 = vrot.slane %v2851, 4
      %v2881 = vsel %vm1040, %v2870, %v2880
      %v2882 = vrot.slane %v2852, 4
      %v2883 = vsel %vm1040, %v2873, %v2882
      %v2884 = vrot.slane %v2853, 4
      %v2885 = vsel %vm1040, %v2876, %v2884
      %2894 = vst [vmem:[%s248] sm:$0xff] %v2868
      %2895 = vst [vmem:[%s248 + $0x8] sm:$0xff] %v2871
      %2896 = vst [vmem:[%s248 + $0x10] sm:$0xff] %v2874
      %2897 = vst [vmem:[%s248 + $0x18] sm:$0xff] %v2877
      %2898 = vst [vmem:[%s248 + $0x20] sm:$0xff] %v2879
      %2899 = vst [vmem:[%s248 + $0x28] sm:$0xff] %v2881
      %2900 = vst [vmem:[%s248 + $0x30] sm:$0xff] %v2883
      %2901 = vst [vmem:[%s248 + $0x38] sm:$0xff] %v2885
      %s2902 = smul.u32 2, %s21
      %p2903 = scmp.lt.s32.totalorder %s20, 1
      %s2904 = scalar_select %p2903, %s20, 1
      %p2905 = scmp.lt.s32.totalorder %s2902, 1
      %s2906 = scalar_select %p2905, %s2902, 1
      %s2907 = smul.addr %s2906, 4
      %s2908 = smul.addr %s2904, 8
      %s2909 = sadd.s32 %s2907, %s2908
      %s2910 = smul.addr %s2909, 8
      %s2911 = scalar_lea.vmem %s5, %s2910
      // Predicated region
      $region41: #{spatial_attention2.1} parent=39 // pred_check
        %p2912 = pneg %p158
      $region42: #{spatial_attention2.1} parent=39 // pred_check_branch
        %2914 = sbr.rel (%p2912) target = $region44
      $region43: #{spatial_attention2.1} parent=39 // pred_region
        %s2915 = smul.u32 2, %s21
      $region44: #{spatial_attention2.1} parent=39 // pred_fallthru
        _
    $region40: #{spatial_attention2.1} parent=5 // pred_fallthru
      _
    %p2916 = scmp.le.s32.totalorder 2, %s11
    // Predicated region
    $region45: #{spatial_attention2.1} parent=5 // pred_check
      %p2917 = pneg %p2916
    $region46: #{spatial_attention2.1} parent=5 // pred_check_branch
      %2919 = sbr.rel (%p2917) target = $region48
    $region47: #{spatial_attention2.1} parent=5 // pred_region
      %s2920 = ssub.s32 %s11, 2
      // Predicated region
      $region49: #{spatial_attention2.1} parent=47 // pred_check
        %p2921 = pneg %p164
      $region50: #{spatial_attention2.1} parent=47 // pred_check_branch
        %2923 = sbr.rel (%p2921) target = $region52
      $region51: #{spatial_attention2.1} parent=47 // pred_region
        %s2924 = smul.u32 2, %s23
        %p2925 = scmp.lt.s32.totalorder %s22, 1
        %s2926 = scalar_select %p2925, %s22, 1
        %p2927 = scmp.lt.s32.totalorder %s2924, 1
        %s2928 = scalar_select %p2927, %s2924, 1
        %s2929 = smul.addr %s2928, 4
        %s2930 = smul.addr %s2926, 8
        %s2931 = sadd.s32 %s2929, %s2930
        %s2932 = smul.addr %s2931, 8
        %s2933 = scalar_lea.vmem %s5, %s2932
      $region52: #{spatial_attention2.1} parent=47 // pred_fallthru
        _
    $region48: #{spatial_attention2.1} parent=5 // pred_fallthru
      _
  $region6: #{spatial_attention2.1} parent=0 // loop_footer
    %s15 = sadd.s32 1, %s11
  $region7: #{spatial_attention2.1} parent=0 // loop_footer_branch
    %10 = sbr.rel target = $region3
  $region8: #{spatial_attention2.1} parent=0 // loop_exit
    _

</llo_original>
